<compile_context>
chip_gen: v6e
topology: v6e:2x2x1
jax: 0.10.0
libtpu: 0.0.40
codegen_flags: <defaults>
</compile_context>

<pallas_src>
import math

import jax
import jax.numpy as jnp
from jax.experimental import pallas as pl
from jax.experimental.pallas import tpu as pltpu


def _attention_block_kernel(
    x_ref,      # (B, N, Cin)    input rows
    w3_ref,     # (3H, Cin, D)   q|k|v weights, head-leading (scale folded into q)
    b3_ref,     # (3H, 1, D)     q|k|v biases,  head-leading (scale folded into q)
    bias_ref,   # (N, N)         additive attention bias (self.B)
    wp3_ref,    # (H, D, E)      output projection weight, head-leading
    bp_ref,     # (1, E)         output projection bias
    o_ref,      # (B, N, E)
):
    B, N, Cin = x_ref.shape
    H3, _, D = w3_ref.shape          # H3 = 3 * num_head
    H = wp3_ref.shape[0]
    E = bp_ref.shape[-1]

    x = x_ref[...]                   # (B, N, Cin)
    w3 = w3_ref[...]                 # (3H, Cin, D)
    b3 = b3_ref[...]                 # (3H, 1, D)

    # ---- fused, head-leading q/k/v projection: ONE batched dot_general ----
    # (heads/projections are batch dims, so no lane-splitting relayout later)
    xb = jnp.broadcast_to(x[:, None, :, :], (B, H3, N, Cin)).reshape(B * H3, N, Cin)
    wb = jnp.broadcast_to(w3[None], (B, H3, Cin, D)).reshape(B * H3, Cin, D)
    qkv = jnp.einsum('pnc,pcd->pnd', xb, wb,
                     preferred_element_type=jnp.float32)          # (B*3H, N, D)
    qkv = qkv.reshape(B, H3, N, D) + b3[None]                      # (B, 3H, N, D)

    # heads live on a leading axis -> cheap static leading-dim slices
    q = qkv[:, 0:H].reshape(B * H, N, D)          # 1/sqrt(D) already folded in
    k = qkv[:, H:2 * H].reshape(B * H, N, D)
    v = qkv[:, 2 * H:3 * H].reshape(B * H, N, D)

    # ---- attention: single batched QK^T, one wide softmax, batched P@V ----
    s = jnp.einsum('pqd,pkd->pqk', q, k,
                   preferred_element_type=jnp.float32)             # (B*H, N, N)
    s = s + bias_ref[...][None]
    m = jnp.max(s, axis=-1, keepdims=True)
    e = jnp.exp(s - m)
    p = e * pl.reciprocal(jnp.sum(e, axis=-1, keepdims=True), approx=False)
    ctx = jnp.einsum('pqk,pkd->pqd', p, v,
                     preferred_element_type=jnp.float32)           # (B*H, N, D)

    # ---- output projection (head-batched); merge heads by summation ----
    wpb = jnp.broadcast_to(wp3_ref[...][None], (B, H, D, E)).reshape(B * H, D, E)
    out = jnp.einsum('pnd,pde->pne', ctx, wpb,
                     preferred_element_type=jnp.float32)           # (B*H, N, E)
    out = jnp.sum(out.reshape(B, H, N, E), axis=1) + bp_ref[...][None]  # (B, N, E)

    o_ref[...] = out.astype(o_ref.dtype)


def prepare_attention_params(params, *, num_head, hidden_dim):
    """One-time parameter fusion/rearrangement (hoisted out of the hot path)."""
    wq, bq, wk, bk, wv, bv, bias_B, wp, bp = params
    Cin = wq.shape[0]
    H, D, E = num_head, hidden_dim, hidden_dim
    scale = 1.0 / math.sqrt(float(hidden_dim))

    def per_head(w, b, s=1.0):
        w3 = (w * s).reshape(Cin, H, D).transpose(1, 0, 2)   # (H, Cin, D)
        b3 = (b * s).reshape(H, 1, D)                        # (H, 1, D)
        return w3, b3

    wq3, bq3 = per_head(wq, bq, scale)        # fold 1/sqrt(head_dim) into q
    wk3, bk3 = per_head(wk, bk)
    wv3, bv3 = per_head(wv, bv)

    w3 = jnp.concatenate([wq3, wk3, wv3], axis=0)            # (3H, Cin, D)
    b3 = jnp.concatenate([bq3, bk3, bv3], axis=0)            # (3H, 1, D)
    wp3 = wp.reshape(H, D, E)                                 # (H, D, E)
    bp2 = bp.reshape(1, E)                                    # (1, E)
    return w3, b3, bias_B, wp3, bp2


def attention_block(x, prepared_params):
    """x: (B, N, Cin) float32.  Returns (B, N, hidden_dim)."""
    w3, b3, bias_B, wp3, bp2 = prepared_params
    B, N, Cin = x.shape
    H3, _, D = w3.shape
    H = H3 // 3
    E = bp2.shape[-1]

    def full(shape):
        return pl.BlockSpec(shape, lambda i: (0,) * len(shape))

    return pl.pallas_call(
        _attention_block_kernel,
        out_shape=jax.ShapeDtypeStruct((B, N, E), x.dtype),
        grid_spec=pltpu.PrefetchScalarGridSpec(
            num_scalar_prefetch=0,
            grid=(1,),                      # single grid step (per perf review)
            in_specs=[
                full((B, N, Cin)),          # x
                full((H3, Cin, D)),         # fused head-leading W_qkv
                full((H3, 1, D)),           # fused head-leading b_qkv
                full((N, N)),               # bias B
                full((H, D, E)),            # head-leading proj W
                full((1, E)),               # proj b
            ],
            out_specs=full((B, N, E)),
        ),
        compiler_params=pltpu.CompilerParams(
            dimension_semantics=("arbitrary",),
        ),
    )(x, w3, b3, bias_B, wp3, bp2)


def attention_block_ref(x, params, *, num_head, hidden_dim):
    """Pure-JAX reference mirroring the PyTorch forward (dropout p=0)."""
    wq, bq, wk, bk, wv, bv, bias_B, wp, bp = params
    B, N, _ = x.shape
    q = x @ wq + bq
    k = x @ wk + bk
    v = x @ wv + bv
    C = q.shape[-1]
    Dh = C // num_head
    q = q.reshape(B, N, num_head, Dh).transpose(0, 2, 1, 3)
    k = k.reshape(B, N, num_head, Dh).transpose(0, 2, 1, 3)
    v = v.reshape(B, N, num_head, Dh).transpose(0, 2, 1, 3)
    atten = q @ jnp.swapaxes(k, -2, -1)
    atten = jax.nn.softmax(atten / math.sqrt(hidden_dim) + bias_B, axis=-1)
    out = atten @ v
    out = out.transpose(0, 2, 1, 3).reshape(B, N, C)
    return out @ wp + bp


if __name__ == "__main__":
    # Small, module-consistent shapes.
    batch = 2
    variables = 8          # N (sequence length), matches the (variables, variables) bias
    input_dim = 32
    hidden_dim = 16
    num_head = 4
    HD = hidden_dim * num_head

    key = jax.random.PRNGKey(0)
    keys = jax.random.split(key, 10)

    x = jax.random.normal(keys[0], (batch, variables, input_dim), dtype=jnp.float32)

    # Deterministic synthetic parameters (weights stored as (in, out)).
    s = 0.1
    wq = s * jax.random.normal(keys[1], (input_dim, HD), dtype=jnp.float32)
    bq = s * jax.random.normal(keys[2], (HD,), dtype=jnp.float32)
    wk = s * jax.random.normal(keys[3], (input_dim, HD), dtype=jnp.float32)
    bk = s * jax.random.normal(keys[4], (HD,), dtype=jnp.float32)
    wv = s * jax.random.normal(keys[5], (input_dim, HD), dtype=jnp.float32)
    bv = s * jax.random.normal(keys[6], (HD,), dtype=jnp.float32)
    bias_B = jax.random.normal(keys[7], (variables, variables), dtype=jnp.float32)
    wp = s * jax.random.normal(keys[8], (HD, hidden_dim), dtype=jnp.float32)
    bp = s * jax.random.normal(keys[9], (hidden_dim,), dtype=jnp.float32)

    params = (wq, bq, wk, bk, wv, bv, bias_B, wp, bp)

    # One-time parameter preparation (hoisted out of the forward path).
    prepared = prepare_attention_params(params, num_head=num_head, hidden_dim=hidden_dim)

    out = attention_block(x, prepared)
    out = jax.block_until_ready(out)

    ref = attention_block_ref(x, params, num_head=num_head, hidden_dim=hidden_dim)
    assert out.shape == (batch, variables, hidden_dim)
    assert jnp.allclose(out, ref, atol=1e-4, rtol=1e-4), "mismatch vs reference"

    print("KERNEL_OK")
</pallas_src>

<mosaic_0001>
module attributes {stable_mosaic.version = 11 : i64} {
  func.func @_attention_block_kernel(%arg0: i32, %arg1: memref<2x8x32xf32, #tpu.memory_space<vmem>>, %arg2: memref<12x32x16xf32, #tpu.memory_space<vmem>>, %arg3: memref<12x1x16xf32, #tpu.memory_space<vmem>>, %arg4: memref<8x8xf32, #tpu.memory_space<vmem>>, %arg5: memref<4x16x16xf32, #tpu.memory_space<vmem>>, %arg6: memref<1x16xf32, #tpu.memory_space<vmem>>, %arg7: memref<2x8x16xf32, #tpu.memory_space<vmem>>) attributes {dimension_semantics = [#tpu.dimension_semantics<arbitrary>], iteration_bounds = array<i64: 1>, scalar_prefetch = 0 : i64, scratch_operands = 0 : i64, tpu.core_type = #tpu.core_type<tc>, window_params = [{pipeline_mode = #tpu.pipeline_mode<synchronous>, transform_indices = @transform_0, window_bounds = array<i64: 2, 8, 32>}, {pipeline_mode = #tpu.pipeline_mode<synchronous>, transform_indices = @transform_1, window_bounds = array<i64: 12, 32, 16>}, {pipeline_mode = #tpu.pipeline_mode<synchronous>, transform_indices = @transform_2, window_bounds = array<i64: 12, 1, 16>}, {pipeline_mode = #tpu.pipeline_mode<synchronous>, transform_indices = @transform_3, window_bounds = array<i64: 8, 8>}, {pipeline_mode = #tpu.pipeline_mode<synchronous>, transform_indices = @transform_4, window_bounds = array<i64: 4, 16, 16>}, {pipeline_mode = #tpu.pipeline_mode<synchronous>, transform_indices = @transform_5, window_bounds = array<i64: 1, 16>}, {pipeline_mode = #tpu.pipeline_mode<synchronous>, transform_indices = @transform_6, window_bounds = array<i64: 2, 8, 16>}]} {
    %c0 = arith.constant 0 : index
    %c0_0 = arith.constant 0 : index
    %c0_1 = arith.constant 0 : index
    %0 = vector.load %arg1[%c0, %c0_0, %c0_1] : memref<2x8x32xf32, #tpu.memory_space<vmem>>, vector<2x8x32xf32>
    %c0_2 = arith.constant 0 : index
    %c0_3 = arith.constant 0 : index
    %c0_4 = arith.constant 0 : index
    %1 = vector.load %arg2[%c0_2, %c0_3, %c0_4] : memref<12x32x16xf32, #tpu.memory_space<vmem>>, vector<12x32x16xf32>
    %c0_5 = arith.constant 0 : index
    %c0_6 = arith.constant 0 : index
    %c0_7 = arith.constant 0 : index
    %2 = vector.load %arg3[%c0_5, %c0_6, %c0_7] : memref<12x1x16xf32, #tpu.memory_space<vmem>>, vector<12x1x16xf32>
    %3 = vector.shape_cast %0 : vector<2x8x32xf32> to vector<2x1x8x32xf32>
    %4 = vector.shape_cast %3 : vector<2x1x8x32xf32> to vector<2x1x8x32xf32>
    %5 = vector.broadcast %4 : vector<2x1x8x32xf32> to vector<2x12x8x32xf32>
    %6 = vector.shape_cast %5 : vector<2x12x8x32xf32> to vector<24x8x32xf32>
    %7 = vector.shape_cast %1 : vector<12x32x16xf32> to vector<1x12x32x16xf32>
    %8 = vector.shape_cast %7 : vector<1x12x32x16xf32> to vector<1x12x32x16xf32>
    %9 = vector.broadcast %8 : vector<1x12x32x16xf32> to vector<2x12x32x16xf32>
    %10 = vector.shape_cast %9 : vector<2x12x32x16xf32> to vector<24x32x16xf32>
    "tpu.trace_start"() <{level = 10 : i32, message = "pnc,pcd->pnd"}> : () -> ()
    %cst = arith.constant dense<0.000000e+00> : vector<24x8x16xf32>
    %11 = tpu.matmul %6, %10, %cst {dimension_numbers = #tpu.dot_dimension_numbers<[2], [1], [1], [2], [0, 0, 0, 1, 1, 2], [0], [0]>} : vector<24x8x32xf32>, vector<24x32x16xf32>, vector<24x8x16xf32> -> vector<24x8x16xf32>
    "tpu.trace_stop"() : () -> ()
    %12 = vector.shape_cast %11 : vector<24x8x16xf32> to vector<2x12x8x16xf32>
    %13 = vector.shape_cast %2 : vector<12x1x16xf32> to vector<1x12x1x16xf32>
    %14 = vector.broadcast %13 : vector<1x12x1x16xf32> to vector<2x12x8x16xf32>
    %15 = arith.addf %12, %14 : vector<2x12x8x16xf32>
    %16 = vector.extract_strided_slice %15 {offsets = [0, 0, 0, 0], sizes = [2, 4, 8, 16], strides = [1, 1, 1, 1]} : vector<2x12x8x16xf32> to vector<2x4x8x16xf32>
    %17 = vector.shape_cast %16 : vector<2x4x8x16xf32> to vector<8x8x16xf32>
    %18 = vector.extract_strided_slice %15 {offsets = [0, 4, 0, 0], sizes = [2, 4, 8, 16], strides = [1, 1, 1, 1]} : vector<2x12x8x16xf32> to vector<2x4x8x16xf32>
    %19 = vector.shape_cast %18 : vector<2x4x8x16xf32> to vector<8x8x16xf32>
    %20 = vector.extract_strided_slice %15 {offsets = [0, 8, 0, 0], sizes = [2, 4, 8, 16], strides = [1, 1, 1, 1]} : vector<2x12x8x16xf32> to vector<2x4x8x16xf32>
    %21 = vector.shape_cast %20 : vector<2x4x8x16xf32> to vector<8x8x16xf32>
    "tpu.trace_start"() <{level = 10 : i32, message = "pqd,pkd->pqk"}> : () -> ()
    %cst_8 = arith.constant dense<0.000000e+00> : vector<8x8x8xf32>
    %22 = tpu.matmul %17, %19, %cst_8 {dimension_numbers = #tpu.dot_dimension_numbers<[2], [2], [1], [1], [0, 0, 0, 1, 1, 1], [0], [0]>} : vector<8x8x16xf32>, vector<8x8x16xf32>, vector<8x8x8xf32> -> vector<8x8x8xf32>
    "tpu.trace_stop"() : () -> ()
    %c0_9 = arith.constant 0 : index
    %c0_10 = arith.constant 0 : index
    %23 = vector.load %arg4[%c0_9, %c0_10] : memref<8x8xf32, #tpu.memory_space<vmem>>, vector<8x8xf32>
    %24 = vector.shape_cast %23 : vector<8x8xf32> to vector<1x8x8xf32>
    %25 = vector.broadcast %24 : vector<1x8x8xf32> to vector<8x8x8xf32>
    %26 = arith.addf %22, %25 : vector<8x8x8xf32>
    %cst_11 = arith.constant dense<0xFF800000> : vector<8x8xf32>
    %27 = vector.multi_reduction <maximumf>, %26, %cst_11 [2] : vector<8x8x8xf32> to vector<8x8xf32>
    %28 = vector.shape_cast %27 : vector<8x8xf32> to vector<8x8x1xf32>
    %29 = vector.broadcast %28 : vector<8x8x1xf32> to vector<8x8x8xf32>
    %30 = arith.subf %26, %29 : vector<8x8x8xf32>
    %31 = math.exp %30 : vector<8x8x8xf32>
    %cst_12 = arith.constant dense<0.000000e+00> : vector<8x8xf32>
    %32 = vector.multi_reduction <add>, %31, %cst_12 [2] : vector<8x8x8xf32> to vector<8x8xf32>
    %33 = vector.shape_cast %32 : vector<8x8xf32> to vector<8x8x1xf32>
    %34 = tpu.reciprocal %33 : vector<8x8x1xf32> -> vector<8x8x1xf32>
    %35 = vector.broadcast %34 : vector<8x8x1xf32> to vector<8x8x8xf32>
    %36 = arith.mulf %31, %35 : vector<8x8x8xf32>
    "tpu.trace_start"() <{level = 10 : i32, message = "pqk,pkd->pqd"}> : () -> ()
    %cst_13 = arith.constant dense<0.000000e+00> : vector<8x8x16xf32>
    %37 = tpu.matmul %36, %21, %cst_13 {dimension_numbers = #tpu.dot_dimension_numbers<[2], [1], [1], [2], [0, 0, 0, 1, 1, 2], [0], [0]>} : vector<8x8x8xf32>, vector<8x8x16xf32>, vector<8x8x16xf32> -> vector<8x8x16xf32>
    "tpu.trace_stop"() : () -> ()
    %c0_14 = arith.constant 0 : index
    %c0_15 = arith.constant 0 : index
    %c0_16 = arith.constant 0 : index
    %38 = vector.load %arg5[%c0_14, %c0_15, %c0_16] : memref<4x16x16xf32, #tpu.memory_space<vmem>>, vector<4x16x16xf32>
    %39 = vector.shape_cast %38 : vector<4x16x16xf32> to vector<1x4x16x16xf32>
    %40 = vector.shape_cast %39 : vector<1x4x16x16xf32> to vector<1x4x16x16xf32>
    %41 = vector.broadcast %40 : vector<1x4x16x16xf32> to vector<2x4x16x16xf32>
    %42 = vector.shape_cast %41 : vector<2x4x16x16xf32> to vector<8x16x16xf32>
    "tpu.trace_start"() <{level = 10 : i32, message = "pnd,pde->pne"}> : () -> ()
    %cst_17 = arith.constant dense<0.000000e+00> : vector<8x8x16xf32>
    %43 = tpu.matmul %37, %42, %cst_17 {dimension_numbers = #tpu.dot_dimension_numbers<[2], [1], [1], [2], [0, 0, 0, 1, 1, 2], [0], [0]>} : vector<8x8x16xf32>, vector<8x16x16xf32>, vector<8x8x16xf32> -> vector<8x8x16xf32>
    "tpu.trace_stop"() : () -> ()
    %44 = vector.shape_cast %43 : vector<8x8x16xf32> to vector<2x4x8x16xf32>
    %cst_18 = arith.constant dense<0.000000e+00> : vector<2x8x16xf32>
    %45 = vector.multi_reduction <add>, %44, %cst_18 [1] : vector<2x4x8x16xf32> to vector<2x8x16xf32>
    %c0_19 = arith.constant 0 : index
    %c0_20 = arith.constant 0 : index
    %46 = vector.load %arg6[%c0_19, %c0_20] : memref<1x16xf32, #tpu.memory_space<vmem>>, vector<1x16xf32>
    %47 = vector.shape_cast %46 : vector<1x16xf32> to vector<1x1x16xf32>
    %48 = vector.broadcast %47 : vector<1x1x16xf32> to vector<2x8x16xf32>
    %49 = arith.addf %45, %48 : vector<2x8x16xf32>
    %c0_21 = arith.constant 0 : index
    %c0_22 = arith.constant 0 : index
    %c0_23 = arith.constant 0 : index
    %50 = vector.load %arg7[%c0_21, %c0_22, %c0_23] : memref<2x8x16xf32, #tpu.memory_space<vmem>>, vector<2x8x16xf32>
    tpu.vector_store %arg7[%c0_21, %c0_22, %c0_23], %49 {strides = array<i32>} : memref<2x8x16xf32, #tpu.memory_space<vmem>>, vector<2x8x16xf32>,
    return
  }
  func.func @transform_0(%arg0: i32) -> (i32, i32, i32) {
    %c0_i32 = arith.constant 0 : i32
    %c0_i32_0 = arith.constant 0 : i32
    %c0_i32_1 = arith.constant 0 : i32
    %c0_i32_2 = arith.constant 0 : i32
    return %c0_i32, %c0_i32_0, %c0_i32_1 : i32, i32, i32
  }
  func.func @transform_1(%arg0: i32) -> (i32, i32, i32) {
    %c0_i32 = arith.constant 0 : i32
    %c0_i32_0 = arith.constant 0 : i32
    %c0_i32_1 = arith.constant 0 : i32
    %c0_i32_2 = arith.constant 0 : i32
    return %c0_i32, %c0_i32_0, %c0_i32_1 : i32, i32, i32
  }
  func.func @transform_2(%arg0: i32) -> (i32, i32, i32) {
    %c0_i32 = arith.constant 0 : i32
    %c0_i32_0 = arith.constant 0 : i32
    %c0_i32_1 = arith.constant 0 : i32
    %c0_i32_2 = arith.constant 0 : i32
    return %c0_i32, %c0_i32_0, %c0_i32_1 : i32, i32, i32
  }
  func.func @transform_3(%arg0: i32) -> (i32, i32) {
    %c0_i32 = arith.constant 0 : i32
    %c0_i32_0 = arith.constant 0 : i32
    %c0_i32_1 = arith.constant 0 : i32
    return %c0_i32, %c0_i32_0 : i32, i32
  }
  func.func @transform_4(%arg0: i32) -> (i32, i32, i32) {
    %c0_i32 = arith.constant 0 : i32
    %c0_i32_0 = arith.constant 0 : i32
    %c0_i32_1 = arith.constant 0 : i32
    %c0_i32_2 = arith.constant 0 : i32
    return %c0_i32, %c0_i32_0, %c0_i32_1 : i32, i32, i32
  }
  func.func @transform_5(%arg0: i32) -> (i32, i32) {
    %c0_i32 = arith.constant 0 : i32
    %c0_i32_0 = arith.constant 0 : i32
    %c0_i32_1 = arith.constant 0 : i32
    return %c0_i32, %c0_i32_0 : i32, i32
  }
  func.func @transform_6(%arg0: i32) -> (i32, i32, i32) {
    %c0_i32 = arith.constant 0 : i32
    %c0_i32_0 = arith.constant 0 : i32
    %c0_i32_1 = arith.constant 0 : i32
    %c0_i32_2 = arith.constant 0 : i32
    return %c0_i32, %c0_i32_0, %c0_i32_1 : i32, i32, i32
  }
}

</mosaic_0001>

<llo_original>
// kernel: tpu_custom_call.1
$region0: #{tpu_custom_call.1}
  #allocation0 [shape = 'u32[]', space=smem, size = 0x4, offset = 0x4, fixed_abs, tag = 'smem constant byte address 0x4 - core index']
  #allocation1 [shape = 'u32[144,128]{1,0:T(1,128)}', space=vmem, size = 0x12000, scoped, tag = 'internal scratch']
  %s0 = inlined_call_operand.vmem [shape: f32[2,8,32], index: 0, kind: input, shape index: {}]
  %s1 = inlined_call_operand.vmem [shape: f32[12,32,16], index: 1, kind: input, shape index: {}]
  %s2 = inlined_call_operand.vmem [shape: f32[12,1,16], index: 2, kind: input, shape index: {}]
  %s3 = inlined_call_operand.vmem [shape: f32[8,8], index: 3, kind: input, shape index: {}]
  %s4 = inlined_call_operand.vmem [shape: f32[4,16,16], index: 4, kind: input, shape index: {}]
  %s5 = inlined_call_operand.vmem [shape: f32[1,16], index: 5, kind: input, shape index: {}]
  %s6 = inlined_call_operand.hbm [shape: f32[2,8,16], index: 6, kind: output, shape index: {}]
  %s7 = sld [smem:[#allocation0]]
  $region34: #{tpu_custom_call.1} parent=0
    _
  %s9 = ssub.s32 1, %s7
  %s10 = scalar_select 0, %s9, %s7
  $region1: #{tpu_custom_call.1} parent=0
    #allocation2 [shape = 'u8[8192]{0}', space=vmem, size = 0x2000, scoped, tag = 'output window, operand 0, single buffered']
    #allocation3 [shape = 's32[1]{0}', space=sflag, size = 0x4, scoped, tag = 'scoped memory for tpu_custom_call.1']
    %11 = vsyncpa [#allocation3], 0
    // Predicated region
    $region2: #{tpu_custom_call.1} parent=1 // pred_check
      _
    $region3: #{tpu_custom_call.1} parent=1 // pred_check_branch
      %13 = sbr.rel (0) target = $region5
    $region4: #{tpu_custom_call.1} parent=1 // pred_region
      _
    $region5: #{tpu_custom_call.1} parent=1 // pred_fallthru
      _
    // Predicated region
    $region6: #{tpu_custom_call.1} parent=1 // pred_check
      _
    $region7: #{tpu_custom_call.1} parent=1 // pred_check_branch
      %15 = sbr.rel (0) target = $region9
    $region8: #{tpu_custom_call.1} parent=1 // pred_region
      _
    $region9: #{tpu_custom_call.1} parent=1 // pred_fallthru
      _
    // Predicated region
    $region10: #{tpu_custom_call.1} parent=1 // pred_check
      _
    $region11: #{tpu_custom_call.1} parent=1 // pred_check_branch
      %17 = sbr.rel (0) target = $region13
    $region12: #{tpu_custom_call.1} parent=1 // pred_region
      _
    $region13: #{tpu_custom_call.1} parent=1 // pred_fallthru
      _
    // Predicated region
    $region14: #{tpu_custom_call.1} parent=1 // pred_check
      _
    $region15: #{tpu_custom_call.1} parent=1 // pred_check_branch
      %19 = sbr.rel (0) target = $region17
    $region16: #{tpu_custom_call.1} parent=1 // pred_region
      _
    $region17: #{tpu_custom_call.1} parent=1 // pred_fallthru
      _
    // Predicated region
    $region18: #{tpu_custom_call.1} parent=1 // pred_check
      _
    $region19: #{tpu_custom_call.1} parent=1 // pred_check_branch
      %21 = sbr.rel (0) target = $region21
    $region20: #{tpu_custom_call.1} parent=1 // pred_region
      _
    $region21: #{tpu_custom_call.1} parent=1 // pred_fallthru
      _
    // Predicated region
    $region22: #{tpu_custom_call.1} parent=1 // pred_check
      _
    $region23: #{tpu_custom_call.1} parent=1 // pred_check_branch
      %23 = sbr.rel (0) target = $region25
    $region24: #{tpu_custom_call.1} parent=1 // pred_region
      _
    $region25: #{tpu_custom_call.1} parent=1 // pred_fallthru
      _
    %v24 = vld [vmem:[%s0] sm:$0xff]
    %v25 = vld [vmem:[%s0 + $0x8] sm:$0xff]
    %v26 = vld [vmem:[%s1] sm:$0xff]
    %v27 = vld [vmem:[%s1 + $0x8] sm:$0xff]
    %v28 = vld [vmem:[%s1 + $0x10] sm:$0xff]
    %v29 = vld [vmem:[%s1 + $0x18] sm:$0xff]
    %v30 = vld [vmem:[%s1 + $0x20] sm:$0xff]
    %v31 = vld [vmem:[%s1 + $0x28] sm:$0xff]
    %v32 = vld [vmem:[%s1 + $0x30] sm:$0xff]
    %v33 = vld [vmem:[%s1 + $0x38] sm:$0xff]
    %v34 = vld [vmem:[%s1 + $0x40] sm:$0xff]
    %v35 = vld [vmem:[%s1 + $0x48] sm:$0xff]
    %v36 = vld [vmem:[%s1 + $0x50] sm:$0xff]
    %v37 = vld [vmem:[%s1 + $0x58] sm:$0xff]
    %v38 = vld [vmem:[%s1 + $0x60] sm:$0xff]
    %v39 = vld [vmem:[%s1 + $0x68] sm:$0xff]
    %v40 = vld [vmem:[%s1 + $0x70] sm:$0xff]
    %v41 = vld [vmem:[%s1 + $0x78] sm:$0xff]
    %v42 = vld [vmem:[%s1 + $0x80] sm:$0xff]
    %v43 = vld [vmem:[%s1 + $0x88] sm:$0xff]
    %v44 = vld [vmem:[%s1 + $0x90] sm:$0xff]
    %v45 = vld [vmem:[%s1 + $0x98] sm:$0xff]
    %v46 = vld [vmem:[%s1 + $0xa0] sm:$0xff]
    %v47 = vld [vmem:[%s1 + $0xa8] sm:$0xff]
    %v48 = vld [vmem:[%s1 + $0xb0] sm:$0xff]
    %v49 = vld [vmem:[%s1 + $0xb8] sm:$0xff]
    %v50 = vld [vmem:[%s1 + $0xc0] sm:$0xff]
    %v51 = vld [vmem:[%s1 + $0xc8] sm:$0xff]
    %v52 = vld [vmem:[%s1 + $0xd0] sm:$0xff]
    %v53 = vld [vmem:[%s1 + $0xd8] sm:$0xff]
    %v54 = vld [vmem:[%s1 + $0xe0] sm:$0xff]
    %v55 = vld [vmem:[%s1 + $0xe8] sm:$0xff]
    %v56 = vld [vmem:[%s1 + $0xf0] sm:$0xff]
    %v57 = vld [vmem:[%s1 + $0xf8] sm:$0xff]
    %v58 = vld [vmem:[%s1 + $0x100] sm:$0xff]
    %v59 = vld [vmem:[%s1 + $0x108] sm:$0xff]
    %v60 = vld [vmem:[%s1 + $0x110] sm:$0xff]
    %v61 = vld [vmem:[%s1 + $0x118] sm:$0xff]
    %v62 = vld [vmem:[%s1 + $0x120] sm:$0xff]
    %v63 = vld [vmem:[%s1 + $0x128] sm:$0xff]
    %v64 = vld [vmem:[%s1 + $0x130] sm:$0xff]
    %v65 = vld [vmem:[%s1 + $0x138] sm:$0xff]
    %v66 = vld [vmem:[%s1 + $0x140] sm:$0xff]
    %v67 = vld [vmem:[%s1 + $0x148] sm:$0xff]
    %v68 = vld [vmem:[%s1 + $0x150] sm:$0xff]
    %v69 = vld [vmem:[%s1 + $0x158] sm:$0xff]
    %v70 = vld [vmem:[%s1 + $0x160] sm:$0xff]
    %v71 = vld [vmem:[%s1 + $0x168] sm:$0xff]
    %v72 = vld [vmem:[%s1 + $0x170] sm:$0xff]
    %v73 = vld [vmem:[%s1 + $0x178] sm:$0xff]
    %v74 = vld [vmem:[%s2] sm:$0x1]
    %v75 = vld [vmem:[%s2 + $0x1] sm:$0x1]
    %v76 = vld [vmem:[%s2 + $0x2] sm:$0x1]
    %v77 = vld [vmem:[%s2 + $0x3] sm:$0x1]
    %v78 = vld [vmem:[%s2 + $0x4] sm:$0x1]
    %v79 = vld [vmem:[%s2 + $0x5] sm:$0x1]
    %v80 = vld [vmem:[%s2 + $0x6] sm:$0x1]
    %v81 = vld [vmem:[%s2 + $0x7] sm:$0x1]
    %v82 = vld [vmem:[%s2 + $0x8] sm:$0x1]
    %v83 = vld [vmem:[%s2 + $0x9] sm:$0x1]
    %v84 = vld [vmem:[%s2 + $0xa] sm:$0x1]
    %v85 = vld [vmem:[%s2 + $0xb] sm:$0x1]
    %vm86 = vcmask 261120
    %v88 = vsel %vm86, %v24, 0
    %90 = vmatprep.subr.mxu0 0.0
    %91 = vmatpush1.msra.mxu0 0.0
    %92 = vmatprep.subr.mxu0 0.0
    %93 = vmatpush1.msra.mxu0 0.0
    %94 = vmatprep.subr.mxu0 0.0
    %95 = vmatpush1.msra.mxu0 0.0
    %96 = vmatprep.subr.mxu0 0.0
    %97 = vmatpush1.msra.mxu0 0.0
    %98 = vmatprep.subr.mxu0 0.0
    %99 = vmatpush1.msra.mxu0 0.0
    %100 = vmatprep.subr.mxu0 0.0
    %101 = vmatpush1.msra.mxu0 0.0
    %102 = vmatprep.subr.mxu0 0.0
    %103 = vmatpush1.msra.mxu0 0.0
    %104 = vmatprep.subr.mxu0 0.0
    %105 = vmatpush1.msra.mxu0 0.0
    %106 = vmatprep.subr.mxu0 0.0
    %107 = vmatpush1.msra.mxu0 0.0
    %108 = vmatprep.subr.mxu0 0.0
    %109 = vmatpush1.msra.mxu0 0.0
    %110 = vmatprep.subr.mxu0 0.0
    %111 = vmatpush1.msra.mxu0 0.0
    %112 = vmatprep.subr.mxu0 0.0
    %113 = vmatpush1.msra.mxu0 0.0
    %114 = vmatprep.subr.mxu0 0.0
    %115 = vmatpush1.msra.mxu0 %v29
    %116 = vmatprep.subr.mxu0 0.0
    %117 = vmatpush1.msra.mxu0 %v28
    %118 = vmatprep.subr.mxu0 0.0
    %119 = vmatpush1.msra.mxu0 %v27
    %120 = vmatprep.subr.mxu0 0.0
    %121 = vmatpush1.msra.mxu0 %v26
    %122 = vmatprep.subr.mxu0 0.0
    %123 = vmatpush2.msra.mxu0 0.0
    %124 = vmatprep.subr.mxu0 0.0
    %125 = vmatpush2.msra.mxu0 0.0
    %126 = vmatprep.subr.mxu0 0.0
    %127 = vmatpush2.msra.mxu0 0.0
    %128 = vmatprep.subr.mxu0 0.0
    %129 = vmatpush2.msra.mxu0 0.0
    %130 = vmatprep.subr.mxu0 0.0
    %131 = vmatpush2.msra.mxu0 0.0
    %132 = vmatprep.subr.mxu0 0.0
    %133 = vmatpush2.msra.mxu0 0.0
    %134 = vmatprep.subr.mxu0 0.0
    %135 = vmatpush2.msra.mxu0 0.0
    %136 = vmatprep.subr.mxu0 0.0
    %137 = vmatpush2.msra.mxu0 0.0
    %138 = vmatprep.subr.mxu0 0.0
    %139 = vmatpush2.msra.mxu0 0.0
    %140 = vmatprep.subr.mxu0 0.0
    %141 = vmatpush2.msra.mxu0 0.0
    %142 = vmatprep.subr.mxu0 0.0
    %143 = vmatpush2.msra.mxu0 0.0
    %144 = vmatprep.subr.mxu0 0.0
    %145 = vmatpush2.msra.mxu0 0.0
    %146 = vmatprep.subr.mxu0 0.0
    %147 = vmatpush2.msra.mxu0 0.0
    %148 = vmatprep.subr.mxu0 0.0
    %149 = vmatpush2.msra.mxu0 0.0
    %150 = vmatprep.subr.mxu0 0.0
    %151 = vmatpush2.msra.mxu0 0.0
    %152 = vmatprep.subr.mxu0 0.0
    %153 = vmatpush2.msra.mxu0 0.0
    %154 = vmatprep.mubr.f32.mxu0 0.0
    %155 = vmatmul.mubr.f32.gmra.mxu0 %v88
    %v156 = vpop.f32.mrf.mxu0
    %v157 = vadd.f32 0.0, %v156
    %v158 = vpop.f32.mrf.mxu0
    %159 = vdwg.mxu0
    %160 = vmatprep.subr.mxu0 0.0
    %161 = vmatpush1.msra.mxu0 0.0
    %162 = vmatprep.subr.mxu0 0.0
    %163 = vmatpush1.msra.mxu0 0.0
    %164 = vmatprep.subr.mxu0 0.0
    %165 = vmatpush1.msra.mxu0 0.0
    %166 = vmatprep.subr.mxu0 0.0
    %167 = vmatpush1.msra.mxu0 0.0
    %168 = vmatprep.subr.mxu0 0.0
    %169 = vmatpush1.msra.mxu0 0.0
    %170 = vmatprep.subr.mxu0 0.0
    %171 = vmatpush1.msra.mxu0 0.0
    %172 = vmatprep.subr.mxu0 0.0
    %173 = vmatpush1.msra.mxu0 0.0
    %174 = vmatprep.subr.mxu0 0.0
    %175 = vmatpush1.msra.mxu0 0.0
    %176 = vmatprep.subr.mxu0 0.0
    %177 = vmatpush1.msra.mxu0 0.0
    %178 = vmatprep.subr.mxu0 0.0
    %179 = vmatpush1.msra.mxu0 0.0
    %180 = vmatprep.subr.mxu0 0.0
    %181 = vmatpush1.msra.mxu0 0.0
    %182 = vmatprep.subr.mxu0 0.0
    %183 = vmatpush1.msra.mxu0 0.0
    %184 = vmatprep.subr.mxu0 0.0
    %185 = vmatpush1.msra.mxu0 %v33
    %186 = vmatprep.subr.mxu0 0.0
    %187 = vmatpush1.msra.mxu0 %v32
    %188 = vmatprep.subr.mxu0 0.0
    %189 = vmatpush1.msra.mxu0 %v31
    %190 = vmatprep.subr.mxu0 0.0
    %191 = vmatpush1.msra.mxu0 %v30
    %192 = vmatprep.subr.mxu0 0.0
    %193 = vmatpush2.msra.mxu0 0.0
    %194 = vmatprep.subr.mxu0 0.0
    %195 = vmatpush2.msra.mxu0 0.0
    %196 = vmatprep.subr.mxu0 0.0
    %197 = vmatpush2.msra.mxu0 0.0
    %198 = vmatprep.subr.mxu0 0.0
    %199 = vmatpush2.msra.mxu0 0.0
    %200 = vmatprep.subr.mxu0 0.0
    %201 = vmatpush2.msra.mxu0 0.0
    %202 = vmatprep.subr.mxu0 0.0
    %203 = vmatpush2.msra.mxu0 0.0
    %204 = vmatprep.subr.mxu0 0.0
    %205 = vmatpush2.msra.mxu0 0.0
    %206 = vmatprep.subr.mxu0 0.0
    %207 = vmatpush2.msra.mxu0 0.0
    %208 = vmatprep.subr.mxu0 0.0
    %209 = vmatpush2.msra.mxu0 0.0
    %210 = vmatprep.subr.mxu0 0.0
    %211 = vmatpush2.msra.mxu0 0.0
    %212 = vmatprep.subr.mxu0 0.0
    %213 = vmatpush2.msra.mxu0 0.0
    %214 = vmatprep.subr.mxu0 0.0
    %215 = vmatpush2.msra.mxu0 0.0
    %216 = vmatprep.subr.mxu0 0.0
    %217 = vmatpush2.msra.mxu0 0.0
    %218 = vmatprep.subr.mxu0 0.0
    %219 = vmatpush2.msra.mxu0 0.0
    %220 = vmatprep.subr.mxu0 0.0
    %221 = vmatpush2.msra.mxu0 0.0
    %222 = vmatprep.subr.mxu0 0.0
    %223 = vmatpush2.msra.mxu0 0.0
    %224 = vmatprep.mubr.f32.mxu0 0.0
    %225 = vmatmul.mubr.f32.gmra.mxu0 %v88
    %v226 = vpop.f32.mrf.mxu0
    %v227 = vadd.f32 0.0, %v226
    %v228 = vpop.f32.mrf.mxu0
    %229 = vdwg.mxu0
    %230 = vmatprep.subr.mxu0 0.0
    %231 = vmatpush1.msra.mxu0 0.0
    %232 = vmatprep.subr.mxu0 0.0
    %233 = vmatpush1.msra.mxu0 0.0
    %234 = vmatprep.subr.mxu0 0.0
    %235 = vmatpush1.msra.mxu0 0.0
    %236 = vmatprep.subr.mxu0 0.0
    %237 = vmatpush1.msra.mxu0 0.0
    %238 = vmatprep.subr.mxu0 0.0
    %239 = vmatpush1.msra.mxu0 0.0
    %240 = vmatprep.subr.mxu0 0.0
    %241 = vmatpush1.msra.mxu0 0.0
    %242 = vmatprep.subr.mxu0 0.0
    %243 = vmatpush1.msra.mxu0 0.0
    %244 = vmatprep.subr.mxu0 0.0
    %245 = vmatpush1.msra.mxu0 0.0
    %246 = vmatprep.subr.mxu0 0.0
    %247 = vmatpush1.msra.mxu0 0.0
    %248 = vmatprep.subr.mxu0 0.0
    %249 = vmatpush1.msra.mxu0 0.0
    %250 = vmatprep.subr.mxu0 0.0
    %251 = vmatpush1.msra.mxu0 0.0
    %252 = vmatprep.subr.mxu0 0.0
    %253 = vmatpush1.msra.mxu0 0.0
    %254 = vmatprep.subr.mxu0 0.0
    %255 = vmatpush1.msra.mxu0 %v37
    %256 = vmatprep.subr.mxu0 0.0
    %257 = vmatpush1.msra.mxu0 %v36
    %258 = vmatprep.subr.mxu0 0.0
    %259 = vmatpush1.msra.mxu0 %v35
    %260 = vmatprep.subr.mxu0 0.0
    %261 = vmatpush1.msra.mxu0 %v34
    %262 = vmatprep.subr.mxu0 0.0
    %263 = vmatpush2.msra.mxu0 0.0
    %264 = vmatprep.subr.mxu0 0.0
    %265 = vmatpush2.msra.mxu0 0.0
    %266 = vmatprep.subr.mxu0 0.0
    %267 = vmatpush2.msra.mxu0 0.0
    %268 = vmatprep.subr.mxu0 0.0
    %269 = vmatpush2.msra.mxu0 0.0
    %270 = vmatprep.subr.mxu0 0.0
    %271 = vmatpush2.msra.mxu0 0.0
    %272 = vmatprep.subr.mxu0 0.0
    %273 = vmatpush2.msra.mxu0 0.0
    %274 = vmatprep.subr.mxu0 0.0
    %275 = vmatpush2.msra.mxu0 0.0
    %276 = vmatprep.subr.mxu0 0.0
    %277 = vmatpush2.msra.mxu0 0.0
    %278 = vmatprep.subr.mxu0 0.0
    %279 = vmatpush2.msra.mxu0 0.0
    %280 = vmatprep.subr.mxu0 0.0
    %281 = vmatpush2.msra.mxu0 0.0
    %282 = vmatprep.subr.mxu0 0.0
    %283 = vmatpush2.msra.mxu0 0.0
    %284 = vmatprep.subr.mxu0 0.0
    %285 = vmatpush2.msra.mxu0 0.0
    %286 = vmatprep.subr.mxu0 0.0
    %287 = vmatpush2.msra.mxu0 0.0
    %288 = vmatprep.subr.mxu0 0.0
    %289 = vmatpush2.msra.mxu0 0.0
    %290 = vmatprep.subr.mxu0 0.0
    %291 = vmatpush2.msra.mxu0 0.0
    %292 = vmatprep.subr.mxu0 0.0
    %293 = vmatpush2.msra.mxu0 0.0
    %294 = vmatprep.mubr.f32.mxu0 0.0
    %295 = vmatmul.mubr.f32.gmra.mxu0 %v88
    %v296 = vpop.f32.mrf.mxu0
    %v297 = vadd.f32 0.0, %v296
    %v298 = vpop.f32.mrf.mxu0
    %299 = vdwg.mxu0
    %300 = vmatprep.subr.mxu0 0.0
    %301 = vmatpush1.msra.mxu0 0.0
    %302 = vmatprep.subr.mxu0 0.0
    %303 = vmatpush1.msra.mxu0 0.0
    %304 = vmatprep.subr.mxu0 0.0
    %305 = vmatpush1.msra.mxu0 0.0
    %306 = vmatprep.subr.mxu0 0.0
    %307 = vmatpush1.msra.mxu0 0.0
    %308 = vmatprep.subr.mxu0 0.0
    %309 = vmatpush1.msra.mxu0 0.0
    %310 = vmatprep.subr.mxu0 0.0
    %311 = vmatpush1.msra.mxu0 0.0
    %312 = vmatprep.subr.mxu0 0.0
    %313 = vmatpush1.msra.mxu0 0.0
    %314 = vmatprep.subr.mxu0 0.0
    %315 = vmatpush1.msra.mxu0 0.0
    %316 = vmatprep.subr.mxu0 0.0
    %317 = vmatpush1.msra.mxu0 0.0
    %318 = vmatprep.subr.mxu0 0.0
    %319 = vmatpush1.msra.mxu0 0.0
    %320 = vmatprep.subr.mxu0 0.0
    %321 = vmatpush1.msra.mxu0 0.0
    %322 = vmatprep.subr.mxu0 0.0
    %323 = vmatpush1.msra.mxu0 0.0
    %324 = vmatprep.subr.mxu0 0.0
    %325 = vmatpush1.msra.mxu0 %v41
    %326 = vmatprep.subr.mxu0 0.0
    %327 = vmatpush1.msra.mxu0 %v40
    %328 = vmatprep.subr.mxu0 0.0
    %329 = vmatpush1.msra.mxu0 %v39
    %330 = vmatprep.subr.mxu0 0.0
    %331 = vmatpush1.msra.mxu0 %v38
    %332 = vmatprep.subr.mxu0 0.0
    %333 = vmatpush2.msra.mxu0 0.0
    %334 = vmatprep.subr.mxu0 0.0
    %335 = vmatpush2.msra.mxu0 0.0
    %336 = vmatprep.subr.mxu0 0.0
    %337 = vmatpush2.msra.mxu0 0.0
    %338 = vmatprep.subr.mxu0 0.0
    %339 = vmatpush2.msra.mxu0 0.0
    %340 = vmatprep.subr.mxu0 0.0
    %341 = vmatpush2.msra.mxu0 0.0
    %342 = vmatprep.subr.mxu0 0.0
    %343 = vmatpush2.msra.mxu0 0.0
    %344 = vmatprep.subr.mxu0 0.0
    %345 = vmatpush2.msra.mxu0 0.0
    %346 = vmatprep.subr.mxu0 0.0
    %347 = vmatpush2.msra.mxu0 0.0
    %348 = vmatprep.subr.mxu0 0.0
    %349 = vmatpush2.msra.mxu0 0.0
    %350 = vmatprep.subr.mxu0 0.0
    %351 = vmatpush2.msra.mxu0 0.0
    %352 = vmatprep.subr.mxu0 0.0
    %353 = vmatpush2.msra.mxu0 0.0
    %354 = vmatprep.subr.mxu0 0.0
    %355 = vmatpush2.msra.mxu0 0.0
    %356 = vmatprep.subr.mxu0 0.0
    %357 = vmatpush2.msra.mxu0 0.0
    %358 = vmatprep.subr.mxu0 0.0
    %359 = vmatpush2.msra.mxu0 0.0
    %360 = vmatprep.subr.mxu0 0.0
    %361 = vmatpush2.msra.mxu0 0.0
    %362 = vmatprep.subr.mxu0 0.0
    %363 = vmatpush2.msra.mxu0 0.0
    %364 = vmatprep.mubr.f32.mxu0 0.0
    %365 = vmatmul.mubr.f32.gmra.mxu0 %v88
    %v366 = vpop.f32.mrf.mxu0
    %v367 = vadd.f32 0.0, %v366
    %v368 = vpop.f32.mrf.mxu0
    %369 = vdwg.mxu0
    %370 = vmatprep.subr.mxu0 0.0
    %371 = vmatpush1.msra.mxu0 0.0
    %372 = vmatprep.subr.mxu0 0.0
    %373 = vmatpush1.msra.mxu0 0.0
    %374 = vmatprep.subr.mxu0 0.0
    %375 = vmatpush1.msra.mxu0 0.0
    %376 = vmatprep.subr.mxu0 0.0
    %377 = vmatpush1.msra.mxu0 0.0
    %378 = vmatprep.subr.mxu0 0.0
    %379 = vmatpush1.msra.mxu0 0.0
    %380 = vmatprep.subr.mxu0 0.0
    %381 = vmatpush1.msra.mxu0 0.0
    %382 = vmatprep.subr.mxu0 0.0
    %383 = vmatpush1.msra.mxu0 0.0
    %384 = vmatprep.subr.mxu0 0.0
    %385 = vmatpush1.msra.mxu0 0.0
    %386 = vmatprep.subr.mxu0 0.0
    %387 = vmatpush1.msra.mxu0 0.0
    %388 = vmatprep.subr.mxu0 0.0
    %389 = vmatpush1.msra.mxu0 0.0
    %390 = vmatprep.subr.mxu0 0.0
    %391 = vmatpush1.msra.mxu0 0.0
    %392 = vmatprep.subr.mxu0 0.0
    %393 = vmatpush1.msra.mxu0 0.0
    %394 = vmatprep.subr.mxu0 0.0
    %395 = vmatpush1.msra.mxu0 %v45
    %396 = vmatprep.subr.mxu0 0.0
    %397 = vmatpush1.msra.mxu0 %v44
    %398 = vmatprep.subr.mxu0 0.0
    %399 = vmatpush1.msra.mxu0 %v43
    %400 = vmatprep.subr.mxu0 0.0
    %401 = vmatpush1.msra.mxu0 %v42
    %402 = vmatprep.subr.mxu0 0.0
    %403 = vmatpush2.msra.mxu0 0.0
    %404 = vmatprep.subr.mxu0 0.0
    %405 = vmatpush2.msra.mxu0 0.0
    %406 = vmatprep.subr.mxu0 0.0
    %407 = vmatpush2.msra.mxu0 0.0
    %408 = vmatprep.subr.mxu0 0.0
    %409 = vmatpush2.msra.mxu0 0.0
    %410 = vmatprep.subr.mxu0 0.0
    %411 = vmatpush2.msra.mxu0 0.0
    %412 = vmatprep.subr.mxu0 0.0
    %413 = vmatpush2.msra.mxu0 0.0
    %414 = vmatprep.subr.mxu0 0.0
    %415 = vmatpush2.msra.mxu0 0.0
    %416 = vmatprep.subr.mxu0 0.0
    %417 = vmatpush2.msra.mxu0 0.0
    %418 = vmatprep.subr.mxu0 0.0
    %419 = vmatpush2.msra.mxu0 0.0
    %420 = vmatprep.subr.mxu0 0.0
    %421 = vmatpush2.msra.mxu0 0.0
    %422 = vmatprep.subr.mxu0 0.0
    %423 = vmatpush2.msra.mxu0 0.0
    %424 = vmatprep.subr.mxu0 0.0
    %425 = vmatpush2.msra.mxu0 0.0
    %426 = vmatprep.subr.mxu0 0.0
    %427 = vmatpush2.msra.mxu0 0.0
    %428 = vmatprep.subr.mxu0 0.0
    %429 = vmatpush2.msra.mxu0 0.0
    %430 = vmatprep.subr.mxu0 0.0
    %431 = vmatpush2.msra.mxu0 0.0
    %432 = vmatprep.subr.mxu0 0.0
    %433 = vmatpush2.msra.mxu0 0.0
    %434 = vmatprep.mubr.f32.mxu0 0.0
    %435 = vmatmul.mubr.f32.gmra.mxu0 %v88
    %v436 = vpop.f32.mrf.mxu0
    %v437 = vadd.f32 0.0, %v436
    %v438 = vpop.f32.mrf.mxu0
    %439 = vdwg.mxu0
    %440 = vmatprep.subr.mxu0 0.0
    %441 = vmatpush1.msra.mxu0 0.0
    %442 = vmatprep.subr.mxu0 0.0
    %443 = vmatpush1.msra.mxu0 0.0
    %444 = vmatprep.subr.mxu0 0.0
    %445 = vmatpush1.msra.mxu0 0.0
    %446 = vmatprep.subr.mxu0 0.0
    %447 = vmatpush1.msra.mxu0 0.0
    %448 = vmatprep.subr.mxu0 0.0
    %449 = vmatpush1.msra.mxu0 0.0
    %450 = vmatprep.subr.mxu0 0.0
    %451 = vmatpush1.msra.mxu0 0.0
    %452 = vmatprep.subr.mxu0 0.0
    %453 = vmatpush1.msra.mxu0 0.0
    %454 = vmatprep.subr.mxu0 0.0
    %455 = vmatpush1.msra.mxu0 0.0
    %456 = vmatprep.subr.mxu0 0.0
    %457 = vmatpush1.msra.mxu0 0.0
    %458 = vmatprep.subr.mxu0 0.0
    %459 = vmatpush1.msra.mxu0 0.0
    %460 = vmatprep.subr.mxu0 0.0
    %461 = vmatpush1.msra.mxu0 0.0
    %462 = vmatprep.subr.mxu0 0.0
    %463 = vmatpush1.msra.mxu0 0.0
    %464 = vmatprep.subr.mxu0 0.0
    %465 = vmatpush1.msra.mxu0 %v49
    %466 = vmatprep.subr.mxu0 0.0
    %467 = vmatpush1.msra.mxu0 %v48
    %468 = vmatprep.subr.mxu0 0.0
    %469 = vmatpush1.msra.mxu0 %v47
    %470 = vmatprep.subr.mxu0 0.0
    %471 = vmatpush1.msra.mxu0 %v46
    %472 = vmatprep.subr.mxu0 0.0
    %473 = vmatpush2.msra.mxu0 0.0
    %474 = vmatprep.subr.mxu0 0.0
    %475 = vmatpush2.msra.mxu0 0.0
    %476 = vmatprep.subr.mxu0 0.0
    %477 = vmatpush2.msra.mxu0 0.0
    %478 = vmatprep.subr.mxu0 0.0
    %479 = vmatpush2.msra.mxu0 0.0
    %480 = vmatprep.subr.mxu0 0.0
    %481 = vmatpush2.msra.mxu0 0.0
    %482 = vmatprep.subr.mxu0 0.0
    %483 = vmatpush2.msra.mxu0 0.0
    %484 = vmatprep.subr.mxu0 0.0
    %485 = vmatpush2.msra.mxu0 0.0
    %486 = vmatprep.subr.mxu0 0.0
    %487 = vmatpush2.msra.mxu0 0.0
    %488 = vmatprep.subr.mxu0 0.0
    %489 = vmatpush2.msra.mxu0 0.0
    %490 = vmatprep.subr.mxu0 0.0
    %491 = vmatpush2.msra.mxu0 0.0
    %492 = vmatprep.subr.mxu0 0.0
    %493 = vmatpush2.msra.mxu0 0.0
    %494 = vmatprep.subr.mxu0 0.0
    %495 = vmatpush2.msra.mxu0 0.0
    %496 = vmatprep.subr.mxu0 0.0
    %497 = vmatpush2.msra.mxu0 0.0
    %498 = vmatprep.subr.mxu0 0.0
    %499 = vmatpush2.msra.mxu0 0.0
    %500 = vmatprep.subr.mxu0 0.0
    %501 = vmatpush2.msra.mxu0 0.0
    %502 = vmatprep.subr.mxu0 0.0
    %503 = vmatpush2.msra.mxu0 0.0
    %504 = vmatprep.mubr.f32.mxu0 0.0
    %505 = vmatmul.mubr.f32.gmra.mxu0 %v88
    %v506 = vpop.f32.mrf.mxu0
    %v507 = vadd.f32 0.0, %v506
    %v508 = vpop.f32.mrf.mxu0
    %509 = vdwg.mxu0
    %510 = vmatprep.subr.mxu0 0.0
    %511 = vmatpush1.msra.mxu0 0.0
    %512 = vmatprep.subr.mxu0 0.0
    %513 = vmatpush1.msra.mxu0 0.0
    %514 = vmatprep.subr.mxu0 0.0
    %515 = vmatpush1.msra.mxu0 0.0
    %516 = vmatprep.subr.mxu0 0.0
    %517 = vmatpush1.msra.mxu0 0.0
    %518 = vmatprep.subr.mxu0 0.0
    %519 = vmatpush1.msra.mxu0 0.0
    %520 = vmatprep.subr.mxu0 0.0
    %521 = vmatpush1.msra.mxu0 0.0
    %522 = vmatprep.subr.mxu0 0.0
    %523 = vmatpush1.msra.mxu0 0.0
    %524 = vmatprep.subr.mxu0 0.0
    %525 = vmatpush1.msra.mxu0 0.0
    %526 = vmatprep.subr.mxu0 0.0
    %527 = vmatpush1.msra.mxu0 0.0
    %528 = vmatprep.subr.mxu0 0.0
    %529 = vmatpush1.msra.mxu0 0.0
    %530 = vmatprep.subr.mxu0 0.0
    %531 = vmatpush1.msra.mxu0 0.0
    %532 = vmatprep.subr.mxu0 0.0
    %533 = vmatpush1.msra.mxu0 0.0
    %534 = vmatprep.subr.mxu0 0.0
    %535 = vmatpush1.msra.mxu0 %v53
    %536 = vmatprep.subr.mxu0 0.0
    %537 = vmatpush1.msra.mxu0 %v52
    %538 = vmatprep.subr.mxu0 0.0
    %539 = vmatpush1.msra.mxu0 %v51
    %540 = vmatprep.subr.mxu0 0.0
    %541 = vmatpush1.msra.mxu0 %v50
    %542 = vmatprep.subr.mxu0 0.0
    %543 = vmatpush2.msra.mxu0 0.0
    %544 = vmatprep.subr.mxu0 0.0
    %545 = vmatpush2.msra.mxu0 0.0
    %546 = vmatprep.subr.mxu0 0.0
    %547 = vmatpush2.msra.mxu0 0.0
    %548 = vmatprep.subr.mxu0 0.0
    %549 = vmatpush2.msra.mxu0 0.0
    %550 = vmatprep.subr.mxu0 0.0
    %551 = vmatpush2.msra.mxu0 0.0
    %552 = vmatprep.subr.mxu0 0.0
    %553 = vmatpush2.msra.mxu0 0.0
    %554 = vmatprep.subr.mxu0 0.0
    %555 = vmatpush2.msra.mxu0 0.0
    %556 = vmatprep.subr.mxu0 0.0
    %557 = vmatpush2.msra.mxu0 0.0
    %558 = vmatprep.subr.mxu0 0.0
    %559 = vmatpush2.msra.mxu0 0.0
    %560 = vmatprep.subr.mxu0 0.0
    %561 = vmatpush2.msra.mxu0 0.0
    %562 = vmatprep.subr.mxu0 0.0
    %563 = vmatpush2.msra.mxu0 0.0
    %564 = vmatprep.subr.mxu0 0.0
    %565 = vmatpush2.msra.mxu0 0.0
    %566 = vmatprep.subr.mxu0 0.0
    %567 = vmatpush2.msra.mxu0 0.0
    %568 = vmatprep.subr.mxu0 0.0
    %569 = vmatpush2.msra.mxu0 0.0
    %570 = vmatprep.subr.mxu0 0.0
    %571 = vmatpush2.msra.mxu0 0.0
    %572 = vmatprep.subr.mxu0 0.0
    %573 = vmatpush2.msra.mxu0 0.0
    %574 = vmatprep.mubr.f32.mxu0 0.0
    %575 = vmatmul.mubr.f32.gmra.mxu0 %v88
    %v576 = vpop.f32.mrf.mxu0
    %v577 = vadd.f32 0.0, %v576
    %v578 = vpop.f32.mrf.mxu0
    %579 = vdwg.mxu0
    %580 = vmatprep.subr.mxu0 0.0
    %581 = vmatpush1.msra.mxu0 0.0
    %582 = vmatprep.subr.mxu0 0.0
    %583 = vmatpush1.msra.mxu0 0.0
    %584 = vmatprep.subr.mxu0 0.0
    %585 = vmatpush1.msra.mxu0 0.0
    %586 = vmatprep.subr.mxu0 0.0
    %587 = vmatpush1.msra.mxu0 0.0
    %588 = vmatprep.subr.mxu0 0.0
    %589 = vmatpush1.msra.mxu0 0.0
    %590 = vmatprep.subr.mxu0 0.0
    %591 = vmatpush1.msra.mxu0 0.0
    %592 = vmatprep.subr.mxu0 0.0
    %593 = vmatpush1.msra.mxu0 0.0
    %594 = vmatprep.subr.mxu0 0.0
    %595 = vmatpush1.msra.mxu0 0.0
    %596 = vmatprep.subr.mxu0 0.0
    %597 = vmatpush1.msra.mxu0 0.0
    %598 = vmatprep.subr.mxu0 0.0
    %599 = vmatpush1.msra.mxu0 0.0
    %600 = vmatprep.subr.mxu0 0.0
    %601 = vmatpush1.msra.mxu0 0.0
    %602 = vmatprep.subr.mxu0 0.0
    %603 = vmatpush1.msra.mxu0 0.0
    %604 = vmatprep.subr.mxu0 0.0
    %605 = vmatpush1.msra.mxu0 %v57
    %606 = vmatprep.subr.mxu0 0.0
    %607 = vmatpush1.msra.mxu0 %v56
    %608 = vmatprep.subr.mxu0 0.0
    %609 = vmatpush1.msra.mxu0 %v55
    %610 = vmatprep.subr.mxu0 0.0
    %611 = vmatpush1.msra.mxu0 %v54
    %612 = vmatprep.subr.mxu0 0.0
    %613 = vmatpush2.msra.mxu0 0.0
    %614 = vmatprep.subr.mxu0 0.0
    %615 = vmatpush2.msra.mxu0 0.0
    %616 = vmatprep.subr.mxu0 0.0
    %617 = vmatpush2.msra.mxu0 0.0
    %618 = vmatprep.subr.mxu0 0.0
    %619 = vmatpush2.msra.mxu0 0.0
    %620 = vmatprep.subr.mxu0 0.0
    %621 = vmatpush2.msra.mxu0 0.0
    %622 = vmatprep.subr.mxu0 0.0
    %623 = vmatpush2.msra.mxu0 0.0
    %624 = vmatprep.subr.mxu0 0.0
    %625 = vmatpush2.msra.mxu0 0.0
    %626 = vmatprep.subr.mxu0 0.0
    %627 = vmatpush2.msra.mxu0 0.0
    %628 = vmatprep.subr.mxu0 0.0
    %629 = vmatpush2.msra.mxu0 0.0
    %630 = vmatprep.subr.mxu0 0.0
    %631 = vmatpush2.msra.mxu0 0.0
    %632 = vmatprep.subr.mxu0 0.0
    %633 = vmatpush2.msra.mxu0 0.0
    %634 = vmatprep.subr.mxu0 0.0
    %635 = vmatpush2.msra.mxu0 0.0
    %636 = vmatprep.subr.mxu0 0.0
    %637 = vmatpush2.msra.mxu0 0.0
    %638 = vmatprep.subr.mxu0 0.0
    %639 = vmatpush2.msra.mxu0 0.0
    %640 = vmatprep.subr.mxu0 0.0
    %641 = vmatpush2.msra.mxu0 0.0
    %642 = vmatprep.subr.mxu0 0.0
    %643 = vmatpush2.msra.mxu0 0.0
    %644 = vmatprep.mubr.f32.mxu0 0.0
    %645 = vmatmul.mubr.f32.gmra.mxu0 %v88
    %v646 = vpop.f32.mrf.mxu0
    %v647 = vadd.f32 0.0, %v646
    %v648 = vpop.f32.mrf.mxu0
    %649 = vdwg.mxu0
    %650 = vmatprep.subr.mxu0 0.0
    %651 = vmatpush1.msra.mxu0 0.0
    %652 = vmatprep.subr.mxu0 0.0
    %653 = vmatpush1.msra.mxu0 0.0
    %654 = vmatprep.subr.mxu0 0.0
    %655 = vmatpush1.msra.mxu0 0.0
    %656 = vmatprep.subr.mxu0 0.0
    %657 = vmatpush1.msra.mxu0 0.0
    %658 = vmatprep.subr.mxu0 0.0
    %659 = vmatpush1.msra.mxu0 0.0
    %660 = vmatprep.subr.mxu0 0.0
    %661 = vmatpush1.msra.mxu0 0.0
    %662 = vmatprep.subr.mxu0 0.0
    %663 = vmatpush1.msra.mxu0 0.0
    %664 = vmatprep.subr.mxu0 0.0
    %665 = vmatpush1.msra.mxu0 0.0
    %666 = vmatprep.subr.mxu0 0.0
    %667 = vmatpush1.msra.mxu0 0.0
    %668 = vmatprep.subr.mxu0 0.0
    %669 = vmatpush1.msra.mxu0 0.0
    %670 = vmatprep.subr.mxu0 0.0
    %671 = vmatpush1.msra.mxu0 0.0
    %672 = vmatprep.subr.mxu0 0.0
    %673 = vmatpush1.msra.mxu0 0.0
    %674 = vmatprep.subr.mxu0 0.0
    %675 = vmatpush1.msra.mxu0 %v61
    %676 = vmatprep.subr.mxu0 0.0
    %677 = vmatpush1.msra.mxu0 %v60
    %678 = vmatprep.subr.mxu0 0.0
    %679 = vmatpush1.msra.mxu0 %v59
    %680 = vmatprep.subr.mxu0 0.0
    %681 = vmatpush1.msra.mxu0 %v58
    %682 = vmatprep.subr.mxu0 0.0
    %683 = vmatpush2.msra.mxu0 0.0
    %684 = vmatprep.subr.mxu0 0.0
    %685 = vmatpush2.msra.mxu0 0.0
    %686 = vmatprep.subr.mxu0 0.0
    %687 = vmatpush2.msra.mxu0 0.0
    %688 = vmatprep.subr.mxu0 0.0
    %689 = vmatpush2.msra.mxu0 0.0
    %690 = vmatprep.subr.mxu0 0.0
    %691 = vmatpush2.msra.mxu0 0.0
    %692 = vmatprep.subr.mxu0 0.0
    %693 = vmatpush2.msra.mxu0 0.0
    %694 = vmatprep.subr.mxu0 0.0
    %695 = vmatpush2.msra.mxu0 0.0
    %696 = vmatprep.subr.mxu0 0.0
    %697 = vmatpush2.msra.mxu0 0.0
    %698 = vmatprep.subr.mxu0 0.0
    %699 = vmatpush2.msra.mxu0 0.0
    %700 = vmatprep.subr.mxu0 0.0
    %701 = vmatpush2.msra.mxu0 0.0
    %702 = vmatprep.subr.mxu0 0.0
    %703 = vmatpush2.msra.mxu0 0.0
    %704 = vmatprep.subr.mxu0 0.0
    %705 = vmatpush2.msra.mxu0 0.0
    %706 = vmatprep.subr.mxu0 0.0
    %707 = vmatpush2.msra.mxu0 0.0
    %708 = vmatprep.subr.mxu0 0.0
    %709 = vmatpush2.msra.mxu0 0.0
    %710 = vmatprep.subr.mxu0 0.0
    %711 = vmatpush2.msra.mxu0 0.0
    %712 = vmatprep.subr.mxu0 0.0
    %713 = vmatpush2.msra.mxu0 0.0
    %714 = vmatprep.mubr.f32.mxu0 0.0
    %715 = vmatmul.mubr.f32.gmra.mxu0 %v88
    %v716 = vpop.f32.mrf.mxu0
    %v717 = vadd.f32 0.0, %v716
    %v718 = vpop.f32.mrf.mxu0
    %719 = vdwg.mxu0
    %720 = vmatprep.subr.mxu0 0.0
    %721 = vmatpush1.msra.mxu0 0.0
    %722 = vmatprep.subr.mxu0 0.0
    %723 = vmatpush1.msra.mxu0 0.0
    %724 = vmatprep.subr.mxu0 0.0
    %725 = vmatpush1.msra.mxu0 0.0
    %726 = vmatprep.subr.mxu0 0.0
    %727 = vmatpush1.msra.mxu0 0.0
    %728 = vmatprep.subr.mxu0 0.0
    %729 = vmatpush1.msra.mxu0 0.0
    %730 = vmatprep.subr.mxu0 0.0
    %731 = vmatpush1.msra.mxu0 0.0
    %732 = vmatprep.subr.mxu0 0.0
    %733 = vmatpush1.msra.mxu0 0.0
    %734 = vmatprep.subr.mxu0 0.0
    %735 = vmatpush1.msra.mxu0 0.0
    %736 = vmatprep.subr.mxu0 0.0
    %737 = vmatpush1.msra.mxu0 0.0
    %738 = vmatprep.subr.mxu0 0.0
    %739 = vmatpush1.msra.mxu0 0.0
    %740 = vmatprep.subr.mxu0 0.0
    %741 = vmatpush1.msra.mxu0 0.0
    %742 = vmatprep.subr.mxu0 0.0
    %743 = vmatpush1.msra.mxu0 0.0
    %744 = vmatprep.subr.mxu0 0.0
    %745 = vmatpush1.msra.mxu0 %v65
    %746 = vmatprep.subr.mxu0 0.0
    %747 = vmatpush1.msra.mxu0 %v64
    %748 = vmatprep.subr.mxu0 0.0
    %749 = vmatpush1.msra.mxu0 %v63
    %750 = vmatprep.subr.mxu0 0.0
    %751 = vmatpush1.msra.mxu0 %v62
    %752 = vmatprep.subr.mxu0 0.0
    %753 = vmatpush2.msra.mxu0 0.0
    %754 = vmatprep.subr.mxu0 0.0
    %755 = vmatpush2.msra.mxu0 0.0
    %756 = vmatprep.subr.mxu0 0.0
    %757 = vmatpush2.msra.mxu0 0.0
    %758 = vmatprep.subr.mxu0 0.0
    %759 = vmatpush2.msra.mxu0 0.0
    %760 = vmatprep.subr.mxu0 0.0
    %761 = vmatpush2.msra.mxu0 0.0
    %762 = vmatprep.subr.mxu0 0.0
    %763 = vmatpush2.msra.mxu0 0.0
    %764 = vmatprep.subr.mxu0 0.0
    %765 = vmatpush2.msra.mxu0 0.0
    %766 = vmatprep.subr.mxu0 0.0
    %767 = vmatpush2.msra.mxu0 0.0
    %768 = vmatprep.subr.mxu0 0.0
    %769 = vmatpush2.msra.mxu0 0.0
    %770 = vmatprep.subr.mxu0 0.0
    %771 = vmatpush2.msra.mxu0 0.0
    %772 = vmatprep.subr.mxu0 0.0
    %773 = vmatpush2.msra.mxu0 0.0
    %774 = vmatprep.subr.mxu0 0.0
    %775 = vmatpush2.msra.mxu0 0.0
    %776 = vmatprep.subr.mxu0 0.0
    %777 = vmatpush2.msra.mxu0 0.0
    %778 = vmatprep.subr.mxu0 0.0
    %779 = vmatpush2.msra.mxu0 0.0
    %780 = vmatprep.subr.mxu0 0.0
    %781 = vmatpush2.msra.mxu0 0.0
    %782 = vmatprep.subr.mxu0 0.0
    %783 = vmatpush2.msra.mxu0 0.0
    %784 = vmatprep.mubr.f32.mxu0 0.0
    %785 = vmatmul.mubr.f32.gmra.mxu0 %v88
    %v786 = vpop.f32.mrf.mxu0
    %v787 = vadd.f32 0.0, %v786
    %v788 = vpop.f32.mrf.mxu0
    %789 = vdwg.mxu0
    %790 = vmatprep.subr.mxu0 0.0
    %791 = vmatpush1.msra.mxu0 0.0
    %792 = vmatprep.subr.mxu0 0.0
    %793 = vmatpush1.msra.mxu0 0.0
    %794 = vmatprep.subr.mxu0 0.0
    %795 = vmatpush1.msra.mxu0 0.0
    %796 = vmatprep.subr.mxu0 0.0
    %797 = vmatpush1.msra.mxu0 0.0
    %798 = vmatprep.subr.mxu0 0.0
    %799 = vmatpush1.msra.mxu0 0.0
    %800 = vmatprep.subr.mxu0 0.0
    %801 = vmatpush1.msra.mxu0 0.0
    %802 = vmatprep.subr.mxu0 0.0
    %803 = vmatpush1.msra.mxu0 0.0
    %804 = vmatprep.subr.mxu0 0.0
    %805 = vmatpush1.msra.mxu0 0.0
    %806 = vmatprep.subr.mxu0 0.0
    %807 = vmatpush1.msra.mxu0 0.0
    %808 = vmatprep.subr.mxu0 0.0
    %809 = vmatpush1.msra.mxu0 0.0
    %810 = vmatprep.subr.mxu0 0.0
    %811 = vmatpush1.msra.mxu0 0.0
    %812 = vmatprep.subr.mxu0 0.0
    %813 = vmatpush1.msra.mxu0 0.0
    %814 = vmatprep.subr.mxu0 0.0
    %815 = vmatpush1.msra.mxu0 %v69
    %816 = vmatprep.subr.mxu0 0.0
    %817 = vmatpush1.msra.mxu0 %v68
    %818 = vmatprep.subr.mxu0 0.0
    %819 = vmatpush1.msra.mxu0 %v67
    %820 = vmatprep.subr.mxu0 0.0
    %821 = vmatpush1.msra.mxu0 %v66
    %822 = vmatprep.subr.mxu0 0.0
    %823 = vmatpush2.msra.mxu0 0.0
    %824 = vmatprep.subr.mxu0 0.0
    %825 = vmatpush2.msra.mxu0 0.0
    %826 = vmatprep.subr.mxu0 0.0
    %827 = vmatpush2.msra.mxu0 0.0
    %828 = vmatprep.subr.mxu0 0.0
    %829 = vmatpush2.msra.mxu0 0.0
    %830 = vmatprep.subr.mxu0 0.0
    %831 = vmatpush2.msra.mxu0 0.0
    %832 = vmatprep.subr.mxu0 0.0
    %833 = vmatpush2.msra.mxu0 0.0
    %834 = vmatprep.subr.mxu0 0.0
    %835 = vmatpush2.msra.mxu0 0.0
    %836 = vmatprep.subr.mxu0 0.0
    %837 = vmatpush2.msra.mxu0 0.0
    %838 = vmatprep.subr.mxu0 0.0
    %839 = vmatpush2.msra.mxu0 0.0
    %840 = vmatprep.subr.mxu0 0.0
    %841 = vmatpush2.msra.mxu0 0.0
    %842 = vmatprep.subr.mxu0 0.0
    %843 = vmatpush2.msra.mxu0 0.0
    %844 = vmatprep.subr.mxu0 0.0
    %845 = vmatpush2.msra.mxu0 0.0
    %846 = vmatprep.subr.mxu0 0.0
    %847 = vmatpush2.msra.mxu0 0.0
    %848 = vmatprep.subr.mxu0 0.0
    %849 = vmatpush2.msra.mxu0 0.0
    %850 = vmatprep.subr.mxu0 0.0
    %851 = vmatpush2.msra.mxu0 0.0
    %852 = vmatprep.subr.mxu0 0.0
    %853 = vmatpush2.msra.mxu0 0.0
    %854 = vmatprep.mubr.f32.mxu0 0.0
    %855 = vmatmul.mubr.f32.gmra.mxu0 %v88
    %v856 = vpop.f32.mrf.mxu0
    %v857 = vadd.f32 0.0, %v856
    %v858 = vpop.f32.mrf.mxu0
    %859 = vdwg.mxu0
    %860 = vmatprep.subr.mxu0 0.0
    %861 = vmatpush1.msra.mxu0 0.0
    %862 = vmatprep.subr.mxu0 0.0
    %863 = vmatpush1.msra.mxu0 0.0
    %864 = vmatprep.subr.mxu0 0.0
    %865 = vmatpush1.msra.mxu0 0.0
    %866 = vmatprep.subr.mxu0 0.0
    %867 = vmatpush1.msra.mxu0 0.0
    %868 = vmatprep.subr.mxu0 0.0
    %869 = vmatpush1.msra.mxu0 0.0
    %870 = vmatprep.subr.mxu0 0.0
    %871 = vmatpush1.msra.mxu0 0.0
    %872 = vmatprep.subr.mxu0 0.0
    %873 = vmatpush1.msra.mxu0 0.0
    %874 = vmatprep.subr.mxu0 0.0
    %875 = vmatpush1.msra.mxu0 0.0
    %876 = vmatprep.subr.mxu0 0.0
    %877 = vmatpush1.msra.mxu0 0.0
    %878 = vmatprep.subr.mxu0 0.0
    %879 = vmatpush1.msra.mxu0 0.0
    %880 = vmatprep.subr.mxu0 0.0
    %881 = vmatpush1.msra.mxu0 0.0
    %882 = vmatprep.subr.mxu0 0.0
    %883 = vmatpush1.msra.mxu0 0.0
    %884 = vmatprep.subr.mxu0 0.0
    %885 = vmatpush1.msra.mxu0 %v73
    %886 = vmatprep.subr.mxu0 0.0
    %887 = vmatpush1.msra.mxu0 %v72
    %888 = vmatprep.subr.mxu0 0.0
    %889 = vmatpush1.msra.mxu0 %v71
    %890 = vmatprep.subr.mxu0 0.0
    %891 = vmatpush1.msra.mxu0 %v70
    %892 = vmatprep.subr.mxu0 0.0
    %893 = vmatpush2.msra.mxu0 0.0
    %894 = vmatprep.subr.mxu0 0.0
    %895 = vmatpush2.msra.mxu0 0.0
    %896 = vmatprep.subr.mxu0 0.0
    %897 = vmatpush2.msra.mxu0 0.0
    %898 = vmatprep.subr.mxu0 0.0
    %899 = vmatpush2.msra.mxu0 0.0
    %900 = vmatprep.subr.mxu0 0.0
    %901 = vmatpush2.msra.mxu0 0.0
    %902 = vmatprep.subr.mxu0 0.0
    %903 = vmatpush2.msra.mxu0 0.0
    %904 = vmatprep.subr.mxu0 0.0
    %905 = vmatpush2.msra.mxu0 0.0
    %906 = vmatprep.subr.mxu0 0.0
    %907 = vmatpush2.msra.mxu0 0.0
    %908 = vmatprep.subr.mxu0 0.0
    %909 = vmatpush2.msra.mxu0 0.0
    %910 = vmatprep.subr.mxu0 0.0
    %911 = vmatpush2.msra.mxu0 0.0
    %912 = vmatprep.subr.mxu0 0.0
    %913 = vmatpush2.msra.mxu0 0.0
    %914 = vmatprep.subr.mxu0 0.0
    %915 = vmatpush2.msra.mxu0 0.0
    %916 = vmatprep.subr.mxu0 0.0
    %917 = vmatpush2.msra.mxu0 0.0
    %918 = vmatprep.subr.mxu0 0.0
    %919 = vmatpush2.msra.mxu0 0.0
    %920 = vmatprep.subr.mxu0 0.0
    %921 = vmatpush2.msra.mxu0 0.0
    %922 = vmatprep.subr.mxu0 0.0
    %923 = vmatpush2.msra.mxu0 0.0
    %924 = vmatprep.mubr.f32.mxu0 0.0
    %925 = vmatmul.mubr.f32.gmra.mxu0 %v88
    %v926 = vpop.f32.mrf.mxu0
    %v927 = vadd.f32 0.0, %v926
    %v928 = vpop.f32.mrf.mxu0
    %929 = vdwg.mxu0
    %v931 = vsel %vm86, %v25, 0
    %933 = vmatprep.subr.mxu0 0.0
    %934 = vmatpush1.msra.mxu0 0.0
    %935 = vmatprep.subr.mxu0 0.0
    %936 = vmatpush1.msra.mxu0 0.0
    %937 = vmatprep.subr.mxu0 0.0
    %938 = vmatpush1.msra.mxu0 0.0
    %939 = vmatprep.subr.mxu0 0.0
    %940 = vmatpush1.msra.mxu0 0.0
    %941 = vmatprep.subr.mxu0 0.0
    %942 = vmatpush1.msra.mxu0 0.0
    %943 = vmatprep.subr.mxu0 0.0
    %944 = vmatpush1.msra.mxu0 0.0
    %945 = vmatprep.subr.mxu0 0.0
    %946 = vmatpush1.msra.mxu0 0.0
    %947 = vmatprep.subr.mxu0 0.0
    %948 = vmatpush1.msra.mxu0 0.0
    %949 = vmatprep.subr.mxu0 0.0
    %950 = vmatpush1.msra.mxu0 0.0
    %951 = vmatprep.subr.mxu0 0.0
    %952 = vmatpush1.msra.mxu0 0.0
    %953 = vmatprep.subr.mxu0 0.0
    %954 = vmatpush1.msra.mxu0 0.0
    %955 = vmatprep.subr.mxu0 0.0
    %956 = vmatpush1.msra.mxu0 0.0
    %957 = vmatprep.subr.mxu0 0.0
    %958 = vmatpush1.msra.mxu0 %v29
    %959 = vmatprep.subr.mxu0 0.0
    %960 = vmatpush1.msra.mxu0 %v28
    %961 = vmatprep.subr.mxu0 0.0
    %962 = vmatpush1.msra.mxu0 %v27
    %963 = vmatprep.subr.mxu0 0.0
    %964 = vmatpush1.msra.mxu0 %v26
    %965 = vmatprep.subr.mxu0 0.0
    %966 = vmatpush2.msra.mxu0 0.0
    %967 = vmatprep.subr.mxu0 0.0
    %968 = vmatpush2.msra.mxu0 0.0
    %969 = vmatprep.subr.mxu0 0.0
    %970 = vmatpush2.msra.mxu0 0.0
    %971 = vmatprep.subr.mxu0 0.0
    %972 = vmatpush2.msra.mxu0 0.0
    %973 = vmatprep.subr.mxu0 0.0
    %974 = vmatpush2.msra.mxu0 0.0
    %975 = vmatprep.subr.mxu0 0.0
    %976 = vmatpush2.msra.mxu0 0.0
    %977 = vmatprep.subr.mxu0 0.0
    %978 = vmatpush2.msra.mxu0 0.0
    %979 = vmatprep.subr.mxu0 0.0
    %980 = vmatpush2.msra.mxu0 0.0
    %981 = vmatprep.subr.mxu0 0.0
    %982 = vmatpush2.msra.mxu0 0.0
    %983 = vmatprep.subr.mxu0 0.0
    %984 = vmatpush2.msra.mxu0 0.0
    %985 = vmatprep.subr.mxu0 0.0
    %986 = vmatpush2.msra.mxu0 0.0
    %987 = vmatprep.subr.mxu0 0.0
    %988 = vmatpush2.msra.mxu0 0.0
    %989 = vmatprep.subr.mxu0 0.0
    %990 = vmatpush2.msra.mxu0 0.0
    %991 = vmatprep.subr.mxu0 0.0
    %992 = vmatpush2.msra.mxu0 0.0
    %993 = vmatprep.subr.mxu0 0.0
    %994 = vmatpush2.msra.mxu0 0.0
    %995 = vmatprep.subr.mxu0 0.0
    %996 = vmatpush2.msra.mxu0 0.0
    %997 = vmatprep.mubr.f32.mxu0 0.0
    %998 = vmatmul.mubr.f32.gmra.mxu0 %v931
    %v999 = vpop.f32.mrf.mxu0
    %v1000 = vadd.f32 0.0, %v999
    %v1001 = vpop.f32.mrf.mxu0
    %1002 = vdwg.mxu0
    %1003 = vmatprep.subr.mxu0 0.0
    %1004 = vmatpush1.msra.mxu0 0.0
    %1005 = vmatprep.subr.mxu0 0.0
    %1006 = vmatpush1.msra.mxu0 0.0
    %1007 = vmatprep.subr.mxu0 0.0
    %1008 = vmatpush1.msra.mxu0 0.0
    %1009 = vmatprep.subr.mxu0 0.0
    %1010 = vmatpush1.msra.mxu0 0.0
    %1011 = vmatprep.subr.mxu0 0.0
    %1012 = vmatpush1.msra.mxu0 0.0
    %1013 = vmatprep.subr.mxu0 0.0
    %1014 = vmatpush1.msra.mxu0 0.0
    %1015 = vmatprep.subr.mxu0 0.0
    %1016 = vmatpush1.msra.mxu0 0.0
    %1017 = vmatprep.subr.mxu0 0.0
    %1018 = vmatpush1.msra.mxu0 0.0
    %1019 = vmatprep.subr.mxu0 0.0
    %1020 = vmatpush1.msra.mxu0 0.0
    %1021 = vmatprep.subr.mxu0 0.0
    %1022 = vmatpush1.msra.mxu0 0.0
    %1023 = vmatprep.subr.mxu0 0.0
    %1024 = vmatpush1.msra.mxu0 0.0
    %1025 = vmatprep.subr.mxu0 0.0
    %1026 = vmatpush1.msra.mxu0 0.0
    %1027 = vmatprep.subr.mxu0 0.0
    %1028 = vmatpush1.msra.mxu0 %v33
    %1029 = vmatprep.subr.mxu0 0.0
    %1030 = vmatpush1.msra.mxu0 %v32
    %1031 = vmatprep.subr.mxu0 0.0
    %1032 = vmatpush1.msra.mxu0 %v31
    %1033 = vmatprep.subr.mxu0 0.0
    %1034 = vmatpush1.msra.mxu0 %v30
    %1035 = vmatprep.subr.mxu0 0.0
    %1036 = vmatpush2.msra.mxu0 0.0
    %1037 = vmatprep.subr.mxu0 0.0
    %1038 = vmatpush2.msra.mxu0 0.0
    %1039 = vmatprep.subr.mxu0 0.0
    %1040 = vmatpush2.msra.mxu0 0.0
    %1041 = vmatprep.subr.mxu0 0.0
    %1042 = vmatpush2.msra.mxu0 0.0
    %1043 = vmatprep.subr.mxu0 0.0
    %1044 = vmatpush2.msra.mxu0 0.0
    %1045 = vmatprep.subr.mxu0 0.0
    %1046 = vmatpush2.msra.mxu0 0.0
    %1047 = vmatprep.subr.mxu0 0.0
    %1048 = vmatpush2.msra.mxu0 0.0
    %1049 = vmatprep.subr.mxu0 0.0
    %1050 = vmatpush2.msra.mxu0 0.0
    %1051 = vmatprep.subr.mxu0 0.0
    %1052 = vmatpush2.msra.mxu0 0.0
    %1053 = vmatprep.subr.mxu0 0.0
    %1054 = vmatpush2.msra.mxu0 0.0
    %1055 = vmatprep.subr.mxu0 0.0
    %1056 = vmatpush2.msra.mxu0 0.0
    %1057 = vmatprep.subr.mxu0 0.0
    %1058 = vmatpush2.msra.mxu0 0.0
    %1059 = vmatprep.subr.mxu0 0.0
    %1060 = vmatpush2.msra.mxu0 0.0
    %1061 = vmatprep.subr.mxu0 0.0
    %1062 = vmatpush2.msra.mxu0 0.0
    %1063 = vmatprep.subr.mxu0 0.0
    %1064 = vmatpush2.msra.mxu0 0.0
    %1065 = vmatprep.subr.mxu0 0.0
    %1066 = vmatpush2.msra.mxu0 0.0
    %1067 = vmatprep.mubr.f32.mxu0 0.0
    %1068 = vmatmul.mubr.f32.gmra.mxu0 %v931
    %v1069 = vpop.f32.mrf.mxu0
    %v1070 = vadd.f32 0.0, %v1069
    %v1071 = vpop.f32.mrf.mxu0
    %1072 = vdwg.mxu0
    %1073 = vmatprep.subr.mxu0 0.0
    %1074 = vmatpush1.msra.mxu0 0.0
    %1075 = vmatprep.subr.mxu0 0.0
    %1076 = vmatpush1.msra.mxu0 0.0
    %1077 = vmatprep.subr.mxu0 0.0
    %1078 = vmatpush1.msra.mxu0 0.0
    %1079 = vmatprep.subr.mxu0 0.0
    %1080 = vmatpush1.msra.mxu0 0.0
    %1081 = vmatprep.subr.mxu0 0.0
    %1082 = vmatpush1.msra.mxu0 0.0
    %1083 = vmatprep.subr.mxu0 0.0
    %1084 = vmatpush1.msra.mxu0 0.0
    %1085 = vmatprep.subr.mxu0 0.0
    %1086 = vmatpush1.msra.mxu0 0.0
    %1087 = vmatprep.subr.mxu0 0.0
    %1088 = vmatpush1.msra.mxu0 0.0
    %1089 = vmatprep.subr.mxu0 0.0
    %1090 = vmatpush1.msra.mxu0 0.0
    %1091 = vmatprep.subr.mxu0 0.0
    %1092 = vmatpush1.msra.mxu0 0.0
    %1093 = vmatprep.subr.mxu0 0.0
    %1094 = vmatpush1.msra.mxu0 0.0
    %1095 = vmatprep.subr.mxu0 0.0
    %1096 = vmatpush1.msra.mxu0 0.0
    %1097 = vmatprep.subr.mxu0 0.0
    %1098 = vmatpush1.msra.mxu0 %v37
    %1099 = vmatprep.subr.mxu0 0.0
    %1100 = vmatpush1.msra.mxu0 %v36
    %1101 = vmatprep.subr.mxu0 0.0
    %1102 = vmatpush1.msra.mxu0 %v35
    %1103 = vmatprep.subr.mxu0 0.0
    %1104 = vmatpush1.msra.mxu0 %v34
    %1105 = vmatprep.subr.mxu0 0.0
    %1106 = vmatpush2.msra.mxu0 0.0
    %1107 = vmatprep.subr.mxu0 0.0
    %1108 = vmatpush2.msra.mxu0 0.0
    %1109 = vmatprep.subr.mxu0 0.0
    %1110 = vmatpush2.msra.mxu0 0.0
    %1111 = vmatprep.subr.mxu0 0.0
    %1112 = vmatpush2.msra.mxu0 0.0
    %1113 = vmatprep.subr.mxu0 0.0
    %1114 = vmatpush2.msra.mxu0 0.0
    %1115 = vmatprep.subr.mxu0 0.0
    %1116 = vmatpush2.msra.mxu0 0.0
    %1117 = vmatprep.subr.mxu0 0.0
    %1118 = vmatpush2.msra.mxu0 0.0
    %1119 = vmatprep.subr.mxu0 0.0
    %1120 = vmatpush2.msra.mxu0 0.0
    %1121 = vmatprep.subr.mxu0 0.0
    %1122 = vmatpush2.msra.mxu0 0.0
    %1123 = vmatprep.subr.mxu0 0.0
    %1124 = vmatpush2.msra.mxu0 0.0
    %1125 = vmatprep.subr.mxu0 0.0
    %1126 = vmatpush2.msra.mxu0 0.0
    %1127 = vmatprep.subr.mxu0 0.0
    %1128 = vmatpush2.msra.mxu0 0.0
    %1129 = vmatprep.subr.mxu0 0.0
    %1130 = vmatpush2.msra.mxu0 0.0
    %1131 = vmatprep.subr.mxu0 0.0
    %1132 = vmatpush2.msra.mxu0 0.0
    %1133 = vmatprep.subr.mxu0 0.0
    %1134 = vmatpush2.msra.mxu0 0.0
    %1135 = vmatprep.subr.mxu0 0.0
    %1136 = vmatpush2.msra.mxu0 0.0
    %1137 = vmatprep.mubr.f32.mxu0 0.0
    %1138 = vmatmul.mubr.f32.gmra.mxu0 %v931
    %v1139 = vpop.f32.mrf.mxu0
    %v1140 = vadd.f32 0.0, %v1139
    %v1141 = vpop.f32.mrf.mxu0
    %1142 = vdwg.mxu0
    %1143 = vmatprep.subr.mxu0 0.0
    %1144 = vmatpush1.msra.mxu0 0.0
    %1145 = vmatprep.subr.mxu0 0.0
    %1146 = vmatpush1.msra.mxu0 0.0
    %1147 = vmatprep.subr.mxu0 0.0
    %1148 = vmatpush1.msra.mxu0 0.0
    %1149 = vmatprep.subr.mxu0 0.0
    %1150 = vmatpush1.msra.mxu0 0.0
    %1151 = vmatprep.subr.mxu0 0.0
    %1152 = vmatpush1.msra.mxu0 0.0
    %1153 = vmatprep.subr.mxu0 0.0
    %1154 = vmatpush1.msra.mxu0 0.0
    %1155 = vmatprep.subr.mxu0 0.0
    %1156 = vmatpush1.msra.mxu0 0.0
    %1157 = vmatprep.subr.mxu0 0.0
    %1158 = vmatpush1.msra.mxu0 0.0
    %1159 = vmatprep.subr.mxu0 0.0
    %1160 = vmatpush1.msra.mxu0 0.0
    %1161 = vmatprep.subr.mxu0 0.0
    %1162 = vmatpush1.msra.mxu0 0.0
    %1163 = vmatprep.subr.mxu0 0.0
    %1164 = vmatpush1.msra.mxu0 0.0
    %1165 = vmatprep.subr.mxu0 0.0
    %1166 = vmatpush1.msra.mxu0 0.0
    %1167 = vmatprep.subr.mxu0 0.0
    %1168 = vmatpush1.msra.mxu0 %v41
    %1169 = vmatprep.subr.mxu0 0.0
    %1170 = vmatpush1.msra.mxu0 %v40
    %1171 = vmatprep.subr.mxu0 0.0
    %1172 = vmatpush1.msra.mxu0 %v39
    %1173 = vmatprep.subr.mxu0 0.0
    %1174 = vmatpush1.msra.mxu0 %v38
    %1175 = vmatprep.subr.mxu0 0.0
    %1176 = vmatpush2.msra.mxu0 0.0
    %1177 = vmatprep.subr.mxu0 0.0
    %1178 = vmatpush2.msra.mxu0 0.0
    %1179 = vmatprep.subr.mxu0 0.0
    %1180 = vmatpush2.msra.mxu0 0.0
    %1181 = vmatprep.subr.mxu0 0.0
    %1182 = vmatpush2.msra.mxu0 0.0
    %1183 = vmatprep.subr.mxu0 0.0
    %1184 = vmatpush2.msra.mxu0 0.0
    %1185 = vmatprep.subr.mxu0 0.0
    %1186 = vmatpush2.msra.mxu0 0.0
    %1187 = vmatprep.subr.mxu0 0.0
    %1188 = vmatpush2.msra.mxu0 0.0
    %1189 = vmatprep.subr.mxu0 0.0
    %1190 = vmatpush2.msra.mxu0 0.0
    %1191 = vmatprep.subr.mxu0 0.0
    %1192 = vmatpush2.msra.mxu0 0.0
    %1193 = vmatprep.subr.mxu0 0.0
    %1194 = vmatpush2.msra.mxu0 0.0
    %1195 = vmatprep.subr.mxu0 0.0
    %1196 = vmatpush2.msra.mxu0 0.0
    %1197 = vmatprep.subr.mxu0 0.0
    %1198 = vmatpush2.msra.mxu0 0.0
    %1199 = vmatprep.subr.mxu0 0.0
    %1200 = vmatpush2.msra.mxu0 0.0
    %1201 = vmatprep.subr.mxu0 0.0
    %1202 = vmatpush2.msra.mxu0 0.0
    %1203 = vmatprep.subr.mxu0 0.0
    %1204 = vmatpush2.msra.mxu0 0.0
    %1205 = vmatprep.subr.mxu0 0.0
    %1206 = vmatpush2.msra.mxu0 0.0
    %1207 = vmatprep.mubr.f32.mxu0 0.0
    %1208 = vmatmul.mubr.f32.gmra.mxu0 %v931
    %v1209 = vpop.f32.mrf.mxu0
    %v1210 = vadd.f32 0.0, %v1209
    %v1211 = vpop.f32.mrf.mxu0
    %1212 = vdwg.mxu0
    %1213 = vmatprep.subr.mxu0 0.0
    %1214 = vmatpush1.msra.mxu0 0.0
    %1215 = vmatprep.subr.mxu0 0.0
    %1216 = vmatpush1.msra.mxu0 0.0
    %1217 = vmatprep.subr.mxu0 0.0
    %1218 = vmatpush1.msra.mxu0 0.0
    %1219 = vmatprep.subr.mxu0 0.0
    %1220 = vmatpush1.msra.mxu0 0.0
    %1221 = vmatprep.subr.mxu0 0.0
    %1222 = vmatpush1.msra.mxu0 0.0
    %1223 = vmatprep.subr.mxu0 0.0
    %1224 = vmatpush1.msra.mxu0 0.0
    %1225 = vmatprep.subr.mxu0 0.0
    %1226 = vmatpush1.msra.mxu0 0.0
    %1227 = vmatprep.subr.mxu0 0.0
    %1228 = vmatpush1.msra.mxu0 0.0
    %1229 = vmatprep.subr.mxu0 0.0
    %1230 = vmatpush1.msra.mxu0 0.0
    %1231 = vmatprep.subr.mxu0 0.0
    %1232 = vmatpush1.msra.mxu0 0.0
    %1233 = vmatprep.subr.mxu0 0.0
    %1234 = vmatpush1.msra.mxu0 0.0
    %1235 = vmatprep.subr.mxu0 0.0
    %1236 = vmatpush1.msra.mxu0 0.0
    %1237 = vmatprep.subr.mxu0 0.0
    %1238 = vmatpush1.msra.mxu0 %v45
    %1239 = vmatprep.subr.mxu0 0.0
    %1240 = vmatpush1.msra.mxu0 %v44
    %1241 = vmatprep.subr.mxu0 0.0
    %1242 = vmatpush1.msra.mxu0 %v43
    %1243 = vmatprep.subr.mxu0 0.0
    %1244 = vmatpush1.msra.mxu0 %v42
    %1245 = vmatprep.subr.mxu0 0.0
    %1246 = vmatpush2.msra.mxu0 0.0
    %1247 = vmatprep.subr.mxu0 0.0
    %1248 = vmatpush2.msra.mxu0 0.0
    %1249 = vmatprep.subr.mxu0 0.0
    %1250 = vmatpush2.msra.mxu0 0.0
    %1251 = vmatprep.subr.mxu0 0.0
    %1252 = vmatpush2.msra.mxu0 0.0
    %1253 = vmatprep.subr.mxu0 0.0
    %1254 = vmatpush2.msra.mxu0 0.0
    %1255 = vmatprep.subr.mxu0 0.0
    %1256 = vmatpush2.msra.mxu0 0.0
    %1257 = vmatprep.subr.mxu0 0.0
    %1258 = vmatpush2.msra.mxu0 0.0
    %1259 = vmatprep.subr.mxu0 0.0
    %1260 = vmatpush2.msra.mxu0 0.0
    %1261 = vmatprep.subr.mxu0 0.0
    %1262 = vmatpush2.msra.mxu0 0.0
    %1263 = vmatprep.subr.mxu0 0.0
    %1264 = vmatpush2.msra.mxu0 0.0
    %1265 = vmatprep.subr.mxu0 0.0
    %1266 = vmatpush2.msra.mxu0 0.0
    %1267 = vmatprep.subr.mxu0 0.0
    %1268 = vmatpush2.msra.mxu0 0.0
    %1269 = vmatprep.subr.mxu0 0.0
    %1270 = vmatpush2.msra.mxu0 0.0
    %1271 = vmatprep.subr.mxu0 0.0
    %1272 = vmatpush2.msra.mxu0 0.0
    %1273 = vmatprep.subr.mxu0 0.0
    %1274 = vmatpush2.msra.mxu0 0.0
    %1275 = vmatprep.subr.mxu0 0.0
    %1276 = vmatpush2.msra.mxu0 0.0
    %1277 = vmatprep.mubr.f32.mxu0 0.0
    %1278 = vmatmul.mubr.f32.gmra.mxu0 %v931
    %v1279 = vpop.f32.mrf.mxu0
    %v1280 = vadd.f32 0.0, %v1279
    %v1281 = vpop.f32.mrf.mxu0
    %1282 = vdwg.mxu0
    %1283 = vmatprep.subr.mxu0 0.0
    %1284 = vmatpush1.msra.mxu0 0.0
    %1285 = vmatprep.subr.mxu0 0.0
    %1286 = vmatpush1.msra.mxu0 0.0
    %1287 = vmatprep.subr.mxu0 0.0
    %1288 = vmatpush1.msra.mxu0 0.0
    %1289 = vmatprep.subr.mxu0 0.0
    %1290 = vmatpush1.msra.mxu0 0.0
    %1291 = vmatprep.subr.mxu0 0.0
    %1292 = vmatpush1.msra.mxu0 0.0
    %1293 = vmatprep.subr.mxu0 0.0
    %1294 = vmatpush1.msra.mxu0 0.0
    %1295 = vmatprep.subr.mxu0 0.0
    %1296 = vmatpush1.msra.mxu0 0.0
    %1297 = vmatprep.subr.mxu0 0.0
    %1298 = vmatpush1.msra.mxu0 0.0
    %1299 = vmatprep.subr.mxu0 0.0
    %1300 = vmatpush1.msra.mxu0 0.0
    %1301 = vmatprep.subr.mxu0 0.0
    %1302 = vmatpush1.msra.mxu0 0.0
    %1303 = vmatprep.subr.mxu0 0.0
    %1304 = vmatpush1.msra.mxu0 0.0
    %1305 = vmatprep.subr.mxu0 0.0
    %1306 = vmatpush1.msra.mxu0 0.0
    %1307 = vmatprep.subr.mxu0 0.0
    %1308 = vmatpush1.msra.mxu0 %v49
    %1309 = vmatprep.subr.mxu0 0.0
    %1310 = vmatpush1.msra.mxu0 %v48
    %1311 = vmatprep.subr.mxu0 0.0
    %1312 = vmatpush1.msra.mxu0 %v47
    %1313 = vmatprep.subr.mxu0 0.0
    %1314 = vmatpush1.msra.mxu0 %v46
    %1315 = vmatprep.subr.mxu0 0.0
    %1316 = vmatpush2.msra.mxu0 0.0
    %1317 = vmatprep.subr.mxu0 0.0
    %1318 = vmatpush2.msra.mxu0 0.0
    %1319 = vmatprep.subr.mxu0 0.0
    %1320 = vmatpush2.msra.mxu0 0.0
    %1321 = vmatprep.subr.mxu0 0.0
    %1322 = vmatpush2.msra.mxu0 0.0
    %1323 = vmatprep.subr.mxu0 0.0
    %1324 = vmatpush2.msra.mxu0 0.0
    %1325 = vmatprep.subr.mxu0 0.0
    %1326 = vmatpush2.msra.mxu0 0.0
    %1327 = vmatprep.subr.mxu0 0.0
    %1328 = vmatpush2.msra.mxu0 0.0
    %1329 = vmatprep.subr.mxu0 0.0
    %1330 = vmatpush2.msra.mxu0 0.0
    %1331 = vmatprep.subr.mxu0 0.0
    %1332 = vmatpush2.msra.mxu0 0.0
    %1333 = vmatprep.subr.mxu0 0.0
    %1334 = vmatpush2.msra.mxu0 0.0
    %1335 = vmatprep.subr.mxu0 0.0
    %1336 = vmatpush2.msra.mxu0 0.0
    %1337 = vmatprep.subr.mxu0 0.0
    %1338 = vmatpush2.msra.mxu0 0.0
    %1339 = vmatprep.subr.mxu0 0.0
    %1340 = vmatpush2.msra.mxu0 0.0
    %1341 = vmatprep.subr.mxu0 0.0
    %1342 = vmatpush2.msra.mxu0 0.0
    %1343 = vmatprep.subr.mxu0 0.0
    %1344 = vmatpush2.msra.mxu0 0.0
    %1345 = vmatprep.subr.mxu0 0.0
    %1346 = vmatpush2.msra.mxu0 0.0
    %1347 = vmatprep.mubr.f32.mxu0 0.0
    %1348 = vmatmul.mubr.f32.gmra.mxu0 %v931
    %v1349 = vpop.f32.mrf.mxu0
    %v1350 = vadd.f32 0.0, %v1349
    %v1351 = vpop.f32.mrf.mxu0
    %1352 = vdwg.mxu0
    %1353 = vmatprep.subr.mxu0 0.0
    %1354 = vmatpush1.msra.mxu0 0.0
    %1355 = vmatprep.subr.mxu0 0.0
    %1356 = vmatpush1.msra.mxu0 0.0
    %1357 = vmatprep.subr.mxu0 0.0
    %1358 = vmatpush1.msra.mxu0 0.0
    %1359 = vmatprep.subr.mxu0 0.0
    %1360 = vmatpush1.msra.mxu0 0.0
    %1361 = vmatprep.subr.mxu0 0.0
    %1362 = vmatpush1.msra.mxu0 0.0
    %1363 = vmatprep.subr.mxu0 0.0
    %1364 = vmatpush1.msra.mxu0 0.0
    %1365 = vmatprep.subr.mxu0 0.0
    %1366 = vmatpush1.msra.mxu0 0.0
    %1367 = vmatprep.subr.mxu0 0.0
    %1368 = vmatpush1.msra.mxu0 0.0
    %1369 = vmatprep.subr.mxu0 0.0
    %1370 = vmatpush1.msra.mxu0 0.0
    %1371 = vmatprep.subr.mxu0 0.0
    %1372 = vmatpush1.msra.mxu0 0.0
    %1373 = vmatprep.subr.mxu0 0.0
    %1374 = vmatpush1.msra.mxu0 0.0
    %1375 = vmatprep.subr.mxu0 0.0
    %1376 = vmatpush1.msra.mxu0 0.0
    %1377 = vmatprep.subr.mxu0 0.0
    %1378 = vmatpush1.msra.mxu0 %v53
    %1379 = vmatprep.subr.mxu0 0.0
    %1380 = vmatpush1.msra.mxu0 %v52
    %1381 = vmatprep.subr.mxu0 0.0
    %1382 = vmatpush1.msra.mxu0 %v51
    %1383 = vmatprep.subr.mxu0 0.0
    %1384 = vmatpush1.msra.mxu0 %v50
    %1385 = vmatprep.subr.mxu0 0.0
    %1386 = vmatpush2.msra.mxu0 0.0
    %1387 = vmatprep.subr.mxu0 0.0
    %1388 = vmatpush2.msra.mxu0 0.0
    %1389 = vmatprep.subr.mxu0 0.0
    %1390 = vmatpush2.msra.mxu0 0.0
    %1391 = vmatprep.subr.mxu0 0.0
    %1392 = vmatpush2.msra.mxu0 0.0
    %1393 = vmatprep.subr.mxu0 0.0
    %1394 = vmatpush2.msra.mxu0 0.0
    %1395 = vmatprep.subr.mxu0 0.0
    %1396 = vmatpush2.msra.mxu0 0.0
    %1397 = vmatprep.subr.mxu0 0.0
    %1398 = vmatpush2.msra.mxu0 0.0
    %1399 = vmatprep.subr.mxu0 0.0
    %1400 = vmatpush2.msra.mxu0 0.0
    %1401 = vmatprep.subr.mxu0 0.0
    %1402 = vmatpush2.msra.mxu0 0.0
    %1403 = vmatprep.subr.mxu0 0.0
    %1404 = vmatpush2.msra.mxu0 0.0
    %1405 = vmatprep.subr.mxu0 0.0
    %1406 = vmatpush2.msra.mxu0 0.0
    %1407 = vmatprep.subr.mxu0 0.0
    %1408 = vmatpush2.msra.mxu0 0.0
    %1409 = vmatprep.subr.mxu0 0.0
    %1410 = vmatpush2.msra.mxu0 0.0
    %1411 = vmatprep.subr.mxu0 0.0
    %1412 = vmatpush2.msra.mxu0 0.0
    %1413 = vmatprep.subr.mxu0 0.0
    %1414 = vmatpush2.msra.mxu0 0.0
    %1415 = vmatprep.subr.mxu0 0.0
    %1416 = vmatpush2.msra.mxu0 0.0
    %1417 = vmatprep.mubr.f32.mxu0 0.0
    %1418 = vmatmul.mubr.f32.gmra.mxu0 %v931
    %v1419 = vpop.f32.mrf.mxu0
    %v1420 = vadd.f32 0.0, %v1419
    %v1421 = vpop.f32.mrf.mxu0
    %1422 = vdwg.mxu0
    %1423 = vmatprep.subr.mxu0 0.0
    %1424 = vmatpush1.msra.mxu0 0.0
    %1425 = vmatprep.subr.mxu0 0.0
    %1426 = vmatpush1.msra.mxu0 0.0
    %1427 = vmatprep.subr.mxu0 0.0
    %1428 = vmatpush1.msra.mxu0 0.0
    %1429 = vmatprep.subr.mxu0 0.0
    %1430 = vmatpush1.msra.mxu0 0.0
    %1431 = vmatprep.subr.mxu0 0.0
    %1432 = vmatpush1.msra.mxu0 0.0
    %1433 = vmatprep.subr.mxu0 0.0
    %1434 = vmatpush1.msra.mxu0 0.0
    %1435 = vmatprep.subr.mxu0 0.0
    %1436 = vmatpush1.msra.mxu0 0.0
    %1437 = vmatprep.subr.mxu0 0.0
    %1438 = vmatpush1.msra.mxu0 0.0
    %1439 = vmatprep.subr.mxu0 0.0
    %1440 = vmatpush1.msra.mxu0 0.0
    %1441 = vmatprep.subr.mxu0 0.0
    %1442 = vmatpush1.msra.mxu0 0.0
    %1443 = vmatprep.subr.mxu0 0.0
    %1444 = vmatpush1.msra.mxu0 0.0
    %1445 = vmatprep.subr.mxu0 0.0
    %1446 = vmatpush1.msra.mxu0 0.0
    %1447 = vmatprep.subr.mxu0 0.0
    %1448 = vmatpush1.msra.mxu0 %v57
    %1449 = vmatprep.subr.mxu0 0.0
    %1450 = vmatpush1.msra.mxu0 %v56
    %1451 = vmatprep.subr.mxu0 0.0
    %1452 = vmatpush1.msra.mxu0 %v55
    %1453 = vmatprep.subr.mxu0 0.0
    %1454 = vmatpush1.msra.mxu0 %v54
    %1455 = vmatprep.subr.mxu0 0.0
    %1456 = vmatpush2.msra.mxu0 0.0
    %1457 = vmatprep.subr.mxu0 0.0
    %1458 = vmatpush2.msra.mxu0 0.0
    %1459 = vmatprep.subr.mxu0 0.0
    %1460 = vmatpush2.msra.mxu0 0.0
    %1461 = vmatprep.subr.mxu0 0.0
    %1462 = vmatpush2.msra.mxu0 0.0
    %1463 = vmatprep.subr.mxu0 0.0
    %1464 = vmatpush2.msra.mxu0 0.0
    %1465 = vmatprep.subr.mxu0 0.0
    %1466 = vmatpush2.msra.mxu0 0.0
    %1467 = vmatprep.subr.mxu0 0.0
    %1468 = vmatpush2.msra.mxu0 0.0
    %1469 = vmatprep.subr.mxu0 0.0
    %1470 = vmatpush2.msra.mxu0 0.0
    %1471 = vmatprep.subr.mxu0 0.0
    %1472 = vmatpush2.msra.mxu0 0.0
    %1473 = vmatprep.subr.mxu0 0.0
    %1474 = vmatpush2.msra.mxu0 0.0
    %1475 = vmatprep.subr.mxu0 0.0
    %1476 = vmatpush2.msra.mxu0 0.0
    %1477 = vmatprep.subr.mxu0 0.0
    %1478 = vmatpush2.msra.mxu0 0.0
    %1479 = vmatprep.subr.mxu0 0.0
    %1480 = vmatpush2.msra.mxu0 0.0
    %1481 = vmatprep.subr.mxu0 0.0
    %1482 = vmatpush2.msra.mxu0 0.0
    %1483 = vmatprep.subr.mxu0 0.0
    %1484 = vmatpush2.msra.mxu0 0.0
    %1485 = vmatprep.subr.mxu0 0.0
    %1486 = vmatpush2.msra.mxu0 0.0
    %1487 = vmatprep.mubr.f32.mxu0 0.0
    %1488 = vmatmul.mubr.f32.gmra.mxu0 %v931
    %v1489 = vpop.f32.mrf.mxu0
    %v1490 = vadd.f32 0.0, %v1489
    %v1491 = vpop.f32.mrf.mxu0
    %1492 = vdwg.mxu0
    %1493 = vmatprep.subr.mxu0 0.0
    %1494 = vmatpush1.msra.mxu0 0.0
    %1495 = vmatprep.subr.mxu0 0.0
    %1496 = vmatpush1.msra.mxu0 0.0
    %1497 = vmatprep.subr.mxu0 0.0
    %1498 = vmatpush1.msra.mxu0 0.0
    %1499 = vmatprep.subr.mxu0 0.0
    %1500 = vmatpush1.msra.mxu0 0.0
    %1501 = vmatprep.subr.mxu0 0.0
    %1502 = vmatpush1.msra.mxu0 0.0
    %1503 = vmatprep.subr.mxu0 0.0
    %1504 = vmatpush1.msra.mxu0 0.0
    %1505 = vmatprep.subr.mxu0 0.0
    %1506 = vmatpush1.msra.mxu0 0.0
    %1507 = vmatprep.subr.mxu0 0.0
    %1508 = vmatpush1.msra.mxu0 0.0
    %1509 = vmatprep.subr.mxu0 0.0
    %1510 = vmatpush1.msra.mxu0 0.0
    %1511 = vmatprep.subr.mxu0 0.0
    %1512 = vmatpush1.msra.mxu0 0.0
    %1513 = vmatprep.subr.mxu0 0.0
    %1514 = vmatpush1.msra.mxu0 0.0
    %1515 = vmatprep.subr.mxu0 0.0
    %1516 = vmatpush1.msra.mxu0 0.0
    %1517 = vmatprep.subr.mxu0 0.0
    %1518 = vmatpush1.msra.mxu0 %v61
    %1519 = vmatprep.subr.mxu0 0.0
    %1520 = vmatpush1.msra.mxu0 %v60
    %1521 = vmatprep.subr.mxu0 0.0
    %1522 = vmatpush1.msra.mxu0 %v59
    %1523 = vmatprep.subr.mxu0 0.0
    %1524 = vmatpush1.msra.mxu0 %v58
    %1525 = vmatprep.subr.mxu0 0.0
    %1526 = vmatpush2.msra.mxu0 0.0
    %1527 = vmatprep.subr.mxu0 0.0
    %1528 = vmatpush2.msra.mxu0 0.0
    %1529 = vmatprep.subr.mxu0 0.0
    %1530 = vmatpush2.msra.mxu0 0.0
    %1531 = vmatprep.subr.mxu0 0.0
    %1532 = vmatpush2.msra.mxu0 0.0
    %1533 = vmatprep.subr.mxu0 0.0
    %1534 = vmatpush2.msra.mxu0 0.0
    %1535 = vmatprep.subr.mxu0 0.0
    %1536 = vmatpush2.msra.mxu0 0.0
    %1537 = vmatprep.subr.mxu0 0.0
    %1538 = vmatpush2.msra.mxu0 0.0
    %1539 = vmatprep.subr.mxu0 0.0
    %1540 = vmatpush2.msra.mxu0 0.0
    %1541 = vmatprep.subr.mxu0 0.0
    %1542 = vmatpush2.msra.mxu0 0.0
    %1543 = vmatprep.subr.mxu0 0.0
    %1544 = vmatpush2.msra.mxu0 0.0
    %1545 = vmatprep.subr.mxu0 0.0
    %1546 = vmatpush2.msra.mxu0 0.0
    %1547 = vmatprep.subr.mxu0 0.0
    %1548 = vmatpush2.msra.mxu0 0.0
    %1549 = vmatprep.subr.mxu0 0.0
    %1550 = vmatpush2.msra.mxu0 0.0
    %1551 = vmatprep.subr.mxu0 0.0
    %1552 = vmatpush2.msra.mxu0 0.0
    %1553 = vmatprep.subr.mxu0 0.0
    %1554 = vmatpush2.msra.mxu0 0.0
    %1555 = vmatprep.subr.mxu0 0.0
    %1556 = vmatpush2.msra.mxu0 0.0
    %1557 = vmatprep.mubr.f32.mxu0 0.0
    %1558 = vmatmul.mubr.f32.gmra.mxu0 %v931
    %v1559 = vpop.f32.mrf.mxu0
    %v1560 = vadd.f32 0.0, %v1559
    %v1561 = vpop.f32.mrf.mxu0
    %1562 = vdwg.mxu0
    %1563 = vmatprep.subr.mxu0 0.0
    %1564 = vmatpush1.msra.mxu0 0.0
    %1565 = vmatprep.subr.mxu0 0.0
    %1566 = vmatpush1.msra.mxu0 0.0
    %1567 = vmatprep.subr.mxu0 0.0
    %1568 = vmatpush1.msra.mxu0 0.0
    %1569 = vmatprep.subr.mxu0 0.0
    %1570 = vmatpush1.msra.mxu0 0.0
    %1571 = vmatprep.subr.mxu0 0.0
    %1572 = vmatpush1.msra.mxu0 0.0
    %1573 = vmatprep.subr.mxu0 0.0
    %1574 = vmatpush1.msra.mxu0 0.0
    %1575 = vmatprep.subr.mxu0 0.0
    %1576 = vmatpush1.msra.mxu0 0.0
    %1577 = vmatprep.subr.mxu0 0.0
    %1578 = vmatpush1.msra.mxu0 0.0
    %1579 = vmatprep.subr.mxu0 0.0
    %1580 = vmatpush1.msra.mxu0 0.0
    %1581 = vmatprep.subr.mxu0 0.0
    %1582 = vmatpush1.msra.mxu0 0.0
    %1583 = vmatprep.subr.mxu0 0.0
    %1584 = vmatpush1.msra.mxu0 0.0
    %1585 = vmatprep.subr.mxu0 0.0
    %1586 = vmatpush1.msra.mxu0 0.0
    %1587 = vmatprep.subr.mxu0 0.0
    %1588 = vmatpush1.msra.mxu0 %v65
    %1589 = vmatprep.subr.mxu0 0.0
    %1590 = vmatpush1.msra.mxu0 %v64
    %1591 = vmatprep.subr.mxu0 0.0
    %1592 = vmatpush1.msra.mxu0 %v63
    %1593 = vmatprep.subr.mxu0 0.0
    %1594 = vmatpush1.msra.mxu0 %v62
    %1595 = vmatprep.subr.mxu0 0.0
    %1596 = vmatpush2.msra.mxu0 0.0
    %1597 = vmatprep.subr.mxu0 0.0
    %1598 = vmatpush2.msra.mxu0 0.0
    %1599 = vmatprep.subr.mxu0 0.0
    %1600 = vmatpush2.msra.mxu0 0.0
    %1601 = vmatprep.subr.mxu0 0.0
    %1602 = vmatpush2.msra.mxu0 0.0
    %1603 = vmatprep.subr.mxu0 0.0
    %1604 = vmatpush2.msra.mxu0 0.0
    %1605 = vmatprep.subr.mxu0 0.0
    %1606 = vmatpush2.msra.mxu0 0.0
    %1607 = vmatprep.subr.mxu0 0.0
    %1608 = vmatpush2.msra.mxu0 0.0
    %1609 = vmatprep.subr.mxu0 0.0
    %1610 = vmatpush2.msra.mxu0 0.0
    %1611 = vmatprep.subr.mxu0 0.0
    %1612 = vmatpush2.msra.mxu0 0.0
    %1613 = vmatprep.subr.mxu0 0.0
    %1614 = vmatpush2.msra.mxu0 0.0
    %1615 = vmatprep.subr.mxu0 0.0
    %1616 = vmatpush2.msra.mxu0 0.0
    %1617 = vmatprep.subr.mxu0 0.0
    %1618 = vmatpush2.msra.mxu0 0.0
    %1619 = vmatprep.subr.mxu0 0.0
    %1620 = vmatpush2.msra.mxu0 0.0
    %1621 = vmatprep.subr.mxu0 0.0
    %1622 = vmatpush2.msra.mxu0 0.0
    %1623 = vmatprep.subr.mxu0 0.0
    %1624 = vmatpush2.msra.mxu0 0.0
    %1625 = vmatprep.subr.mxu0 0.0
    %1626 = vmatpush2.msra.mxu0 0.0
    %1627 = vmatprep.mubr.f32.mxu0 0.0
    %1628 = vmatmul.mubr.f32.gmra.mxu0 %v931
    %v1629 = vpop.f32.mrf.mxu0
    %v1630 = vadd.f32 0.0, %v1629
    %v1631 = vpop.f32.mrf.mxu0
    %1632 = vdwg.mxu0
    %1633 = vmatprep.subr.mxu0 0.0
    %1634 = vmatpush1.msra.mxu0 0.0
    %1635 = vmatprep.subr.mxu0 0.0
    %1636 = vmatpush1.msra.mxu0 0.0
    %1637 = vmatprep.subr.mxu0 0.0
    %1638 = vmatpush1.msra.mxu0 0.0
    %1639 = vmatprep.subr.mxu0 0.0
    %1640 = vmatpush1.msra.mxu0 0.0
    %1641 = vmatprep.subr.mxu0 0.0
    %1642 = vmatpush1.msra.mxu0 0.0
    %1643 = vmatprep.subr.mxu0 0.0
    %1644 = vmatpush1.msra.mxu0 0.0
    %1645 = vmatprep.subr.mxu0 0.0
    %1646 = vmatpush1.msra.mxu0 0.0
    %1647 = vmatprep.subr.mxu0 0.0
    %1648 = vmatpush1.msra.mxu0 0.0
    %1649 = vmatprep.subr.mxu0 0.0
    %1650 = vmatpush1.msra.mxu0 0.0
    %1651 = vmatprep.subr.mxu0 0.0
    %1652 = vmatpush1.msra.mxu0 0.0
    %1653 = vmatprep.subr.mxu0 0.0
    %1654 = vmatpush1.msra.mxu0 0.0
    %1655 = vmatprep.subr.mxu0 0.0
    %1656 = vmatpush1.msra.mxu0 0.0
    %1657 = vmatprep.subr.mxu0 0.0
    %1658 = vmatpush1.msra.mxu0 %v69
    %1659 = vmatprep.subr.mxu0 0.0
    %1660 = vmatpush1.msra.mxu0 %v68
    %1661 = vmatprep.subr.mxu0 0.0
    %1662 = vmatpush1.msra.mxu0 %v67
    %1663 = vmatprep.subr.mxu0 0.0
    %1664 = vmatpush1.msra.mxu0 %v66
    %1665 = vmatprep.subr.mxu0 0.0
    %1666 = vmatpush2.msra.mxu0 0.0
    %1667 = vmatprep.subr.mxu0 0.0
    %1668 = vmatpush2.msra.mxu0 0.0
    %1669 = vmatprep.subr.mxu0 0.0
    %1670 = vmatpush2.msra.mxu0 0.0
    %1671 = vmatprep.subr.mxu0 0.0
    %1672 = vmatpush2.msra.mxu0 0.0
    %1673 = vmatprep.subr.mxu0 0.0
    %1674 = vmatpush2.msra.mxu0 0.0
    %1675 = vmatprep.subr.mxu0 0.0
    %1676 = vmatpush2.msra.mxu0 0.0
    %1677 = vmatprep.subr.mxu0 0.0
    %1678 = vmatpush2.msra.mxu0 0.0
    %1679 = vmatprep.subr.mxu0 0.0
    %1680 = vmatpush2.msra.mxu0 0.0
    %1681 = vmatprep.subr.mxu0 0.0
    %1682 = vmatpush2.msra.mxu0 0.0
    %1683 = vmatprep.subr.mxu0 0.0
    %1684 = vmatpush2.msra.mxu0 0.0
    %1685 = vmatprep.subr.mxu0 0.0
    %1686 = vmatpush2.msra.mxu0 0.0
    %1687 = vmatprep.subr.mxu0 0.0
    %1688 = vmatpush2.msra.mxu0 0.0
    %1689 = vmatprep.subr.mxu0 0.0
    %1690 = vmatpush2.msra.mxu0 0.0
    %1691 = vmatprep.subr.mxu0 0.0
    %1692 = vmatpush2.msra.mxu0 0.0
    %1693 = vmatprep.subr.mxu0 0.0
    %1694 = vmatpush2.msra.mxu0 0.0
    %1695 = vmatprep.subr.mxu0 0.0
    %1696 = vmatpush2.msra.mxu0 0.0
    %1697 = vmatprep.mubr.f32.mxu0 0.0
    %1698 = vmatmul.mubr.f32.gmra.mxu0 %v931
    %v1699 = vpop.f32.mrf.mxu0
    %v1700 = vadd.f32 0.0, %v1699
    %v1701 = vpop.f32.mrf.mxu0
    %1702 = vdwg.mxu0
    %1703 = vmatprep.subr.mxu0 0.0
    %1704 = vmatpush1.msra.mxu0 0.0
    %1705 = vmatprep.subr.mxu0 0.0
    %1706 = vmatpush1.msra.mxu0 0.0
    %1707 = vmatprep.subr.mxu0 0.0
    %1708 = vmatpush1.msra.mxu0 0.0
    %1709 = vmatprep.subr.mxu0 0.0
    %1710 = vmatpush1.msra.mxu0 0.0
    %1711 = vmatprep.subr.mxu0 0.0
    %1712 = vmatpush1.msra.mxu0 0.0
    %1713 = vmatprep.subr.mxu0 0.0
    %1714 = vmatpush1.msra.mxu0 0.0
    %1715 = vmatprep.subr.mxu0 0.0
    %1716 = vmatpush1.msra.mxu0 0.0
    %1717 = vmatprep.subr.mxu0 0.0
    %1718 = vmatpush1.msra.mxu0 0.0
    %1719 = vmatprep.subr.mxu0 0.0
    %1720 = vmatpush1.msra.mxu0 0.0
    %1721 = vmatprep.subr.mxu0 0.0
    %1722 = vmatpush1.msra.mxu0 0.0
    %1723 = vmatprep.subr.mxu0 0.0
    %1724 = vmatpush1.msra.mxu0 0.0
    %1725 = vmatprep.subr.mxu0 0.0
    %1726 = vmatpush1.msra.mxu0 0.0
    %1727 = vmatprep.subr.mxu0 0.0
    %1728 = vmatpush1.msra.mxu0 %v73
    %1729 = vmatprep.subr.mxu0 0.0
    %1730 = vmatpush1.msra.mxu0 %v72
    %1731 = vmatprep.subr.mxu0 0.0
    %1732 = vmatpush1.msra.mxu0 %v71
    %1733 = vmatprep.subr.mxu0 0.0
    %1734 = vmatpush1.msra.mxu0 %v70
    %1735 = vmatprep.subr.mxu0 0.0
    %1736 = vmatpush2.msra.mxu0 0.0
    %1737 = vmatprep.subr.mxu0 0.0
    %1738 = vmatpush2.msra.mxu0 0.0
    %1739 = vmatprep.subr.mxu0 0.0
    %1740 = vmatpush2.msra.mxu0 0.0
    %1741 = vmatprep.subr.mxu0 0.0
    %1742 = vmatpush2.msra.mxu0 0.0
    %1743 = vmatprep.subr.mxu0 0.0
    %1744 = vmatpush2.msra.mxu0 0.0
    %1745 = vmatprep.subr.mxu0 0.0
    %1746 = vmatpush2.msra.mxu0 0.0
    %1747 = vmatprep.subr.mxu0 0.0
    %1748 = vmatpush2.msra.mxu0 0.0
    %1749 = vmatprep.subr.mxu0 0.0
    %1750 = vmatpush2.msra.mxu0 0.0
    %1751 = vmatprep.subr.mxu0 0.0
    %1752 = vmatpush2.msra.mxu0 0.0
    %1753 = vmatprep.subr.mxu0 0.0
    %1754 = vmatpush2.msra.mxu0 0.0
    %1755 = vmatprep.subr.mxu0 0.0
    %1756 = vmatpush2.msra.mxu0 0.0
    %1757 = vmatprep.subr.mxu0 0.0
    %1758 = vmatpush2.msra.mxu0 0.0
    %1759 = vmatprep.subr.mxu0 0.0
    %1760 = vmatpush2.msra.mxu0 0.0
    %1761 = vmatprep.subr.mxu0 0.0
    %1762 = vmatpush2.msra.mxu0 0.0
    %1763 = vmatprep.subr.mxu0 0.0
    %1764 = vmatpush2.msra.mxu0 0.0
    %1765 = vmatprep.subr.mxu0 0.0
    %1766 = vmatpush2.msra.mxu0 0.0
    %1767 = vmatprep.mubr.f32.mxu0 0.0
    %1768 = vmatmul.mubr.f32.gmra.mxu0 %v931
    %v1769 = vpop.f32.mrf.mxu0
    %v1770 = vadd.f32 0.0, %v1769
    %v1771 = vpop.f32.mrf.mxu0
    %1772 = vdwg.mxu0
    %v1785 = vlaneseq
    %v1786 = vshrl.u32 %v1785, 7
    %v1787 = vsub.s32 0, %v1786
    %v1788 = vrot.slane %v74, %v1787
    %v1789 = vlaneseq
    %v1790 = vshrl.u32 %v1789, 7
    %v1791 = vsub.s32 0, %v1790
    %v1792 = vrot.slane %v75, %v1791
    %v1793 = vlaneseq
    %v1794 = vshrl.u32 %v1793, 7
    %v1795 = vsub.s32 0, %v1794
    %v1796 = vrot.slane %v76, %v1795
    %v1797 = vlaneseq
    %v1798 = vshrl.u32 %v1797, 7
    %v1799 = vsub.s32 0, %v1798
    %v1800 = vrot.slane %v77, %v1799
    %v1801 = vlaneseq
    %v1802 = vshrl.u32 %v1801, 7
    %v1803 = vsub.s32 0, %v1802
    %v1804 = vrot.slane %v78, %v1803
    %v1805 = vlaneseq
    %v1806 = vshrl.u32 %v1805, 7
    %v1807 = vsub.s32 0, %v1806
    %v1808 = vrot.slane %v79, %v1807
    %v1809 = vlaneseq
    %v1810 = vshrl.u32 %v1809, 7
    %v1811 = vsub.s32 0, %v1810
    %v1812 = vrot.slane %v80, %v1811
    %v1813 = vlaneseq
    %v1814 = vshrl.u32 %v1813, 7
    %v1815 = vsub.s32 0, %v1814
    %v1816 = vrot.slane %v81, %v1815
    %v1817 = vlaneseq
    %v1818 = vshrl.u32 %v1817, 7
    %v1819 = vsub.s32 0, %v1818
    %v1820 = vrot.slane %v82, %v1819
    %v1821 = vlaneseq
    %v1822 = vshrl.u32 %v1821, 7
    %v1823 = vsub.s32 0, %v1822
    %v1824 = vrot.slane %v83, %v1823
    %v1825 = vlaneseq
    %v1826 = vshrl.u32 %v1825, 7
    %v1827 = vsub.s32 0, %v1826
    %v1828 = vrot.slane %v84, %v1827
    %v1829 = vlaneseq
    %v1830 = vshrl.u32 %v1829, 7
    %v1831 = vsub.s32 0, %v1830
    %v1832 = vrot.slane %v85, %v1831
    %v1845 = vadd.f32 %v157, %v1788
    %v1846 = vadd.f32 %v227, %v1792
    %v1847 = vadd.f32 %v297, %v1796
    %v1848 = vadd.f32 %v367, %v1800
    %v1849 = vadd.f32 %v437, %v1804
    %v1850 = vadd.f32 %v507, %v1808
    %v1851 = vadd.f32 %v577, %v1812
    %v1852 = vadd.f32 %v647, %v1816
    %v1853 = vadd.f32 %v717, %v1820
    %v1854 = vadd.f32 %v787, %v1824
    %v1855 = vadd.f32 %v857, %v1828
    %v1856 = vadd.f32 %v927, %v1832
    %v1857 = vadd.f32 %v1000, %v1788
    %v1858 = vadd.f32 %v1070, %v1792
    %v1859 = vadd.f32 %v1140, %v1796
    %v1860 = vadd.f32 %v1210, %v1800
    %v1861 = vadd.f32 %v1280, %v1804
    %v1862 = vadd.f32 %v1350, %v1808
    %v1863 = vadd.f32 %v1420, %v1812
    %v1864 = vadd.f32 %v1490, %v1816
    %v1865 = vadd.f32 %v1560, %v1820
    %v1866 = vadd.f32 %v1630, %v1824
    %v1867 = vadd.f32 %v1700, %v1828
    %v1868 = vadd.f32 %v1770, %v1832
    %v1869 = vld [vmem:[%s3] sm:$0xff]
    %vm1870 = vcmask 130048
    %v1872 = vsel %vm1870, %v1845, 0
    %v1875 = vsel %vm1870, %v1849, 0
    %1877 = vmatprep.subr.mxu0 0.0
    %1878 = vmatpush1.xpose.msra.mxu0 0.0
    %1879 = vmatprep.subr.mxu0 0.0
    %1880 = vmatpush1.xpose.msra.mxu0 0.0
    %1881 = vmatprep.subr.mxu0 0.0
    %1882 = vmatpush1.xpose.msra.mxu0 0.0
    %1883 = vmatprep.subr.mxu0 0.0
    %1884 = vmatpush1.xpose.msra.mxu0 0.0
    %1885 = vmatprep.subr.mxu0 0.0
    %1886 = vmatpush1.xpose.msra.mxu0 0.0
    %1887 = vmatprep.subr.mxu0 0.0
    %1888 = vmatpush1.xpose.msra.mxu0 0.0
    %1889 = vmatprep.subr.mxu0 0.0
    %1890 = vmatpush1.xpose.msra.mxu0 0.0
    %1891 = vmatprep.subr.mxu0 0.0
    %1892 = vmatpush1.xpose.msra.mxu0 0.0
    %1893 = vmatprep.subr.mxu0 0.0
    %1894 = vmatpush1.xpose.msra.mxu0 0.0
    %1895 = vmatprep.subr.mxu0 0.0
    %1896 = vmatpush1.xpose.msra.mxu0 0.0
    %1897 = vmatprep.subr.mxu0 0.0
    %1898 = vmatpush1.xpose.msra.mxu0 0.0
    %1899 = vmatprep.subr.mxu0 0.0
    %1900 = vmatpush1.xpose.msra.mxu0 0.0
    %1901 = vmatprep.subr.mxu0 0.0
    %1902 = vmatpush1.xpose.msra.mxu0 0.0
    %1903 = vmatprep.subr.mxu0 0.0
    %1904 = vmatpush1.xpose.msra.mxu0 0.0
    %1905 = vmatprep.subr.mxu0 0.0
    %1906 = vmatpush1.xpose.msra.mxu0 0.0
    %1907 = vmatprep.subr.mxu0 0.0
    %1908 = vmatpush1.xpose.msra.mxu0 %v1875
    %1909 = vmatprep.subr.mxu0 0.0
    %1910 = vmatpush2.xpose.msra.mxu0 0.0
    %1911 = vmatprep.subr.mxu0 0.0
    %1912 = vmatpush2.xpose.msra.mxu0 0.0
    %1913 = vmatprep.subr.mxu0 0.0
    %1914 = vmatpush2.xpose.msra.mxu0 0.0
    %1915 = vmatprep.subr.mxu0 0.0
    %1916 = vmatpush2.xpose.msra.mxu0 0.0
    %1917 = vmatprep.subr.mxu0 0.0
    %1918 = vmatpush2.xpose.msra.mxu0 0.0
    %1919 = vmatprep.subr.mxu0 0.0
    %1920 = vmatpush2.xpose.msra.mxu0 0.0
    %1921 = vmatprep.subr.mxu0 0.0
    %1922 = vmatpush2.xpose.msra.mxu0 0.0
    %1923 = vmatprep.subr.mxu0 0.0
    %1924 = vmatpush2.xpose.msra.mxu0 0.0
    %1925 = vmatprep.subr.mxu0 0.0
    %1926 = vmatpush2.xpose.msra.mxu0 0.0
    %1927 = vmatprep.subr.mxu0 0.0
    %1928 = vmatpush2.xpose.msra.mxu0 0.0
    %1929 = vmatprep.subr.mxu0 0.0
    %1930 = vmatpush2.xpose.msra.mxu0 0.0
    %1931 = vmatprep.subr.mxu0 0.0
    %1932 = vmatpush2.xpose.msra.mxu0 0.0
    %1933 = vmatprep.subr.mxu0 0.0
    %1934 = vmatpush2.xpose.msra.mxu0 0.0
    %1935 = vmatprep.subr.mxu0 0.0
    %1936 = vmatpush2.xpose.msra.mxu0 0.0
    %1937 = vmatprep.subr.mxu0 0.0
    %1938 = vmatpush2.xpose.msra.mxu0 0.0
    %1939 = vmatprep.subr.mxu0 0.0
    %1940 = vmatpush2.xpose.msra.mxu0 0.0
    %1941 = vmatprep.mubr.f32.mxu0 0.0
    %1942 = vmatmul.mubr.f32.gmra.mxu0 %v1872
    %v1943 = vpop.f32.mrf.mxu0
    %v1944 = vadd.f32 %v1869, %v1943
    %v1945 = vpop.f32.mrf.mxu0
    %1946 = vdwg.mxu0
    %v1948 = vsel %vm1870, %v1846, 0
    %v1951 = vsel %vm1870, %v1850, 0
    %1953 = vmatprep.subr.mxu0 0.0
    %1954 = vmatpush1.xpose.msra.mxu0 0.0
    %1955 = vmatprep.subr.mxu0 0.0
    %1956 = vmatpush1.xpose.msra.mxu0 0.0
    %1957 = vmatprep.subr.mxu0 0.0
    %1958 = vmatpush1.xpose.msra.mxu0 0.0
    %1959 = vmatprep.subr.mxu0 0.0
    %1960 = vmatpush1.xpose.msra.mxu0 0.0
    %1961 = vmatprep.subr.mxu0 0.0
    %1962 = vmatpush1.xpose.msra.mxu0 0.0
    %1963 = vmatprep.subr.mxu0 0.0
    %1964 = vmatpush1.xpose.msra.mxu0 0.0
    %1965 = vmatprep.subr.mxu0 0.0
    %1966 = vmatpush1.xpose.msra.mxu0 0.0
    %1967 = vmatprep.subr.mxu0 0.0
    %1968 = vmatpush1.xpose.msra.mxu0 0.0
    %1969 = vmatprep.subr.mxu0 0.0
    %1970 = vmatpush1.xpose.msra.mxu0 0.0
    %1971 = vmatprep.subr.mxu0 0.0
    %1972 = vmatpush1.xpose.msra.mxu0 0.0
    %1973 = vmatprep.subr.mxu0 0.0
    %1974 = vmatpush1.xpose.msra.mxu0 0.0
    %1975 = vmatprep.subr.mxu0 0.0
    %1976 = vmatpush1.xpose.msra.mxu0 0.0
    %1977 = vmatprep.subr.mxu0 0.0
    %1978 = vmatpush1.xpose.msra.mxu0 0.0
    %1979 = vmatprep.subr.mxu0 0.0
    %1980 = vmatpush1.xpose.msra.mxu0 0.0
    %1981 = vmatprep.subr.mxu0 0.0
    %1982 = vmatpush1.xpose.msra.mxu0 0.0
    %1983 = vmatprep.subr.mxu0 0.0
    %1984 = vmatpush1.xpose.msra.mxu0 %v1951
    %1985 = vmatprep.subr.mxu0 0.0
    %1986 = vmatpush2.xpose.msra.mxu0 0.0
    %1987 = vmatprep.subr.mxu0 0.0
    %1988 = vmatpush2.xpose.msra.mxu0 0.0
    %1989 = vmatprep.subr.mxu0 0.0
    %1990 = vmatpush2.xpose.msra.mxu0 0.0
    %1991 = vmatprep.subr.mxu0 0.0
    %1992 = vmatpush2.xpose.msra.mxu0 0.0
    %1993 = vmatprep.subr.mxu0 0.0
    %1994 = vmatpush2.xpose.msra.mxu0 0.0
    %1995 = vmatprep.subr.mxu0 0.0
    %1996 = vmatpush2.xpose.msra.mxu0 0.0
    %1997 = vmatprep.subr.mxu0 0.0
    %1998 = vmatpush2.xpose.msra.mxu0 0.0
    %1999 = vmatprep.subr.mxu0 0.0
    %2000 = vmatpush2.xpose.msra.mxu0 0.0
    %2001 = vmatprep.subr.mxu0 0.0
    %2002 = vmatpush2.xpose.msra.mxu0 0.0
    %2003 = vmatprep.subr.mxu0 0.0
    %2004 = vmatpush2.xpose.msra.mxu0 0.0
    %2005 = vmatprep.subr.mxu0 0.0
    %2006 = vmatpush2.xpose.msra.mxu0 0.0
    %2007 = vmatprep.subr.mxu0 0.0
    %2008 = vmatpush2.xpose.msra.mxu0 0.0
    %2009 = vmatprep.subr.mxu0 0.0
    %2010 = vmatpush2.xpose.msra.mxu0 0.0
    %2011 = vmatprep.subr.mxu0 0.0
    %2012 = vmatpush2.xpose.msra.mxu0 0.0
    %2013 = vmatprep.subr.mxu0 0.0
    %2014 = vmatpush2.xpose.msra.mxu0 0.0
    %2015 = vmatprep.subr.mxu0 0.0
    %2016 = vmatpush2.xpose.msra.mxu0 0.0
    %2017 = vmatprep.mubr.f32.mxu0 0.0
    %2018 = vmatmul.mubr.f32.gmra.mxu0 %v1948
    %v2019 = vpop.f32.mrf.mxu0
    %v2020 = vadd.f32 %v1869, %v2019
    %v2021 = vpop.f32.mrf.mxu0
    %2022 = vdwg.mxu0
    %v2024 = vsel %vm1870, %v1847, 0
    %v2027 = vsel %vm1870, %v1851, 0
    %2029 = vmatprep.subr.mxu0 0.0
    %2030 = vmatpush1.xpose.msra.mxu0 0.0
    %2031 = vmatprep.subr.mxu0 0.0
    %2032 = vmatpush1.xpose.msra.mxu0 0.0
    %2033 = vmatprep.subr.mxu0 0.0
    %2034 = vmatpush1.xpose.msra.mxu0 0.0
    %2035 = vmatprep.subr.mxu0 0.0
    %2036 = vmatpush1.xpose.msra.mxu0 0.0
    %2037 = vmatprep.subr.mxu0 0.0
    %2038 = vmatpush1.xpose.msra.mxu0 0.0
    %2039 = vmatprep.subr.mxu0 0.0
    %2040 = vmatpush1.xpose.msra.mxu0 0.0
    %2041 = vmatprep.subr.mxu0 0.0
    %2042 = vmatpush1.xpose.msra.mxu0 0.0
    %2043 = vmatprep.subr.mxu0 0.0
    %2044 = vmatpush1.xpose.msra.mxu0 0.0
    %2045 = vmatprep.subr.mxu0 0.0
    %2046 = vmatpush1.xpose.msra.mxu0 0.0
    %2047 = vmatprep.subr.mxu0 0.0
    %2048 = vmatpush1.xpose.msra.mxu0 0.0
    %2049 = vmatprep.subr.mxu0 0.0
    %2050 = vmatpush1.xpose.msra.mxu0 0.0
    %2051 = vmatprep.subr.mxu0 0.0
    %2052 = vmatpush1.xpose.msra.mxu0 0.0
    %2053 = vmatprep.subr.mxu0 0.0
    %2054 = vmatpush1.xpose.msra.mxu0 0.0
    %2055 = vmatprep.subr.mxu0 0.0
    %2056 = vmatpush1.xpose.msra.mxu0 0.0
    %2057 = vmatprep.subr.mxu0 0.0
    %2058 = vmatpush1.xpose.msra.mxu0 0.0
    %2059 = vmatprep.subr.mxu0 0.0
    %2060 = vmatpush1.xpose.msra.mxu0 %v2027
    %2061 = vmatprep.subr.mxu0 0.0
    %2062 = vmatpush2.xpose.msra.mxu0 0.0
    %2063 = vmatprep.subr.mxu0 0.0
    %2064 = vmatpush2.xpose.msra.mxu0 0.0
    %2065 = vmatprep.subr.mxu0 0.0
    %2066 = vmatpush2.xpose.msra.mxu0 0.0
    %2067 = vmatprep.subr.mxu0 0.0
    %2068 = vmatpush2.xpose.msra.mxu0 0.0
    %2069 = vmatprep.subr.mxu0 0.0
    %2070 = vmatpush2.xpose.msra.mxu0 0.0
    %2071 = vmatprep.subr.mxu0 0.0
    %2072 = vmatpush2.xpose.msra.mxu0 0.0
    %2073 = vmatprep.subr.mxu0 0.0
    %2074 = vmatpush2.xpose.msra.mxu0 0.0
    %2075 = vmatprep.subr.mxu0 0.0
    %2076 = vmatpush2.xpose.msra.mxu0 0.0
    %2077 = vmatprep.subr.mxu0 0.0
    %2078 = vmatpush2.xpose.msra.mxu0 0.0
    %2079 = vmatprep.subr.mxu0 0.0
    %2080 = vmatpush2.xpose.msra.mxu0 0.0
    %2081 = vmatprep.subr.mxu0 0.0
    %2082 = vmatpush2.xpose.msra.mxu0 0.0
    %2083 = vmatprep.subr.mxu0 0.0
    %2084 = vmatpush2.xpose.msra.mxu0 0.0
    %2085 = vmatprep.subr.mxu0 0.0
    %2086 = vmatpush2.xpose.msra.mxu0 0.0
    %2087 = vmatprep.subr.mxu0 0.0
    %2088 = vmatpush2.xpose.msra.mxu0 0.0
    %2089 = vmatprep.subr.mxu0 0.0
    %2090 = vmatpush2.xpose.msra.mxu0 0.0
    %2091 = vmatprep.subr.mxu0 0.0
    %2092 = vmatpush2.xpose.msra.mxu0 0.0
    %2093 = vmatprep.mubr.f32.mxu0 0.0
    %2094 = vmatmul.mubr.f32.gmra.mxu0 %v2024
    %v2095 = vpop.f32.mrf.mxu0
    %v2096 = vadd.f32 %v1869, %v2095
    %v2097 = vpop.f32.mrf.mxu0
    %2098 = vdwg.mxu0
    %v2100 = vsel %vm1870, %v1848, 0
    %v2103 = vsel %vm1870, %v1852, 0
    %2105 = vmatprep.subr.mxu0 0.0
    %2106 = vmatpush1.xpose.msra.mxu0 0.0
    %2107 = vmatprep.subr.mxu0 0.0
    %2108 = vmatpush1.xpose.msra.mxu0 0.0
    %2109 = vmatprep.subr.mxu0 0.0
    %2110 = vmatpush1.xpose.msra.mxu0 0.0
    %2111 = vmatprep.subr.mxu0 0.0
    %2112 = vmatpush1.xpose.msra.mxu0 0.0
    %2113 = vmatprep.subr.mxu0 0.0
    %2114 = vmatpush1.xpose.msra.mxu0 0.0
    %2115 = vmatprep.subr.mxu0 0.0
    %2116 = vmatpush1.xpose.msra.mxu0 0.0
    %2117 = vmatprep.subr.mxu0 0.0
    %2118 = vmatpush1.xpose.msra.mxu0 0.0
    %2119 = vmatprep.subr.mxu0 0.0
    %2120 = vmatpush1.xpose.msra.mxu0 0.0
    %2121 = vmatprep.subr.mxu0 0.0
    %2122 = vmatpush1.xpose.msra.mxu0 0.0
    %2123 = vmatprep.subr.mxu0 0.0
    %2124 = vmatpush1.xpose.msra.mxu0 0.0
    %2125 = vmatprep.subr.mxu0 0.0
    %2126 = vmatpush1.xpose.msra.mxu0 0.0
    %2127 = vmatprep.subr.mxu0 0.0
    %2128 = vmatpush1.xpose.msra.mxu0 0.0
    %2129 = vmatprep.subr.mxu0 0.0
    %2130 = vmatpush1.xpose.msra.mxu0 0.0
    %2131 = vmatprep.subr.mxu0 0.0
    %2132 = vmatpush1.xpose.msra.mxu0 0.0
    %2133 = vmatprep.subr.mxu0 0.0
    %2134 = vmatpush1.xpose.msra.mxu0 0.0
    %2135 = vmatprep.subr.mxu0 0.0
    %2136 = vmatpush1.xpose.msra.mxu0 %v2103
    %2137 = vmatprep.subr.mxu0 0.0
    %2138 = vmatpush2.xpose.msra.mxu0 0.0
    %2139 = vmatprep.subr.mxu0 0.0
    %2140 = vmatpush2.xpose.msra.mxu0 0.0
    %2141 = vmatprep.subr.mxu0 0.0
    %2142 = vmatpush2.xpose.msra.mxu0 0.0
    %2143 = vmatprep.subr.mxu0 0.0
    %2144 = vmatpush2.xpose.msra.mxu0 0.0
    %2145 = vmatprep.subr.mxu0 0.0
    %2146 = vmatpush2.xpose.msra.mxu0 0.0
    %2147 = vmatprep.subr.mxu0 0.0
    %2148 = vmatpush2.xpose.msra.mxu0 0.0
    %2149 = vmatprep.subr.mxu0 0.0
    %2150 = vmatpush2.xpose.msra.mxu0 0.0
    %2151 = vmatprep.subr.mxu0 0.0
    %2152 = vmatpush2.xpose.msra.mxu0 0.0
    %2153 = vmatprep.subr.mxu0 0.0
    %2154 = vmatpush2.xpose.msra.mxu0 0.0
    %2155 = vmatprep.subr.mxu0 0.0
    %2156 = vmatpush2.xpose.msra.mxu0 0.0
    %2157 = vmatprep.subr.mxu0 0.0
    %2158 = vmatpush2.xpose.msra.mxu0 0.0
    %2159 = vmatprep.subr.mxu0 0.0
    %2160 = vmatpush2.xpose.msra.mxu0 0.0
    %2161 = vmatprep.subr.mxu0 0.0
    %2162 = vmatpush2.xpose.msra.mxu0 0.0
    %2163 = vmatprep.subr.mxu0 0.0
    %2164 = vmatpush2.xpose.msra.mxu0 0.0
    %2165 = vmatprep.subr.mxu0 0.0
    %2166 = vmatpush2.xpose.msra.mxu0 0.0
    %2167 = vmatprep.subr.mxu0 0.0
    %2168 = vmatpush2.xpose.msra.mxu0 0.0
    %2169 = vmatprep.mubr.f32.mxu0 0.0
    %2170 = vmatmul.mubr.f32.gmra.mxu0 %v2100
    %v2171 = vpop.f32.mrf.mxu0
    %v2172 = vadd.f32 %v1869, %v2171
    %v2173 = vpop.f32.mrf.mxu0
    %2174 = vdwg.mxu0
    %v2176 = vsel %vm1870, %v1857, 0
    %v2179 = vsel %vm1870, %v1861, 0
    %2181 = vmatprep.subr.mxu0 0.0
    %2182 = vmatpush1.xpose.msra.mxu0 0.0
    %2183 = vmatprep.subr.mxu0 0.0
    %2184 = vmatpush1.xpose.msra.mxu0 0.0
    %2185 = vmatprep.subr.mxu0 0.0
    %2186 = vmatpush1.xpose.msra.mxu0 0.0
    %2187 = vmatprep.subr.mxu0 0.0
    %2188 = vmatpush1.xpose.msra.mxu0 0.0
    %2189 = vmatprep.subr.mxu0 0.0
    %2190 = vmatpush1.xpose.msra.mxu0 0.0
    %2191 = vmatprep.subr.mxu0 0.0
    %2192 = vmatpush1.xpose.msra.mxu0 0.0
    %2193 = vmatprep.subr.mxu0 0.0
    %2194 = vmatpush1.xpose.msra.mxu0 0.0
    %2195 = vmatprep.subr.mxu0 0.0
    %2196 = vmatpush1.xpose.msra.mxu0 0.0
    %2197 = vmatprep.subr.mxu0 0.0
    %2198 = vmatpush1.xpose.msra.mxu0 0.0
    %2199 = vmatprep.subr.mxu0 0.0
    %2200 = vmatpush1.xpose.msra.mxu0 0.0
    %2201 = vmatprep.subr.mxu0 0.0
    %2202 = vmatpush1.xpose.msra.mxu0 0.0
    %2203 = vmatprep.subr.mxu0 0.0
    %2204 = vmatpush1.xpose.msra.mxu0 0.0
    %2205 = vmatprep.subr.mxu0 0.0
    %2206 = vmatpush1.xpose.msra.mxu0 0.0
    %2207 = vmatprep.subr.mxu0 0.0
    %2208 = vmatpush1.xpose.msra.mxu0 0.0
    %2209 = vmatprep.subr.mxu0 0.0
    %2210 = vmatpush1.xpose.msra.mxu0 0.0
    %2211 = vmatprep.subr.mxu0 0.0
    %2212 = vmatpush1.xpose.msra.mxu0 %v2179
    %2213 = vmatprep.subr.mxu0 0.0
    %2214 = vmatpush2.xpose.msra.mxu0 0.0
    %2215 = vmatprep.subr.mxu0 0.0
    %2216 = vmatpush2.xpose.msra.mxu0 0.0
    %2217 = vmatprep.subr.mxu0 0.0
    %2218 = vmatpush2.xpose.msra.mxu0 0.0
    %2219 = vmatprep.subr.mxu0 0.0
    %2220 = vmatpush2.xpose.msra.mxu0 0.0
    %2221 = vmatprep.subr.mxu0 0.0
    %2222 = vmatpush2.xpose.msra.mxu0 0.0
    %2223 = vmatprep.subr.mxu0 0.0
    %2224 = vmatpush2.xpose.msra.mxu0 0.0
    %2225 = vmatprep.subr.mxu0 0.0
    %2226 = vmatpush2.xpose.msra.mxu0 0.0
    %2227 = vmatprep.subr.mxu0 0.0
    %2228 = vmatpush2.xpose.msra.mxu0 0.0
    %2229 = vmatprep.subr.mxu0 0.0
    %2230 = vmatpush2.xpose.msra.mxu0 0.0
    %2231 = vmatprep.subr.mxu0 0.0
    %2232 = vmatpush2.xpose.msra.mxu0 0.0
    %2233 = vmatprep.subr.mxu0 0.0
    %2234 = vmatpush2.xpose.msra.mxu0 0.0
    %2235 = vmatprep.subr.mxu0 0.0
    %2236 = vmatpush2.xpose.msra.mxu0 0.0
    %2237 = vmatprep.subr.mxu0 0.0
    %2238 = vmatpush2.xpose.msra.mxu0 0.0
    %2239 = vmatprep.subr.mxu0 0.0
    %2240 = vmatpush2.xpose.msra.mxu0 0.0
    %2241 = vmatprep.subr.mxu0 0.0
    %2242 = vmatpush2.xpose.msra.mxu0 0.0
    %2243 = vmatprep.subr.mxu0 0.0
    %2244 = vmatpush2.xpose.msra.mxu0 0.0
    %2245 = vmatprep.mubr.f32.mxu0 0.0
    %2246 = vmatmul.mubr.f32.gmra.mxu0 %v2176
    %v2247 = vpop.f32.mrf.mxu0
    %v2248 = vadd.f32 %v1869, %v2247
    %v2249 = vpop.f32.mrf.mxu0
    %2250 = vdwg.mxu0
    %v2252 = vsel %vm1870, %v1858, 0
    %v2255 = vsel %vm1870, %v1862, 0
    %2257 = vmatprep.subr.mxu0 0.0
    %2258 = vmatpush1.xpose.msra.mxu0 0.0
    %2259 = vmatprep.subr.mxu0 0.0
    %2260 = vmatpush1.xpose.msra.mxu0 0.0
    %2261 = vmatprep.subr.mxu0 0.0
    %2262 = vmatpush1.xpose.msra.mxu0 0.0
    %2263 = vmatprep.subr.mxu0 0.0
    %2264 = vmatpush1.xpose.msra.mxu0 0.0
    %2265 = vmatprep.subr.mxu0 0.0
    %2266 = vmatpush1.xpose.msra.mxu0 0.0
    %2267 = vmatprep.subr.mxu0 0.0
    %2268 = vmatpush1.xpose.msra.mxu0 0.0
    %2269 = vmatprep.subr.mxu0 0.0
    %2270 = vmatpush1.xpose.msra.mxu0 0.0
    %2271 = vmatprep.subr.mxu0 0.0
    %2272 = vmatpush1.xpose.msra.mxu0 0.0
    %2273 = vmatprep.subr.mxu0 0.0
    %2274 = vmatpush1.xpose.msra.mxu0 0.0
    %2275 = vmatprep.subr.mxu0 0.0
    %2276 = vmatpush1.xpose.msra.mxu0 0.0
    %2277 = vmatprep.subr.mxu0 0.0
    %2278 = vmatpush1.xpose.msra.mxu0 0.0
    %2279 = vmatprep.subr.mxu0 0.0
    %2280 = vmatpush1.xpose.msra.mxu0 0.0
    %2281 = vmatprep.subr.mxu0 0.0
    %2282 = vmatpush1.xpose.msra.mxu0 0.0
    %2283 = vmatprep.subr.mxu0 0.0
    %2284 = vmatpush1.xpose.msra.mxu0 0.0
    %2285 = vmatprep.subr.mxu0 0.0
    %2286 = vmatpush1.xpose.msra.mxu0 0.0
    %2287 = vmatprep.subr.mxu0 0.0
    %2288 = vmatpush1.xpose.msra.mxu0 %v2255
    %2289 = vmatprep.subr.mxu0 0.0
    %2290 = vmatpush2.xpose.msra.mxu0 0.0
    %2291 = vmatprep.subr.mxu0 0.0
    %2292 = vmatpush2.xpose.msra.mxu0 0.0
    %2293 = vmatprep.subr.mxu0 0.0
    %2294 = vmatpush2.xpose.msra.mxu0 0.0
    %2295 = vmatprep.subr.mxu0 0.0
    %2296 = vmatpush2.xpose.msra.mxu0 0.0
    %2297 = vmatprep.subr.mxu0 0.0
    %2298 = vmatpush2.xpose.msra.mxu0 0.0
    %2299 = vmatprep.subr.mxu0 0.0
    %2300 = vmatpush2.xpose.msra.mxu0 0.0
    %2301 = vmatprep.subr.mxu0 0.0
    %2302 = vmatpush2.xpose.msra.mxu0 0.0
    %2303 = vmatprep.subr.mxu0 0.0
    %2304 = vmatpush2.xpose.msra.mxu0 0.0
    %2305 = vmatprep.subr.mxu0 0.0
    %2306 = vmatpush2.xpose.msra.mxu0 0.0
    %2307 = vmatprep.subr.mxu0 0.0
    %2308 = vmatpush2.xpose.msra.mxu0 0.0
    %2309 = vmatprep.subr.mxu0 0.0
    %2310 = vmatpush2.xpose.msra.mxu0 0.0
    %2311 = vmatprep.subr.mxu0 0.0
    %2312 = vmatpush2.xpose.msra.mxu0 0.0
    %2313 = vmatprep.subr.mxu0 0.0
    %2314 = vmatpush2.xpose.msra.mxu0 0.0
    %2315 = vmatprep.subr.mxu0 0.0
    %2316 = vmatpush2.xpose.msra.mxu0 0.0
    %2317 = vmatprep.subr.mxu0 0.0
    %2318 = vmatpush2.xpose.msra.mxu0 0.0
    %2319 = vmatprep.subr.mxu0 0.0
    %2320 = vmatpush2.xpose.msra.mxu0 0.0
    %2321 = vmatprep.mubr.f32.mxu0 0.0
    %2322 = vmatmul.mubr.f32.gmra.mxu0 %v2252
    %v2323 = vpop.f32.mrf.mxu0
    %v2324 = vadd.f32 %v1869, %v2323
    %v2325 = vpop.f32.mrf.mxu0
    %2326 = vdwg.mxu0
    %v2328 = vsel %vm1870, %v1859, 0
    %v2331 = vsel %vm1870, %v1863, 0
    %2333 = vmatprep.subr.mxu0 0.0
    %2334 = vmatpush1.xpose.msra.mxu0 0.0
    %2335 = vmatprep.subr.mxu0 0.0
    %2336 = vmatpush1.xpose.msra.mxu0 0.0
    %2337 = vmatprep.subr.mxu0 0.0
    %2338 = vmatpush1.xpose.msra.mxu0 0.0
    %2339 = vmatprep.subr.mxu0 0.0
    %2340 = vmatpush1.xpose.msra.mxu0 0.0
    %2341 = vmatprep.subr.mxu0 0.0
    %2342 = vmatpush1.xpose.msra.mxu0 0.0
    %2343 = vmatprep.subr.mxu0 0.0
    %2344 = vmatpush1.xpose.msra.mxu0 0.0
    %2345 = vmatprep.subr.mxu0 0.0
    %2346 = vmatpush1.xpose.msra.mxu0 0.0
    %2347 = vmatprep.subr.mxu0 0.0
    %2348 = vmatpush1.xpose.msra.mxu0 0.0
    %2349 = vmatprep.subr.mxu0 0.0
    %2350 = vmatpush1.xpose.msra.mxu0 0.0
    %2351 = vmatprep.subr.mxu0 0.0
    %2352 = vmatpush1.xpose.msra.mxu0 0.0
    %2353 = vmatprep.subr.mxu0 0.0
    %2354 = vmatpush1.xpose.msra.mxu0 0.0
    %2355 = vmatprep.subr.mxu0 0.0
    %2356 = vmatpush1.xpose.msra.mxu0 0.0
    %2357 = vmatprep.subr.mxu0 0.0
    %2358 = vmatpush1.xpose.msra.mxu0 0.0
    %2359 = vmatprep.subr.mxu0 0.0
    %2360 = vmatpush1.xpose.msra.mxu0 0.0
    %2361 = vmatprep.subr.mxu0 0.0
    %2362 = vmatpush1.xpose.msra.mxu0 0.0
    %2363 = vmatprep.subr.mxu0 0.0
    %2364 = vmatpush1.xpose.msra.mxu0 %v2331
    %2365 = vmatprep.subr.mxu0 0.0
    %2366 = vmatpush2.xpose.msra.mxu0 0.0
    %2367 = vmatprep.subr.mxu0 0.0
    %2368 = vmatpush2.xpose.msra.mxu0 0.0
    %2369 = vmatprep.subr.mxu0 0.0
    %2370 = vmatpush2.xpose.msra.mxu0 0.0
    %2371 = vmatprep.subr.mxu0 0.0
    %2372 = vmatpush2.xpose.msra.mxu0 0.0
    %2373 = vmatprep.subr.mxu0 0.0
    %2374 = vmatpush2.xpose.msra.mxu0 0.0
    %2375 = vmatprep.subr.mxu0 0.0
    %2376 = vmatpush2.xpose.msra.mxu0 0.0
    %2377 = vmatprep.subr.mxu0 0.0
    %2378 = vmatpush2.xpose.msra.mxu0 0.0
    %2379 = vmatprep.subr.mxu0 0.0
    %2380 = vmatpush2.xpose.msra.mxu0 0.0
    %2381 = vmatprep.subr.mxu0 0.0
    %2382 = vmatpush2.xpose.msra.mxu0 0.0
    %2383 = vmatprep.subr.mxu0 0.0
    %2384 = vmatpush2.xpose.msra.mxu0 0.0
    %2385 = vmatprep.subr.mxu0 0.0
    %2386 = vmatpush2.xpose.msra.mxu0 0.0
    %2387 = vmatprep.subr.mxu0 0.0
    %2388 = vmatpush2.xpose.msra.mxu0 0.0
    %2389 = vmatprep.subr.mxu0 0.0
    %2390 = vmatpush2.xpose.msra.mxu0 0.0
    %2391 = vmatprep.subr.mxu0 0.0
    %2392 = vmatpush2.xpose.msra.mxu0 0.0
    %2393 = vmatprep.subr.mxu0 0.0
    %2394 = vmatpush2.xpose.msra.mxu0 0.0
    %2395 = vmatprep.subr.mxu0 0.0
    %2396 = vmatpush2.xpose.msra.mxu0 0.0
    %2397 = vmatprep.mubr.f32.mxu0 0.0
    %2398 = vmatmul.mubr.f32.gmra.mxu0 %v2328
    %v2399 = vpop.f32.mrf.mxu0
    %v2400 = vadd.f32 %v1869, %v2399
    %v2401 = vpop.f32.mrf.mxu0
    %2402 = vdwg.mxu0
    %v2404 = vsel %vm1870, %v1860, 0
    %v2407 = vsel %vm1870, %v1864, 0
    %2409 = vmatprep.subr.mxu0 0.0
    %2410 = vmatpush1.xpose.msra.mxu0 0.0
    %2411 = vmatprep.subr.mxu0 0.0
    %2412 = vmatpush1.xpose.msra.mxu0 0.0
    %2413 = vmatprep.subr.mxu0 0.0
    %2414 = vmatpush1.xpose.msra.mxu0 0.0
    %2415 = vmatprep.subr.mxu0 0.0
    %2416 = vmatpush1.xpose.msra.mxu0 0.0
    %2417 = vmatprep.subr.mxu0 0.0
    %2418 = vmatpush1.xpose.msra.mxu0 0.0
    %2419 = vmatprep.subr.mxu0 0.0
    %2420 = vmatpush1.xpose.msra.mxu0 0.0
    %2421 = vmatprep.subr.mxu0 0.0
    %2422 = vmatpush1.xpose.msra.mxu0 0.0
    %2423 = vmatprep.subr.mxu0 0.0
    %2424 = vmatpush1.xpose.msra.mxu0 0.0
    %2425 = vmatprep.subr.mxu0 0.0
    %2426 = vmatpush1.xpose.msra.mxu0 0.0
    %2427 = vmatprep.subr.mxu0 0.0
    %2428 = vmatpush1.xpose.msra.mxu0 0.0
    %2429 = vmatprep.subr.mxu0 0.0
    %2430 = vmatpush1.xpose.msra.mxu0 0.0
    %2431 = vmatprep.subr.mxu0 0.0
    %2432 = vmatpush1.xpose.msra.mxu0 0.0
    %2433 = vmatprep.subr.mxu0 0.0
    %2434 = vmatpush1.xpose.msra.mxu0 0.0
    %2435 = vmatprep.subr.mxu0 0.0
    %2436 = vmatpush1.xpose.msra.mxu0 0.0
    %2437 = vmatprep.subr.mxu0 0.0
    %2438 = vmatpush1.xpose.msra.mxu0 0.0
    %2439 = vmatprep.subr.mxu0 0.0
    %2440 = vmatpush1.xpose.msra.mxu0 %v2407
    %2441 = vmatprep.subr.mxu0 0.0
    %2442 = vmatpush2.xpose.msra.mxu0 0.0
    %2443 = vmatprep.subr.mxu0 0.0
    %2444 = vmatpush2.xpose.msra.mxu0 0.0
    %2445 = vmatprep.subr.mxu0 0.0
    %2446 = vmatpush2.xpose.msra.mxu0 0.0
    %2447 = vmatprep.subr.mxu0 0.0
    %2448 = vmatpush2.xpose.msra.mxu0 0.0
    %2449 = vmatprep.subr.mxu0 0.0
    %2450 = vmatpush2.xpose.msra.mxu0 0.0
    %2451 = vmatprep.subr.mxu0 0.0
    %2452 = vmatpush2.xpose.msra.mxu0 0.0
    %2453 = vmatprep.subr.mxu0 0.0
    %2454 = vmatpush2.xpose.msra.mxu0 0.0
    %2455 = vmatprep.subr.mxu0 0.0
    %2456 = vmatpush2.xpose.msra.mxu0 0.0
    %2457 = vmatprep.subr.mxu0 0.0
    %2458 = vmatpush2.xpose.msra.mxu0 0.0
    %2459 = vmatprep.subr.mxu0 0.0
    %2460 = vmatpush2.xpose.msra.mxu0 0.0
    %2461 = vmatprep.subr.mxu0 0.0
    %2462 = vmatpush2.xpose.msra.mxu0 0.0
    %2463 = vmatprep.subr.mxu0 0.0
    %2464 = vmatpush2.xpose.msra.mxu0 0.0
    %2465 = vmatprep.subr.mxu0 0.0
    %2466 = vmatpush2.xpose.msra.mxu0 0.0
    %2467 = vmatprep.subr.mxu0 0.0
    %2468 = vmatpush2.xpose.msra.mxu0 0.0
    %2469 = vmatprep.subr.mxu0 0.0
    %2470 = vmatpush2.xpose.msra.mxu0 0.0
    %2471 = vmatprep.subr.mxu0 0.0
    %2472 = vmatpush2.xpose.msra.mxu0 0.0
    %2473 = vmatprep.mubr.f32.mxu0 0.0
    %2474 = vmatmul.mubr.f32.gmra.mxu0 %v2404
    %v2475 = vpop.f32.mrf.mxu0
    %v2476 = vadd.f32 %v1869, %v2475
    %v2477 = vpop.f32.mrf.mxu0
    %2478 = vdwg.mxu0
    %vm2479 = vcmask 64512
    %v2480 = vsel %vm2479, %v1944, -inf
    %2481 = vmax.xlane.f32.xlu0 %v2480
    %v2482 = vpop.xlane.xlu0 %2481
    %v2483 = vsel %vm2479, %v2020, -inf
    %2484 = vmax.xlane.f32.xlu0 %v2483
    %v2485 = vpop.xlane.xlu0 %2484
    %v2486 = vsel %vm2479, %v2096, -inf
    %2487 = vmax.xlane.f32.xlu0 %v2486
    %v2488 = vpop.xlane.xlu0 %2487
    %v2489 = vsel %vm2479, %v2172, -inf
    %2490 = vmax.xlane.f32.xlu0 %v2489
    %v2491 = vpop.xlane.xlu0 %2490
    %v2492 = vsel %vm2479, %v2248, -inf
    %2493 = vmax.xlane.f32.xlu0 %v2492
    %v2494 = vpop.xlane.xlu0 %2493
    %v2495 = vsel %vm2479, %v2324, -inf
    %2496 = vmax.xlane.f32.xlu0 %v2495
    %v2497 = vpop.xlane.xlu0 %2496
    %v2498 = vsel %vm2479, %v2400, -inf
    %2499 = vmax.xlane.f32.xlu0 %v2498
    %v2500 = vpop.xlane.xlu0 %2499
    %v2501 = vsel %vm2479, %v2476, -inf
    %2502 = vmax.xlane.f32.xlu0 %v2501
    %v2503 = vpop.xlane.xlu0 %2502
    %v2504 = vsub.f32 %v1944, %v2482
    %v2505 = vsub.f32 %v2020, %v2485
    %v2506 = vsub.f32 %v2096, %v2488
    %v2507 = vsub.f32 %v2172, %v2491
    %v2508 = vsub.f32 %v2248, %v2494
    %v2509 = vsub.f32 %v2324, %v2497
    %v2510 = vsub.f32 %v2400, %v2500
    %v2511 = vsub.f32 %v2476, %v2503
    %v2512 = vmul.f32 %v2504, 1.442695
    %v2513 = vpow.pop %v2512
    %v2514 = vmul.f32 %v2505, 1.442695
    %v2515 = vpow.pop %v2514
    %v2516 = vmul.f32 %v2506, 1.442695
    %v2517 = vpow.pop %v2516
    %v2518 = vmul.f32 %v2507, 1.442695
    %v2519 = vpow.pop %v2518
    %v2520 = vmul.f32 %v2508, 1.442695
    %v2521 = vpow.pop %v2520
    %v2522 = vmul.f32 %v2509, 1.442695
    %v2523 = vpow.pop %v2522
    %v2524 = vmul.f32 %v2510, 1.442695
    %v2525 = vpow.pop %v2524
    %v2526 = vmul.f32 %v2511, 1.442695
    %v2527 = vpow.pop %v2526
    %v2528 = vsel %vm2479, %v2513, 0.0
    %2529 = vadd.xlane.f32.xlu0 %v2528
    %v2530 = vpop.xlane.xlu0 %2529
    %v2531 = vsel %vm2479, %v2515, 0.0
    %2532 = vadd.xlane.f32.xlu0 %v2531
    %v2533 = vpop.xlane.xlu0 %2532
    %v2534 = vsel %vm2479, %v2517, 0.0
    %2535 = vadd.xlane.f32.xlu0 %v2534
    %v2536 = vpop.xlane.xlu0 %2535
    %v2537 = vsel %vm2479, %v2519, 0.0
    %2538 = vadd.xlane.f32.xlu0 %v2537
    %v2539 = vpop.xlane.xlu0 %2538
    %v2540 = vsel %vm2479, %v2521, 0.0
    %2541 = vadd.xlane.f32.xlu0 %v2540
    %v2542 = vpop.xlane.xlu0 %2541
    %v2543 = vsel %vm2479, %v2523, 0.0
    %2544 = vadd.xlane.f32.xlu0 %v2543
    %v2545 = vpop.xlane.xlu0 %2544
    %v2546 = vsel %vm2479, %v2525, 0.0
    %2547 = vadd.xlane.f32.xlu0 %v2546
    %v2548 = vpop.xlane.xlu0 %2547
    %v2549 = vsel %vm2479, %v2527, 0.0
    %2550 = vadd.xlane.f32.xlu0 %v2549
    %v2551 = vpop.xlane.xlu0 %2550
    %v2552 = vrcp.pop %v2530
    %v2553 = vrcp.pop %v2533
    %v2554 = vrcp.pop %v2536
    %v2555 = vrcp.pop %v2539
    %v2556 = vrcp.pop %v2542
    %v2557 = vrcp.pop %v2545
    %v2558 = vrcp.pop %v2548
    %v2559 = vrcp.pop %v2551
    %v2560 = vmul.f32 %v2513, %v2552
    %v2561 = vmul.f32 %v2515, %v2553
    %v2562 = vmul.f32 %v2517, %v2554
    %v2563 = vmul.f32 %v2519, %v2555
    %v2564 = vmul.f32 %v2521, %v2556
    %v2565 = vmul.f32 %v2523, %v2557
    %v2566 = vmul.f32 %v2525, %v2558
    %v2567 = vmul.f32 %v2527, %v2559
    %v2569 = vsel %vm2479, %v2560, 0
    %2571 = vmatprep.subr.mxu0 0.0
    %2572 = vmatpush1.msra.mxu0 0.0
    %2573 = vmatprep.subr.mxu0 0.0
    %2574 = vmatpush1.msra.mxu0 0.0
    %2575 = vmatprep.subr.mxu0 0.0
    %2576 = vmatpush1.msra.mxu0 0.0
    %2577 = vmatprep.subr.mxu0 0.0
    %2578 = vmatpush1.msra.mxu0 0.0
    %2579 = vmatprep.subr.mxu0 0.0
    %2580 = vmatpush1.msra.mxu0 0.0
    %2581 = vmatprep.subr.mxu0 0.0
    %2582 = vmatpush1.msra.mxu0 0.0
    %2583 = vmatprep.subr.mxu0 0.0
    %2584 = vmatpush1.msra.mxu0 0.0
    %2585 = vmatprep.subr.mxu0 0.0
    %2586 = vmatpush1.msra.mxu0 0.0
    %2587 = vmatprep.subr.mxu0 0.0
    %2588 = vmatpush1.msra.mxu0 0.0
    %2589 = vmatprep.subr.mxu0 0.0
    %2590 = vmatpush1.msra.mxu0 0.0
    %2591 = vmatprep.subr.mxu0 0.0
    %2592 = vmatpush1.msra.mxu0 0.0
    %2593 = vmatprep.subr.mxu0 0.0
    %2594 = vmatpush1.msra.mxu0 0.0
    %2595 = vmatprep.subr.mxu0 0.0
    %2596 = vmatpush1.msra.mxu0 0.0
    %2597 = vmatprep.subr.mxu0 0.0
    %2598 = vmatpush1.msra.mxu0 0.0
    %2599 = vmatprep.subr.mxu0 0.0
    %2600 = vmatpush1.msra.mxu0 0.0
    %2601 = vmatprep.subr.mxu0 0.0
    %2602 = vmatpush1.msra.mxu0 %v1853
    %2603 = vmatprep.subr.mxu0 0.0
    %2604 = vmatpush2.msra.mxu0 0.0
    %2605 = vmatprep.subr.mxu0 0.0
    %2606 = vmatpush2.msra.mxu0 0.0
    %2607 = vmatprep.subr.mxu0 0.0
    %2608 = vmatpush2.msra.mxu0 0.0
    %2609 = vmatprep.subr.mxu0 0.0
    %2610 = vmatpush2.msra.mxu0 0.0
    %2611 = vmatprep.subr.mxu0 0.0
    %2612 = vmatpush2.msra.mxu0 0.0
    %2613 = vmatprep.subr.mxu0 0.0
    %2614 = vmatpush2.msra.mxu0 0.0
    %2615 = vmatprep.subr.mxu0 0.0
    %2616 = vmatpush2.msra.mxu0 0.0
    %2617 = vmatprep.subr.mxu0 0.0
    %2618 = vmatpush2.msra.mxu0 0.0
    %2619 = vmatprep.subr.mxu0 0.0
    %2620 = vmatpush2.msra.mxu0 0.0
    %2621 = vmatprep.subr.mxu0 0.0
    %2622 = vmatpush2.msra.mxu0 0.0
    %2623 = vmatprep.subr.mxu0 0.0
    %2624 = vmatpush2.msra.mxu0 0.0
    %2625 = vmatprep.subr.mxu0 0.0
    %2626 = vmatpush2.msra.mxu0 0.0
    %2627 = vmatprep.subr.mxu0 0.0
    %2628 = vmatpush2.msra.mxu0 0.0
    %2629 = vmatprep.subr.mxu0 0.0
    %2630 = vmatpush2.msra.mxu0 0.0
    %2631 = vmatprep.subr.mxu0 0.0
    %2632 = vmatpush2.msra.mxu0 0.0
    %2633 = vmatprep.subr.mxu0 0.0
    %2634 = vmatpush2.msra.mxu0 0.0
    %2635 = vmatprep.mubr.f32.mxu0 0.0
    %2636 = vmatmul.mubr.f32.gmra.mxu0 %v2569
    %v2637 = vpop.f32.mrf.mxu0
    %v2638 = vadd.f32 0.0, %v2637
    %v2639 = vpop.f32.mrf.mxu0
    %2640 = vdwg.mxu0
    %v2642 = vsel %vm2479, %v2561, 0
    %2644 = vmatprep.subr.mxu0 0.0
    %2645 = vmatpush1.msra.mxu0 0.0
    %2646 = vmatprep.subr.mxu0 0.0
    %2647 = vmatpush1.msra.mxu0 0.0
    %2648 = vmatprep.subr.mxu0 0.0
    %2649 = vmatpush1.msra.mxu0 0.0
    %2650 = vmatprep.subr.mxu0 0.0
    %2651 = vmatpush1.msra.mxu0 0.0
    %2652 = vmatprep.subr.mxu0 0.0
    %2653 = vmatpush1.msra.mxu0 0.0
    %2654 = vmatprep.subr.mxu0 0.0
    %2655 = vmatpush1.msra.mxu0 0.0
    %2656 = vmatprep.subr.mxu0 0.0
    %2657 = vmatpush1.msra.mxu0 0.0
    %2658 = vmatprep.subr.mxu0 0.0
    %2659 = vmatpush1.msra.mxu0 0.0
    %2660 = vmatprep.subr.mxu0 0.0
    %2661 = vmatpush1.msra.mxu0 0.0
    %2662 = vmatprep.subr.mxu0 0.0
    %2663 = vmatpush1.msra.mxu0 0.0
    %2664 = vmatprep.subr.mxu0 0.0
    %2665 = vmatpush1.msra.mxu0 0.0
    %2666 = vmatprep.subr.mxu0 0.0
    %2667 = vmatpush1.msra.mxu0 0.0
    %2668 = vmatprep.subr.mxu0 0.0
    %2669 = vmatpush1.msra.mxu0 0.0
    %2670 = vmatprep.subr.mxu0 0.0
    %2671 = vmatpush1.msra.mxu0 0.0
    %2672 = vmatprep.subr.mxu0 0.0
    %2673 = vmatpush1.msra.mxu0 0.0
    %2674 = vmatprep.subr.mxu0 0.0
    %2675 = vmatpush1.msra.mxu0 %v1854
    %2676 = vmatprep.subr.mxu0 0.0
    %2677 = vmatpush2.msra.mxu0 0.0
    %2678 = vmatprep.subr.mxu0 0.0
    %2679 = vmatpush2.msra.mxu0 0.0
    %2680 = vmatprep.subr.mxu0 0.0
    %2681 = vmatpush2.msra.mxu0 0.0
    %2682 = vmatprep.subr.mxu0 0.0
    %2683 = vmatpush2.msra.mxu0 0.0
    %2684 = vmatprep.subr.mxu0 0.0
    %2685 = vmatpush2.msra.mxu0 0.0
    %2686 = vmatprep.subr.mxu0 0.0
    %2687 = vmatpush2.msra.mxu0 0.0
    %2688 = vmatprep.subr.mxu0 0.0
    %2689 = vmatpush2.msra.mxu0 0.0
    %2690 = vmatprep.subr.mxu0 0.0
    %2691 = vmatpush2.msra.mxu0 0.0
    %2692 = vmatprep.subr.mxu0 0.0
    %2693 = vmatpush2.msra.mxu0 0.0
    %2694 = vmatprep.subr.mxu0 0.0
    %2695 = vmatpush2.msra.mxu0 0.0
    %2696 = vmatprep.subr.mxu0 0.0
    %2697 = vmatpush2.msra.mxu0 0.0
    %2698 = vmatprep.subr.mxu0 0.0
    %2699 = vmatpush2.msra.mxu0 0.0
    %2700 = vmatprep.subr.mxu0 0.0
    %2701 = vmatpush2.msra.mxu0 0.0
    %2702 = vmatprep.subr.mxu0 0.0
    %2703 = vmatpush2.msra.mxu0 0.0
    %2704 = vmatprep.subr.mxu0 0.0
    %2705 = vmatpush2.msra.mxu0 0.0
    %2706 = vmatprep.subr.mxu0 0.0
    %2707 = vmatpush2.msra.mxu0 0.0
    %2708 = vmatprep.mubr.f32.mxu0 0.0
    %2709 = vmatmul.mubr.f32.gmra.mxu0 %v2642
    %v2710 = vpop.f32.mrf.mxu0
    %v2711 = vadd.f32 0.0, %v2710
    %v2712 = vpop.f32.mrf.mxu0
    %2713 = vdwg.mxu0
    %v2715 = vsel %vm2479, %v2562, 0
    %2717 = vmatprep.subr.mxu0 0.0
    %2718 = vmatpush1.msra.mxu0 0.0
    %2719 = vmatprep.subr.mxu0 0.0
    %2720 = vmatpush1.msra.mxu0 0.0
    %2721 = vmatprep.subr.mxu0 0.0
    %2722 = vmatpush1.msra.mxu0 0.0
    %2723 = vmatprep.subr.mxu0 0.0
    %2724 = vmatpush1.msra.mxu0 0.0
    %2725 = vmatprep.subr.mxu0 0.0
    %2726 = vmatpush1.msra.mxu0 0.0
    %2727 = vmatprep.subr.mxu0 0.0
    %2728 = vmatpush1.msra.mxu0 0.0
    %2729 = vmatprep.subr.mxu0 0.0
    %2730 = vmatpush1.msra.mxu0 0.0
    %2731 = vmatprep.subr.mxu0 0.0
    %2732 = vmatpush1.msra.mxu0 0.0
    %2733 = vmatprep.subr.mxu0 0.0
    %2734 = vmatpush1.msra.mxu0 0.0
    %2735 = vmatprep.subr.mxu0 0.0
    %2736 = vmatpush1.msra.mxu0 0.0
    %2737 = vmatprep.subr.mxu0 0.0
    %2738 = vmatpush1.msra.mxu0 0.0
    %2739 = vmatprep.subr.mxu0 0.0
    %2740 = vmatpush1.msra.mxu0 0.0
    %2741 = vmatprep.subr.mxu0 0.0
    %2742 = vmatpush1.msra.mxu0 0.0
    %2743 = vmatprep.subr.mxu0 0.0
    %2744 = vmatpush1.msra.mxu0 0.0
    %2745 = vmatprep.subr.mxu0 0.0
    %2746 = vmatpush1.msra.mxu0 0.0
    %2747 = vmatprep.subr.mxu0 0.0
    %2748 = vmatpush1.msra.mxu0 %v1855
    %2749 = vmatprep.subr.mxu0 0.0
    %2750 = vmatpush2.msra.mxu0 0.0
    %2751 = vmatprep.subr.mxu0 0.0
    %2752 = vmatpush2.msra.mxu0 0.0
    %2753 = vmatprep.subr.mxu0 0.0
    %2754 = vmatpush2.msra.mxu0 0.0
    %2755 = vmatprep.subr.mxu0 0.0
    %2756 = vmatpush2.msra.mxu0 0.0
    %2757 = vmatprep.subr.mxu0 0.0
    %2758 = vmatpush2.msra.mxu0 0.0
    %2759 = vmatprep.subr.mxu0 0.0
    %2760 = vmatpush2.msra.mxu0 0.0
    %2761 = vmatprep.subr.mxu0 0.0
    %2762 = vmatpush2.msra.mxu0 0.0
    %2763 = vmatprep.subr.mxu0 0.0
    %2764 = vmatpush2.msra.mxu0 0.0
    %2765 = vmatprep.subr.mxu0 0.0
    %2766 = vmatpush2.msra.mxu0 0.0
    %2767 = vmatprep.subr.mxu0 0.0
    %2768 = vmatpush2.msra.mxu0 0.0
    %2769 = vmatprep.subr.mxu0 0.0
    %2770 = vmatpush2.msra.mxu0 0.0
    %2771 = vmatprep.subr.mxu0 0.0
    %2772 = vmatpush2.msra.mxu0 0.0
    %2773 = vmatprep.subr.mxu0 0.0
    %2774 = vmatpush2.msra.mxu0 0.0
    %2775 = vmatprep.subr.mxu0 0.0
    %2776 = vmatpush2.msra.mxu0 0.0
    %2777 = vmatprep.subr.mxu0 0.0
    %2778 = vmatpush2.msra.mxu0 0.0
    %2779 = vmatprep.subr.mxu0 0.0
    %2780 = vmatpush2.msra.mxu0 0.0
    %2781 = vmatprep.mubr.f32.mxu0 0.0
    %2782 = vmatmul.mubr.f32.gmra.mxu0 %v2715
    %v2783 = vpop.f32.mrf.mxu0
    %v2784 = vadd.f32 0.0, %v2783
    %v2785 = vpop.f32.mrf.mxu0
    %2786 = vdwg.mxu0
    %v2788 = vsel %vm2479, %v2563, 0
    %2790 = vmatprep.subr.mxu0 0.0
    %2791 = vmatpush1.msra.mxu0 0.0
    %2792 = vmatprep.subr.mxu0 0.0
    %2793 = vmatpush1.msra.mxu0 0.0
    %2794 = vmatprep.subr.mxu0 0.0
    %2795 = vmatpush1.msra.mxu0 0.0
    %2796 = vmatprep.subr.mxu0 0.0
    %2797 = vmatpush1.msra.mxu0 0.0
    %2798 = vmatprep.subr.mxu0 0.0
    %2799 = vmatpush1.msra.mxu0 0.0
    %2800 = vmatprep.subr.mxu0 0.0
    %2801 = vmatpush1.msra.mxu0 0.0
    %2802 = vmatprep.subr.mxu0 0.0
    %2803 = vmatpush1.msra.mxu0 0.0
    %2804 = vmatprep.subr.mxu0 0.0
    %2805 = vmatpush1.msra.mxu0 0.0
    %2806 = vmatprep.subr.mxu0 0.0
    %2807 = vmatpush1.msra.mxu0 0.0
    %2808 = vmatprep.subr.mxu0 0.0
    %2809 = vmatpush1.msra.mxu0 0.0
    %2810 = vmatprep.subr.mxu0 0.0
    %2811 = vmatpush1.msra.mxu0 0.0
    %2812 = vmatprep.subr.mxu0 0.0
    %2813 = vmatpush1.msra.mxu0 0.0
    %2814 = vmatprep.subr.mxu0 0.0
    %2815 = vmatpush1.msra.mxu0 0.0
    %2816 = vmatprep.subr.mxu0 0.0
    %2817 = vmatpush1.msra.mxu0 0.0
    %2818 = vmatprep.subr.mxu0 0.0
    %2819 = vmatpush1.msra.mxu0 0.0
    %2820 = vmatprep.subr.mxu0 0.0
    %2821 = vmatpush1.msra.mxu0 %v1856
    %2822 = vmatprep.subr.mxu0 0.0
    %2823 = vmatpush2.msra.mxu0 0.0
    %2824 = vmatprep.subr.mxu0 0.0
    %2825 = vmatpush2.msra.mxu0 0.0
    %2826 = vmatprep.subr.mxu0 0.0
    %2827 = vmatpush2.msra.mxu0 0.0
    %2828 = vmatprep.subr.mxu0 0.0
    %2829 = vmatpush2.msra.mxu0 0.0
    %2830 = vmatprep.subr.mxu0 0.0
    %2831 = vmatpush2.msra.mxu0 0.0
    %2832 = vmatprep.subr.mxu0 0.0
    %2833 = vmatpush2.msra.mxu0 0.0
    %2834 = vmatprep.subr.mxu0 0.0
    %2835 = vmatpush2.msra.mxu0 0.0
    %2836 = vmatprep.subr.mxu0 0.0
    %2837 = vmatpush2.msra.mxu0 0.0
    %2838 = vmatprep.subr.mxu0 0.0
    %2839 = vmatpush2.msra.mxu0 0.0
    %2840 = vmatprep.subr.mxu0 0.0
    %2841 = vmatpush2.msra.mxu0 0.0
    %2842 = vmatprep.subr.mxu0 0.0
    %2843 = vmatpush2.msra.mxu0 0.0
    %2844 = vmatprep.subr.mxu0 0.0
    %2845 = vmatpush2.msra.mxu0 0.0
    %2846 = vmatprep.subr.mxu0 0.0
    %2847 = vmatpush2.msra.mxu0 0.0
    %2848 = vmatprep.subr.mxu0 0.0
    %2849 = vmatpush2.msra.mxu0 0.0
    %2850 = vmatprep.subr.mxu0 0.0
    %2851 = vmatpush2.msra.mxu0 0.0
    %2852 = vmatprep.subr.mxu0 0.0
    %2853 = vmatpush2.msra.mxu0 0.0
    %2854 = vmatprep.mubr.f32.mxu0 0.0
    %2855 = vmatmul.mubr.f32.gmra.mxu0 %v2788
    %v2856 = vpop.f32.mrf.mxu0
    %v2857 = vadd.f32 0.0, %v2856
    %v2858 = vpop.f32.mrf.mxu0
    %2859 = vdwg.mxu0
    %v2861 = vsel %vm2479, %v2564, 0
    %2863 = vmatprep.subr.mxu0 0.0
    %2864 = vmatpush1.msra.mxu0 0.0
    %2865 = vmatprep.subr.mxu0 0.0
    %2866 = vmatpush1.msra.mxu0 0.0
    %2867 = vmatprep.subr.mxu0 0.0
    %2868 = vmatpush1.msra.mxu0 0.0
    %2869 = vmatprep.subr.mxu0 0.0
    %2870 = vmatpush1.msra.mxu0 0.0
    %2871 = vmatprep.subr.mxu0 0.0
    %2872 = vmatpush1.msra.mxu0 0.0
    %2873 = vmatprep.subr.mxu0 0.0
    %2874 = vmatpush1.msra.mxu0 0.0
    %2875 = vmatprep.subr.mxu0 0.0
    %2876 = vmatpush1.msra.mxu0 0.0
    %2877 = vmatprep.subr.mxu0 0.0
    %2878 = vmatpush1.msra.mxu0 0.0
    %2879 = vmatprep.subr.mxu0 0.0
    %2880 = vmatpush1.msra.mxu0 0.0
    %2881 = vmatprep.subr.mxu0 0.0
    %2882 = vmatpush1.msra.mxu0 0.0
    %2883 = vmatprep.subr.mxu0 0.0
    %2884 = vmatpush1.msra.mxu0 0.0
    %2885 = vmatprep.subr.mxu0 0.0
    %2886 = vmatpush1.msra.mxu0 0.0
    %2887 = vmatprep.subr.mxu0 0.0
    %2888 = vmatpush1.msra.mxu0 0.0
    %2889 = vmatprep.subr.mxu0 0.0
    %2890 = vmatpush1.msra.mxu0 0.0
    %2891 = vmatprep.subr.mxu0 0.0
    %2892 = vmatpush1.msra.mxu0 0.0
    %2893 = vmatprep.subr.mxu0 0.0
    %2894 = vmatpush1.msra.mxu0 %v1865
    %2895 = vmatprep.subr.mxu0 0.0
    %2896 = vmatpush2.msra.mxu0 0.0
    %2897 = vmatprep.subr.mxu0 0.0
    %2898 = vmatpush2.msra.mxu0 0.0
    %2899 = vmatprep.subr.mxu0 0.0
    %2900 = vmatpush2.msra.mxu0 0.0
    %2901 = vmatprep.subr.mxu0 0.0
    %2902 = vmatpush2.msra.mxu0 0.0
    %2903 = vmatprep.subr.mxu0 0.0
    %2904 = vmatpush2.msra.mxu0 0.0
    %2905 = vmatprep.subr.mxu0 0.0
    %2906 = vmatpush2.msra.mxu0 0.0
    %2907 = vmatprep.subr.mxu0 0.0
    %2908 = vmatpush2.msra.mxu0 0.0
    %2909 = vmatprep.subr.mxu0 0.0
    %2910 = vmatpush2.msra.mxu0 0.0
    %2911 = vmatprep.subr.mxu0 0.0
    %2912 = vmatpush2.msra.mxu0 0.0
    %2913 = vmatprep.subr.mxu0 0.0
    %2914 = vmatpush2.msra.mxu0 0.0
    %2915 = vmatprep.subr.mxu0 0.0
    %2916 = vmatpush2.msra.mxu0 0.0
    %2917 = vmatprep.subr.mxu0 0.0
    %2918 = vmatpush2.msra.mxu0 0.0
    %2919 = vmatprep.subr.mxu0 0.0
    %2920 = vmatpush2.msra.mxu0 0.0
    %2921 = vmatprep.subr.mxu0 0.0
    %2922 = vmatpush2.msra.mxu0 0.0
    %2923 = vmatprep.subr.mxu0 0.0
    %2924 = vmatpush2.msra.mxu0 0.0
    %2925 = vmatprep.subr.mxu0 0.0
    %2926 = vmatpush2.msra.mxu0 0.0
    %2927 = vmatprep.mubr.f32.mxu0 0.0
    %2928 = vmatmul.mubr.f32.gmra.mxu0 %v2861
    %v2929 = vpop.f32.mrf.mxu0
    %v2930 = vadd.f32 0.0, %v2929
    %v2931 = vpop.f32.mrf.mxu0
    %2932 = vdwg.mxu0
    %v2934 = vsel %vm2479, %v2565, 0
    %2936 = vmatprep.subr.mxu0 0.0
    %2937 = vmatpush1.msra.mxu0 0.0
    %2938 = vmatprep.subr.mxu0 0.0
    %2939 = vmatpush1.msra.mxu0 0.0
    %2940 = vmatprep.subr.mxu0 0.0
    %2941 = vmatpush1.msra.mxu0 0.0
    %2942 = vmatprep.subr.mxu0 0.0
    %2943 = vmatpush1.msra.mxu0 0.0
    %2944 = vmatprep.subr.mxu0 0.0
    %2945 = vmatpush1.msra.mxu0 0.0
    %2946 = vmatprep.subr.mxu0 0.0
    %2947 = vmatpush1.msra.mxu0 0.0
    %2948 = vmatprep.subr.mxu0 0.0
    %2949 = vmatpush1.msra.mxu0 0.0
    %2950 = vmatprep.subr.mxu0 0.0
    %2951 = vmatpush1.msra.mxu0 0.0
    %2952 = vmatprep.subr.mxu0 0.0
    %2953 = vmatpush1.msra.mxu0 0.0
    %2954 = vmatprep.subr.mxu0 0.0
    %2955 = vmatpush1.msra.mxu0 0.0
    %2956 = vmatprep.subr.mxu0 0.0
    %2957 = vmatpush1.msra.mxu0 0.0
    %2958 = vmatprep.subr.mxu0 0.0
    %2959 = vmatpush1.msra.mxu0 0.0
    %2960 = vmatprep.subr.mxu0 0.0
    %2961 = vmatpush1.msra.mxu0 0.0
    %2962 = vmatprep.subr.mxu0 0.0
    %2963 = vmatpush1.msra.mxu0 0.0
    %2964 = vmatprep.subr.mxu0 0.0
    %2965 = vmatpush1.msra.mxu0 0.0
    %2966 = vmatprep.subr.mxu0 0.0
    %2967 = vmatpush1.msra.mxu0 %v1866
    %2968 = vmatprep.subr.mxu0 0.0
    %2969 = vmatpush2.msra.mxu0 0.0
    %2970 = vmatprep.subr.mxu0 0.0
    %2971 = vmatpush2.msra.mxu0 0.0
    %2972 = vmatprep.subr.mxu0 0.0
    %2973 = vmatpush2.msra.mxu0 0.0
    %2974 = vmatprep.subr.mxu0 0.0
    %2975 = vmatpush2.msra.mxu0 0.0
    %2976 = vmatprep.subr.mxu0 0.0
    %2977 = vmatpush2.msra.mxu0 0.0
    %2978 = vmatprep.subr.mxu0 0.0
    %2979 = vmatpush2.msra.mxu0 0.0
    %2980 = vmatprep.subr.mxu0 0.0
    %2981 = vmatpush2.msra.mxu0 0.0
    %2982 = vmatprep.subr.mxu0 0.0
    %2983 = vmatpush2.msra.mxu0 0.0
    %2984 = vmatprep.subr.mxu0 0.0
    %2985 = vmatpush2.msra.mxu0 0.0
    %2986 = vmatprep.subr.mxu0 0.0
    %2987 = vmatpush2.msra.mxu0 0.0
    %2988 = vmatprep.subr.mxu0 0.0
    %2989 = vmatpush2.msra.mxu0 0.0
    %2990 = vmatprep.subr.mxu0 0.0
    %2991 = vmatpush2.msra.mxu0 0.0
    %2992 = vmatprep.subr.mxu0 0.0
    %2993 = vmatpush2.msra.mxu0 0.0
    %2994 = vmatprep.subr.mxu0 0.0
    %2995 = vmatpush2.msra.mxu0 0.0
    %2996 = vmatprep.subr.mxu0 0.0
    %2997 = vmatpush2.msra.mxu0 0.0
    %2998 = vmatprep.subr.mxu0 0.0
    %2999 = vmatpush2.msra.mxu0 0.0
    %3000 = vmatprep.mubr.f32.mxu0 0.0
    %3001 = vmatmul.mubr.f32.gmra.mxu0 %v2934
    %v3002 = vpop.f32.mrf.mxu0
    %v3003 = vadd.f32 0.0, %v3002
    %v3004 = vpop.f32.mrf.mxu0
    %3005 = vdwg.mxu0
    %v3007 = vsel %vm2479, %v2566, 0
    %3009 = vmatprep.subr.mxu0 0.0
    %3010 = vmatpush1.msra.mxu0 0.0
    %3011 = vmatprep.subr.mxu0 0.0
    %3012 = vmatpush1.msra.mxu0 0.0
    %3013 = vmatprep.subr.mxu0 0.0
    %3014 = vmatpush1.msra.mxu0 0.0
    %3015 = vmatprep.subr.mxu0 0.0
    %3016 = vmatpush1.msra.mxu0 0.0
    %3017 = vmatprep.subr.mxu0 0.0
    %3018 = vmatpush1.msra.mxu0 0.0
    %3019 = vmatprep.subr.mxu0 0.0
    %3020 = vmatpush1.msra.mxu0 0.0
    %3021 = vmatprep.subr.mxu0 0.0
    %3022 = vmatpush1.msra.mxu0 0.0
    %3023 = vmatprep.subr.mxu0 0.0
    %3024 = vmatpush1.msra.mxu0 0.0
    %3025 = vmatprep.subr.mxu0 0.0
    %3026 = vmatpush1.msra.mxu0 0.0
    %3027 = vmatprep.subr.mxu0 0.0
    %3028 = vmatpush1.msra.mxu0 0.0
    %3029 = vmatprep.subr.mxu0 0.0
    %3030 = vmatpush1.msra.mxu0 0.0
    %3031 = vmatprep.subr.mxu0 0.0
    %3032 = vmatpush1.msra.mxu0 0.0
    %3033 = vmatprep.subr.mxu0 0.0
    %3034 = vmatpush1.msra.mxu0 0.0
    %3035 = vmatprep.subr.mxu0 0.0
    %3036 = vmatpush1.msra.mxu0 0.0
    %3037 = vmatprep.subr.mxu0 0.0
    %3038 = vmatpush1.msra.mxu0 0.0
    %3039 = vmatprep.subr.mxu0 0.0
    %3040 = vmatpush1.msra.mxu0 %v1867
    %3041 = vmatprep.subr.mxu0 0.0
    %3042 = vmatpush2.msra.mxu0 0.0
    %3043 = vmatprep.subr.mxu0 0.0
    %3044 = vmatpush2.msra.mxu0 0.0
    %3045 = vmatprep.subr.mxu0 0.0
    %3046 = vmatpush2.msra.mxu0 0.0
    %3047 = vmatprep.subr.mxu0 0.0
    %3048 = vmatpush2.msra.mxu0 0.0
    %3049 = vmatprep.subr.mxu0 0.0
    %3050 = vmatpush2.msra.mxu0 0.0
    %3051 = vmatprep.subr.mxu0 0.0
    %3052 = vmatpush2.msra.mxu0 0.0
    %3053 = vmatprep.subr.mxu0 0.0
    %3054 = vmatpush2.msra.mxu0 0.0
    %3055 = vmatprep.subr.mxu0 0.0
    %3056 = vmatpush2.msra.mxu0 0.0
    %3057 = vmatprep.subr.mxu0 0.0
    %3058 = vmatpush2.msra.mxu0 0.0
    %3059 = vmatprep.subr.mxu0 0.0
    %3060 = vmatpush2.msra.mxu0 0.0
    %3061 = vmatprep.subr.mxu0 0.0
    %3062 = vmatpush2.msra.mxu0 0.0
    %3063 = vmatprep.subr.mxu0 0.0
    %3064 = vmatpush2.msra.mxu0 0.0
    %3065 = vmatprep.subr.mxu0 0.0
    %3066 = vmatpush2.msra.mxu0 0.0
    %3067 = vmatprep.subr.mxu0 0.0
    %3068 = vmatpush2.msra.mxu0 0.0
    %3069 = vmatprep.subr.mxu0 0.0
    %3070 = vmatpush2.msra.mxu0 0.0
    %3071 = vmatprep.subr.mxu0 0.0
    %3072 = vmatpush2.msra.mxu0 0.0
    %3073 = vmatprep.mubr.f32.mxu0 0.0
    %3074 = vmatmul.mubr.f32.gmra.mxu0 %v3007
    %v3075 = vpop.f32.mrf.mxu0
    %v3076 = vadd.f32 0.0, %v3075
    %v3077 = vpop.f32.mrf.mxu0
    %3078 = vdwg.mxu0
    %v3080 = vsel %vm2479, %v2567, 0
    %3082 = vmatprep.subr.mxu0 0.0
    %3083 = vmatpush1.msra.mxu0 0.0
    %3084 = vmatprep.subr.mxu0 0.0
    %3085 = vmatpush1.msra.mxu0 0.0
    %3086 = vmatprep.subr.mxu0 0.0
    %3087 = vmatpush1.msra.mxu0 0.0
    %3088 = vmatprep.subr.mxu0 0.0
    %3089 = vmatpush1.msra.mxu0 0.0
    %3090 = vmatprep.subr.mxu0 0.0
    %3091 = vmatpush1.msra.mxu0 0.0
    %3092 = vmatprep.subr.mxu0 0.0
    %3093 = vmatpush1.msra.mxu0 0.0
    %3094 = vmatprep.subr.mxu0 0.0
    %3095 = vmatpush1.msra.mxu0 0.0
    %3096 = vmatprep.subr.mxu0 0.0
    %3097 = vmatpush1.msra.mxu0 0.0
    %3098 = vmatprep.subr.mxu0 0.0
    %3099 = vmatpush1.msra.mxu0 0.0
    %3100 = vmatprep.subr.mxu0 0.0
    %3101 = vmatpush1.msra.mxu0 0.0
    %3102 = vmatprep.subr.mxu0 0.0
    %3103 = vmatpush1.msra.mxu0 0.0
    %3104 = vmatprep.subr.mxu0 0.0
    %3105 = vmatpush1.msra.mxu0 0.0
    %3106 = vmatprep.subr.mxu0 0.0
    %3107 = vmatpush1.msra.mxu0 0.0
    %3108 = vmatprep.subr.mxu0 0.0
    %3109 = vmatpush1.msra.mxu0 0.0
    %3110 = vmatprep.subr.mxu0 0.0
    %3111 = vmatpush1.msra.mxu0 0.0
    %3112 = vmatprep.subr.mxu0 0.0
    %3113 = vmatpush1.msra.mxu0 %v1868
    %3114 = vmatprep.subr.mxu0 0.0
    %3115 = vmatpush2.msra.mxu0 0.0
    %3116 = vmatprep.subr.mxu0 0.0
    %3117 = vmatpush2.msra.mxu0 0.0
    %3118 = vmatprep.subr.mxu0 0.0
    %3119 = vmatpush2.msra.mxu0 0.0
    %3120 = vmatprep.subr.mxu0 0.0
    %3121 = vmatpush2.msra.mxu0 0.0
    %3122 = vmatprep.subr.mxu0 0.0
    %3123 = vmatpush2.msra.mxu0 0.0
    %3124 = vmatprep.subr.mxu0 0.0
    %3125 = vmatpush2.msra.mxu0 0.0
    %3126 = vmatprep.subr.mxu0 0.0
    %3127 = vmatpush2.msra.mxu0 0.0
    %3128 = vmatprep.subr.mxu0 0.0
    %3129 = vmatpush2.msra.mxu0 0.0
    %3130 = vmatprep.subr.mxu0 0.0
    %3131 = vmatpush2.msra.mxu0 0.0
    %3132 = vmatprep.subr.mxu0 0.0
    %3133 = vmatpush2.msra.mxu0 0.0
    %3134 = vmatprep.subr.mxu0 0.0
    %3135 = vmatpush2.msra.mxu0 0.0
    %3136 = vmatprep.subr.mxu0 0.0
    %3137 = vmatpush2.msra.mxu0 0.0
    %3138 = vmatprep.subr.mxu0 0.0
    %3139 = vmatpush2.msra.mxu0 0.0
    %3140 = vmatprep.subr.mxu0 0.0
    %3141 = vmatpush2.msra.mxu0 0.0
    %3142 = vmatprep.subr.mxu0 0.0
    %3143 = vmatpush2.msra.mxu0 0.0
    %3144 = vmatprep.subr.mxu0 0.0
    %3145 = vmatpush2.msra.mxu0 0.0
    %3146 = vmatprep.mubr.f32.mxu0 0.0
    %3147 = vmatmul.mubr.f32.gmra.mxu0 %v3080
    %v3148 = vpop.f32.mrf.mxu0
    %v3149 = vadd.f32 0.0, %v3148
    %v3150 = vpop.f32.mrf.mxu0
    %3151 = vdwg.mxu0
    %v3152 = vld [vmem:[%s4] sm:$0xff]
    %v3153 = vld [vmem:[%s4 + $0x8] sm:$0xff]
    %v3154 = vld [vmem:[%s4 + $0x10] sm:$0xff]
    %v3155 = vld [vmem:[%s4 + $0x18] sm:$0xff]
    %v3156 = vld [vmem:[%s4 + $0x20] sm:$0xff]
    %v3157 = vld [vmem:[%s4 + $0x28] sm:$0xff]
    %v3158 = vld [vmem:[%s4 + $0x30] sm:$0xff]
    %v3159 = vld [vmem:[%s4 + $0x38] sm:$0xff]
    %v3161 = vsel %vm1870, %v2638, 0
    %3163 = vmatprep.subr.mxu0 0.0
    %3164 = vmatpush1.msra.mxu0 0.0
    %3165 = vmatprep.subr.mxu0 0.0
    %3166 = vmatpush1.msra.mxu0 0.0
    %3167 = vmatprep.subr.mxu0 0.0
    %3168 = vmatpush1.msra.mxu0 0.0
    %3169 = vmatprep.subr.mxu0 0.0
    %3170 = vmatpush1.msra.mxu0 0.0
    %3171 = vmatprep.subr.mxu0 0.0
    %3172 = vmatpush1.msra.mxu0 0.0
    %3173 = vmatprep.subr.mxu0 0.0
    %3174 = vmatpush1.msra.mxu0 0.0
    %3175 = vmatprep.subr.mxu0 0.0
    %3176 = vmatpush1.msra.mxu0 0.0
    %3177 = vmatprep.subr.mxu0 0.0
    %3178 = vmatpush1.msra.mxu0 0.0
    %3179 = vmatprep.subr.mxu0 0.0
    %3180 = vmatpush1.msra.mxu0 0.0
    %3181 = vmatprep.subr.mxu0 0.0
    %3182 = vmatpush1.msra.mxu0 0.0
    %3183 = vmatprep.subr.mxu0 0.0
    %3184 = vmatpush1.msra.mxu0 0.0
    %3185 = vmatprep.subr.mxu0 0.0
    %3186 = vmatpush1.msra.mxu0 0.0
    %3187 = vmatprep.subr.mxu0 0.0
    %3188 = vmatpush1.msra.mxu0 0.0
    %3189 = vmatprep.subr.mxu0 0.0
    %3190 = vmatpush1.msra.mxu0 0.0
    %3191 = vmatprep.subr.mxu0 0.0
    %3192 = vmatpush1.msra.mxu0 %v3153
    %3193 = vmatprep.subr.mxu0 0.0
    %3194 = vmatpush1.msra.mxu0 %v3152
    %3195 = vmatprep.subr.mxu0 0.0
    %3196 = vmatpush2.msra.mxu0 0.0
    %3197 = vmatprep.subr.mxu0 0.0
    %3198 = vmatpush2.msra.mxu0 0.0
    %3199 = vmatprep.subr.mxu0 0.0
    %3200 = vmatpush2.msra.mxu0 0.0
    %3201 = vmatprep.subr.mxu0 0.0
    %3202 = vmatpush2.msra.mxu0 0.0
    %3203 = vmatprep.subr.mxu0 0.0
    %3204 = vmatpush2.msra.mxu0 0.0
    %3205 = vmatprep.subr.mxu0 0.0
    %3206 = vmatpush2.msra.mxu0 0.0
    %3207 = vmatprep.subr.mxu0 0.0
    %3208 = vmatpush2.msra.mxu0 0.0
    %3209 = vmatprep.subr.mxu0 0.0
    %3210 = vmatpush2.msra.mxu0 0.0
    %3211 = vmatprep.subr.mxu0 0.0
    %3212 = vmatpush2.msra.mxu0 0.0
    %3213 = vmatprep.subr.mxu0 0.0
    %3214 = vmatpush2.msra.mxu0 0.0
    %3215 = vmatprep.subr.mxu0 0.0
    %3216 = vmatpush2.msra.mxu0 0.0
    %3217 = vmatprep.subr.mxu0 0.0
    %3218 = vmatpush2.msra.mxu0 0.0
    %3219 = vmatprep.subr.mxu0 0.0
    %3220 = vmatpush2.msra.mxu0 0.0
    %3221 = vmatprep.subr.mxu0 0.0
    %3222 = vmatpush2.msra.mxu0 0.0
    %3223 = vmatprep.subr.mxu0 0.0
    %3224 = vmatpush2.msra.mxu0 0.0
    %3225 = vmatprep.subr.mxu0 0.0
    %3226 = vmatpush2.msra.mxu0 0.0
    %3227 = vmatprep.mubr.f32.mxu0 0.0
    %3228 = vmatmul.mubr.f32.gmra.mxu0 %v3161
    %v3229 = vpop.f32.mrf.mxu0
    %v3230 = vadd.f32 0.0, %v3229
    %v3231 = vpop.f32.mrf.mxu0
    %3232 = vdwg.mxu0
    %v3234 = vsel %vm1870, %v2711, 0
    %3236 = vmatprep.subr.mxu0 0.0
    %3237 = vmatpush1.msra.mxu0 0.0
    %3238 = vmatprep.subr.mxu0 0.0
    %3239 = vmatpush1.msra.mxu0 0.0
    %3240 = vmatprep.subr.mxu0 0.0
    %3241 = vmatpush1.msra.mxu0 0.0
    %3242 = vmatprep.subr.mxu0 0.0
    %3243 = vmatpush1.msra.mxu0 0.0
    %3244 = vmatprep.subr.mxu0 0.0
    %3245 = vmatpush1.msra.mxu0 0.0
    %3246 = vmatprep.subr.mxu0 0.0
    %3247 = vmatpush1.msra.mxu0 0.0
    %3248 = vmatprep.subr.mxu0 0.0
    %3249 = vmatpush1.msra.mxu0 0.0
    %3250 = vmatprep.subr.mxu0 0.0
    %3251 = vmatpush1.msra.mxu0 0.0
    %3252 = vmatprep.subr.mxu0 0.0
    %3253 = vmatpush1.msra.mxu0 0.0
    %3254 = vmatprep.subr.mxu0 0.0
    %3255 = vmatpush1.msra.mxu0 0.0
    %3256 = vmatprep.subr.mxu0 0.0
    %3257 = vmatpush1.msra.mxu0 0.0
    %3258 = vmatprep.subr.mxu0 0.0
    %3259 = vmatpush1.msra.mxu0 0.0
    %3260 = vmatprep.subr.mxu0 0.0
    %3261 = vmatpush1.msra.mxu0 0.0
    %3262 = vmatprep.subr.mxu0 0.0
    %3263 = vmatpush1.msra.mxu0 0.0
    %3264 = vmatprep.subr.mxu0 0.0
    %3265 = vmatpush1.msra.mxu0 %v3155
    %3266 = vmatprep.subr.mxu0 0.0
    %3267 = vmatpush1.msra.mxu0 %v3154
    %3268 = vmatprep.subr.mxu0 0.0
    %3269 = vmatpush2.msra.mxu0 0.0
    %3270 = vmatprep.subr.mxu0 0.0
    %3271 = vmatpush2.msra.mxu0 0.0
    %3272 = vmatprep.subr.mxu0 0.0
    %3273 = vmatpush2.msra.mxu0 0.0
    %3274 = vmatprep.subr.mxu0 0.0
    %3275 = vmatpush2.msra.mxu0 0.0
    %3276 = vmatprep.subr.mxu0 0.0
    %3277 = vmatpush2.msra.mxu0 0.0
    %3278 = vmatprep.subr.mxu0 0.0
    %3279 = vmatpush2.msra.mxu0 0.0
    %3280 = vmatprep.subr.mxu0 0.0
    %3281 = vmatpush2.msra.mxu0 0.0
    %3282 = vmatprep.subr.mxu0 0.0
    %3283 = vmatpush2.msra.mxu0 0.0
    %3284 = vmatprep.subr.mxu0 0.0
    %3285 = vmatpush2.msra.mxu0 0.0
    %3286 = vmatprep.subr.mxu0 0.0
    %3287 = vmatpush2.msra.mxu0 0.0
    %3288 = vmatprep.subr.mxu0 0.0
    %3289 = vmatpush2.msra.mxu0 0.0
    %3290 = vmatprep.subr.mxu0 0.0
    %3291 = vmatpush2.msra.mxu0 0.0
    %3292 = vmatprep.subr.mxu0 0.0
    %3293 = vmatpush2.msra.mxu0 0.0
    %3294 = vmatprep.subr.mxu0 0.0
    %3295 = vmatpush2.msra.mxu0 0.0
    %3296 = vmatprep.subr.mxu0 0.0
    %3297 = vmatpush2.msra.mxu0 0.0
    %3298 = vmatprep.subr.mxu0 0.0
    %3299 = vmatpush2.msra.mxu0 0.0
    %3300 = vmatprep.mubr.f32.mxu0 0.0
    %3301 = vmatmul.mubr.f32.gmra.mxu0 %v3234
    %v3302 = vpop.f32.mrf.mxu0
    %v3303 = vadd.f32 0.0, %v3302
    %v3304 = vpop.f32.mrf.mxu0
    %3305 = vdwg.mxu0
    %v3307 = vsel %vm1870, %v2784, 0
    %3309 = vmatprep.subr.mxu0 0.0
    %3310 = vmatpush1.msra.mxu0 0.0
    %3311 = vmatprep.subr.mxu0 0.0
    %3312 = vmatpush1.msra.mxu0 0.0
    %3313 = vmatprep.subr.mxu0 0.0
    %3314 = vmatpush1.msra.mxu0 0.0
    %3315 = vmatprep.subr.mxu0 0.0
    %3316 = vmatpush1.msra.mxu0 0.0
    %3317 = vmatprep.subr.mxu0 0.0
    %3318 = vmatpush1.msra.mxu0 0.0
    %3319 = vmatprep.subr.mxu0 0.0
    %3320 = vmatpush1.msra.mxu0 0.0
    %3321 = vmatprep.subr.mxu0 0.0
    %3322 = vmatpush1.msra.mxu0 0.0
    %3323 = vmatprep.subr.mxu0 0.0
    %3324 = vmatpush1.msra.mxu0 0.0
    %3325 = vmatprep.subr.mxu0 0.0
    %3326 = vmatpush1.msra.mxu0 0.0
    %3327 = vmatprep.subr.mxu0 0.0
    %3328 = vmatpush1.msra.mxu0 0.0
    %3329 = vmatprep.subr.mxu0 0.0
    %3330 = vmatpush1.msra.mxu0 0.0
    %3331 = vmatprep.subr.mxu0 0.0
    %3332 = vmatpush1.msra.mxu0 0.0
    %3333 = vmatprep.subr.mxu0 0.0
    %3334 = vmatpush1.msra.mxu0 0.0
    %3335 = vmatprep.subr.mxu0 0.0
    %3336 = vmatpush1.msra.mxu0 0.0
    %3337 = vmatprep.subr.mxu0 0.0
    %3338 = vmatpush1.msra.mxu0 %v3157
    %3339 = vmatprep.subr.mxu0 0.0
    %3340 = vmatpush1.msra.mxu0 %v3156
    %3341 = vmatprep.subr.mxu0 0.0
    %3342 = vmatpush2.msra.mxu0 0.0
    %3343 = vmatprep.subr.mxu0 0.0
    %3344 = vmatpush2.msra.mxu0 0.0
    %3345 = vmatprep.subr.mxu0 0.0
    %3346 = vmatpush2.msra.mxu0 0.0
    %3347 = vmatprep.subr.mxu0 0.0
    %3348 = vmatpush2.msra.mxu0 0.0
    %3349 = vmatprep.subr.mxu0 0.0
    %3350 = vmatpush2.msra.mxu0 0.0
    %3351 = vmatprep.subr.mxu0 0.0
    %3352 = vmatpush2.msra.mxu0 0.0
    %3353 = vmatprep.subr.mxu0 0.0
    %3354 = vmatpush2.msra.mxu0 0.0
    %3355 = vmatprep.subr.mxu0 0.0
    %3356 = vmatpush2.msra.mxu0 0.0
    %3357 = vmatprep.subr.mxu0 0.0
    %3358 = vmatpush2.msra.mxu0 0.0
    %3359 = vmatprep.subr.mxu0 0.0
    %3360 = vmatpush2.msra.mxu0 0.0
    %3361 = vmatprep.subr.mxu0 0.0
    %3362 = vmatpush2.msra.mxu0 0.0
    %3363 = vmatprep.subr.mxu0 0.0
    %3364 = vmatpush2.msra.mxu0 0.0
    %3365 = vmatprep.subr.mxu0 0.0
    %3366 = vmatpush2.msra.mxu0 0.0
    %3367 = vmatprep.subr.mxu0 0.0
    %3368 = vmatpush2.msra.mxu0 0.0
    %3369 = vmatprep.subr.mxu0 0.0
    %3370 = vmatpush2.msra.mxu0 0.0
    %3371 = vmatprep.subr.mxu0 0.0
    %3372 = vmatpush2.msra.mxu0 0.0
    %3373 = vmatprep.mubr.f32.mxu0 0.0
    %3374 = vmatmul.mubr.f32.gmra.mxu0 %v3307
    %v3375 = vpop.f32.mrf.mxu0
    %v3376 = vadd.f32 0.0, %v3375
    %v3377 = vpop.f32.mrf.mxu0
    %3378 = vdwg.mxu0
    %v3380 = vsel %vm1870, %v2857, 0
    %3382 = vmatprep.subr.mxu0 0.0
    %3383 = vmatpush1.msra.mxu0 0.0
    %3384 = vmatprep.subr.mxu0 0.0
    %3385 = vmatpush1.msra.mxu0 0.0
    %3386 = vmatprep.subr.mxu0 0.0
    %3387 = vmatpush1.msra.mxu0 0.0
    %3388 = vmatprep.subr.mxu0 0.0
    %3389 = vmatpush1.msra.mxu0 0.0
    %3390 = vmatprep.subr.mxu0 0.0
    %3391 = vmatpush1.msra.mxu0 0.0
    %3392 = vmatprep.subr.mxu0 0.0
    %3393 = vmatpush1.msra.mxu0 0.0
    %3394 = vmatprep.subr.mxu0 0.0
    %3395 = vmatpush1.msra.mxu0 0.0
    %3396 = vmatprep.subr.mxu0 0.0
    %3397 = vmatpush1.msra.mxu0 0.0
    %3398 = vmatprep.subr.mxu0 0.0
    %3399 = vmatpush1.msra.mxu0 0.0
    %3400 = vmatprep.subr.mxu0 0.0
    %3401 = vmatpush1.msra.mxu0 0.0
    %3402 = vmatprep.subr.mxu0 0.0
    %3403 = vmatpush1.msra.mxu0 0.0
    %3404 = vmatprep.subr.mxu0 0.0
    %3405 = vmatpush1.msra.mxu0 0.0
    %3406 = vmatprep.subr.mxu0 0.0
    %3407 = vmatpush1.msra.mxu0 0.0
    %3408 = vmatprep.subr.mxu0 0.0
    %3409 = vmatpush1.msra.mxu0 0.0
    %3410 = vmatprep.subr.mxu0 0.0
    %3411 = vmatpush1.msra.mxu0 %v3159
    %3412 = vmatprep.subr.mxu0 0.0
    %3413 = vmatpush1.msra.mxu0 %v3158
    %3414 = vmatprep.subr.mxu0 0.0
    %3415 = vmatpush2.msra.mxu0 0.0
    %3416 = vmatprep.subr.mxu0 0.0
    %3417 = vmatpush2.msra.mxu0 0.0
    %3418 = vmatprep.subr.mxu0 0.0
    %3419 = vmatpush2.msra.mxu0 0.0
    %3420 = vmatprep.subr.mxu0 0.0
    %3421 = vmatpush2.msra.mxu0 0.0
    %3422 = vmatprep.subr.mxu0 0.0
    %3423 = vmatpush2.msra.mxu0 0.0
    %3424 = vmatprep.subr.mxu0 0.0
    %3425 = vmatpush2.msra.mxu0 0.0
    %3426 = vmatprep.subr.mxu0 0.0
    %3427 = vmatpush2.msra.mxu0 0.0
    %3428 = vmatprep.subr.mxu0 0.0
    %3429 = vmatpush2.msra.mxu0 0.0
    %3430 = vmatprep.subr.mxu0 0.0
    %3431 = vmatpush2.msra.mxu0 0.0
    %3432 = vmatprep.subr.mxu0 0.0
    %3433 = vmatpush2.msra.mxu0 0.0
    %3434 = vmatprep.subr.mxu0 0.0
    %3435 = vmatpush2.msra.mxu0 0.0
    %3436 = vmatprep.subr.mxu0 0.0
    %3437 = vmatpush2.msra.mxu0 0.0
    %3438 = vmatprep.subr.mxu0 0.0
    %3439 = vmatpush2.msra.mxu0 0.0
    %3440 = vmatprep.subr.mxu0 0.0
    %3441 = vmatpush2.msra.mxu0 0.0
    %3442 = vmatprep.subr.mxu0 0.0
    %3443 = vmatpush2.msra.mxu0 0.0
    %3444 = vmatprep.subr.mxu0 0.0
    %3445 = vmatpush2.msra.mxu0 0.0
    %3446 = vmatprep.mubr.f32.mxu0 0.0
    %3447 = vmatmul.mubr.f32.gmra.mxu0 %v3380
    %v3448 = vpop.f32.mrf.mxu0
    %v3449 = vadd.f32 0.0, %v3448
    %v3450 = vpop.f32.mrf.mxu0
    %3451 = vdwg.mxu0
    %v3453 = vsel %vm1870, %v2930, 0
    %3455 = vmatprep.subr.mxu0 0.0
    %3456 = vmatpush1.msra.mxu0 0.0
    %3457 = vmatprep.subr.mxu0 0.0
    %3458 = vmatpush1.msra.mxu0 0.0
    %3459 = vmatprep.subr.mxu0 0.0
    %3460 = vmatpush1.msra.mxu0 0.0
    %3461 = vmatprep.subr.mxu0 0.0
    %3462 = vmatpush1.msra.mxu0 0.0
    %3463 = vmatprep.subr.mxu0 0.0
    %3464 = vmatpush1.msra.mxu0 0.0
    %3465 = vmatprep.subr.mxu0 0.0
    %3466 = vmatpush1.msra.mxu0 0.0
    %3467 = vmatprep.subr.mxu0 0.0
    %3468 = vmatpush1.msra.mxu0 0.0
    %3469 = vmatprep.subr.mxu0 0.0
    %3470 = vmatpush1.msra.mxu0 0.0
    %3471 = vmatprep.subr.mxu0 0.0
    %3472 = vmatpush1.msra.mxu0 0.0
    %3473 = vmatprep.subr.mxu0 0.0
    %3474 = vmatpush1.msra.mxu0 0.0
    %3475 = vmatprep.subr.mxu0 0.0
    %3476 = vmatpush1.msra.mxu0 0.0
    %3477 = vmatprep.subr.mxu0 0.0
    %3478 = vmatpush1.msra.mxu0 0.0
    %3479 = vmatprep.subr.mxu0 0.0
    %3480 = vmatpush1.msra.mxu0 0.0
    %3481 = vmatprep.subr.mxu0 0.0
    %3482 = vmatpush1.msra.mxu0 0.0
    %3483 = vmatprep.subr.mxu0 0.0
    %3484 = vmatpush1.msra.mxu0 %v3153
    %3485 = vmatprep.subr.mxu0 0.0
    %3486 = vmatpush1.msra.mxu0 %v3152
    %3487 = vmatprep.subr.mxu0 0.0
    %3488 = vmatpush2.msra.mxu0 0.0
    %3489 = vmatprep.subr.mxu0 0.0
    %3490 = vmatpush2.msra.mxu0 0.0
    %3491 = vmatprep.subr.mxu0 0.0
    %3492 = vmatpush2.msra.mxu0 0.0
    %3493 = vmatprep.subr.mxu0 0.0
    %3494 = vmatpush2.msra.mxu0 0.0
    %3495 = vmatprep.subr.mxu0 0.0
    %3496 = vmatpush2.msra.mxu0 0.0
    %3497 = vmatprep.subr.mxu0 0.0
    %3498 = vmatpush2.msra.mxu0 0.0
    %3499 = vmatprep.subr.mxu0 0.0
    %3500 = vmatpush2.msra.mxu0 0.0
    %3501 = vmatprep.subr.mxu0 0.0
    %3502 = vmatpush2.msra.mxu0 0.0
    %3503 = vmatprep.subr.mxu0 0.0
    %3504 = vmatpush2.msra.mxu0 0.0
    %3505 = vmatprep.subr.mxu0 0.0
    %3506 = vmatpush2.msra.mxu0 0.0
    %3507 = vmatprep.subr.mxu0 0.0
    %3508 = vmatpush2.msra.mxu0 0.0
    %3509 = vmatprep.subr.mxu0 0.0
    %3510 = vmatpush2.msra.mxu0 0.0
    %3511 = vmatprep.subr.mxu0 0.0
    %3512 = vmatpush2.msra.mxu0 0.0
    %3513 = vmatprep.subr.mxu0 0.0
    %3514 = vmatpush2.msra.mxu0 0.0
    %3515 = vmatprep.subr.mxu0 0.0
    %3516 = vmatpush2.msra.mxu0 0.0
    %3517 = vmatprep.subr.mxu0 0.0
    %3518 = vmatpush2.msra.mxu0 0.0
    %3519 = vmatprep.mubr.f32.mxu0 0.0
    %3520 = vmatmul.mubr.f32.gmra.mxu0 %v3453
    %v3521 = vpop.f32.mrf.mxu0
    %v3522 = vadd.f32 0.0, %v3521
    %v3523 = vpop.f32.mrf.mxu0
    %3524 = vdwg.mxu0
    %v3526 = vsel %vm1870, %v3003, 0
    %3528 = vmatprep.subr.mxu0 0.0
    %3529 = vmatpush1.msra.mxu0 0.0
    %3530 = vmatprep.subr.mxu0 0.0
    %3531 = vmatpush1.msra.mxu0 0.0
    %3532 = vmatprep.subr.mxu0 0.0
    %3533 = vmatpush1.msra.mxu0 0.0
    %3534 = vmatprep.subr.mxu0 0.0
    %3535 = vmatpush1.msra.mxu0 0.0
    %3536 = vmatprep.subr.mxu0 0.0
    %3537 = vmatpush1.msra.mxu0 0.0
    %3538 = vmatprep.subr.mxu0 0.0
    %3539 = vmatpush1.msra.mxu0 0.0
    %3540 = vmatprep.subr.mxu0 0.0
    %3541 = vmatpush1.msra.mxu0 0.0
    %3542 = vmatprep.subr.mxu0 0.0
    %3543 = vmatpush1.msra.mxu0 0.0
    %3544 = vmatprep.subr.mxu0 0.0
    %3545 = vmatpush1.msra.mxu0 0.0
    %3546 = vmatprep.subr.mxu0 0.0
    %3547 = vmatpush1.msra.mxu0 0.0
    %3548 = vmatprep.subr.mxu0 0.0
    %3549 = vmatpush1.msra.mxu0 0.0
    %3550 = vmatprep.subr.mxu0 0.0
    %3551 = vmatpush1.msra.mxu0 0.0
    %3552 = vmatprep.subr.mxu0 0.0
    %3553 = vmatpush1.msra.mxu0 0.0
    %3554 = vmatprep.subr.mxu0 0.0
    %3555 = vmatpush1.msra.mxu0 0.0
    %3556 = vmatprep.subr.mxu0 0.0
    %3557 = vmatpush1.msra.mxu0 %v3155
    %3558 = vmatprep.subr.mxu0 0.0
    %3559 = vmatpush1.msra.mxu0 %v3154
    %3560 = vmatprep.subr.mxu0 0.0
    %3561 = vmatpush2.msra.mxu0 0.0
    %3562 = vmatprep.subr.mxu0 0.0
    %3563 = vmatpush2.msra.mxu0 0.0
    %3564 = vmatprep.subr.mxu0 0.0
    %3565 = vmatpush2.msra.mxu0 0.0
    %3566 = vmatprep.subr.mxu0 0.0
    %3567 = vmatpush2.msra.mxu0 0.0
    %3568 = vmatprep.subr.mxu0 0.0
    %3569 = vmatpush2.msra.mxu0 0.0
    %3570 = vmatprep.subr.mxu0 0.0
    %3571 = vmatpush2.msra.mxu0 0.0
    %3572 = vmatprep.subr.mxu0 0.0
    %3573 = vmatpush2.msra.mxu0 0.0
    %3574 = vmatprep.subr.mxu0 0.0
    %3575 = vmatpush2.msra.mxu0 0.0
    %3576 = vmatprep.subr.mxu0 0.0
    %3577 = vmatpush2.msra.mxu0 0.0
    %3578 = vmatprep.subr.mxu0 0.0
    %3579 = vmatpush2.msra.mxu0 0.0
    %3580 = vmatprep.subr.mxu0 0.0
    %3581 = vmatpush2.msra.mxu0 0.0
    %3582 = vmatprep.subr.mxu0 0.0
    %3583 = vmatpush2.msra.mxu0 0.0
    %3584 = vmatprep.subr.mxu0 0.0
    %3585 = vmatpush2.msra.mxu0 0.0
    %3586 = vmatprep.subr.mxu0 0.0
    %3587 = vmatpush2.msra.mxu0 0.0
    %3588 = vmatprep.subr.mxu0 0.0
    %3589 = vmatpush2.msra.mxu0 0.0
    %3590 = vmatprep.subr.mxu0 0.0
    %3591 = vmatpush2.msra.mxu0 0.0
    %3592 = vmatprep.mubr.f32.mxu0 0.0
    %3593 = vmatmul.mubr.f32.gmra.mxu0 %v3526
    %v3594 = vpop.f32.mrf.mxu0
    %v3595 = vadd.f32 0.0, %v3594
    %v3596 = vpop.f32.mrf.mxu0
    %3597 = vdwg.mxu0
    %v3599 = vsel %vm1870, %v3076, 0
    %3601 = vmatprep.subr.mxu0 0.0
    %3602 = vmatpush1.msra.mxu0 0.0
    %3603 = vmatprep.subr.mxu0 0.0
    %3604 = vmatpush1.msra.mxu0 0.0
    %3605 = vmatprep.subr.mxu0 0.0
    %3606 = vmatpush1.msra.mxu0 0.0
    %3607 = vmatprep.subr.mxu0 0.0
    %3608 = vmatpush1.msra.mxu0 0.0
    %3609 = vmatprep.subr.mxu0 0.0
    %3610 = vmatpush1.msra.mxu0 0.0
    %3611 = vmatprep.subr.mxu0 0.0
    %3612 = vmatpush1.msra.mxu0 0.0
    %3613 = vmatprep.subr.mxu0 0.0
    %3614 = vmatpush1.msra.mxu0 0.0
    %3615 = vmatprep.subr.mxu0 0.0
    %3616 = vmatpush1.msra.mxu0 0.0
    %3617 = vmatprep.subr.mxu0 0.0
    %3618 = vmatpush1.msra.mxu0 0.0
    %3619 = vmatprep.subr.mxu0 0.0
    %3620 = vmatpush1.msra.mxu0 0.0
    %3621 = vmatprep.subr.mxu0 0.0
    %3622 = vmatpush1.msra.mxu0 0.0
    %3623 = vmatprep.subr.mxu0 0.0
    %3624 = vmatpush1.msra.mxu0 0.0
    %3625 = vmatprep.subr.mxu0 0.0
    %3626 = vmatpush1.msra.mxu0 0.0
    %3627 = vmatprep.subr.mxu0 0.0
    %3628 = vmatpush1.msra.mxu0 0.0
    %3629 = vmatprep.subr.mxu0 0.0
    %3630 = vmatpush1.msra.mxu0 %v3157
    %3631 = vmatprep.subr.mxu0 0.0
    %3632 = vmatpush1.msra.mxu0 %v3156
    %3633 = vmatprep.subr.mxu0 0.0
    %3634 = vmatpush2.msra.mxu0 0.0
    %3635 = vmatprep.subr.mxu0 0.0
    %3636 = vmatpush2.msra.mxu0 0.0
    %3637 = vmatprep.subr.mxu0 0.0
    %3638 = vmatpush2.msra.mxu0 0.0
    %3639 = vmatprep.subr.mxu0 0.0
    %3640 = vmatpush2.msra.mxu0 0.0
    %3641 = vmatprep.subr.mxu0 0.0
    %3642 = vmatpush2.msra.mxu0 0.0
    %3643 = vmatprep.subr.mxu0 0.0
    %3644 = vmatpush2.msra.mxu0 0.0
    %3645 = vmatprep.subr.mxu0 0.0
    %3646 = vmatpush2.msra.mxu0 0.0
    %3647 = vmatprep.subr.mxu0 0.0
    %3648 = vmatpush2.msra.mxu0 0.0
    %3649 = vmatprep.subr.mxu0 0.0
    %3650 = vmatpush2.msra.mxu0 0.0
    %3651 = vmatprep.subr.mxu0 0.0
    %3652 = vmatpush2.msra.mxu0 0.0
    %3653 = vmatprep.subr.mxu0 0.0
    %3654 = vmatpush2.msra.mxu0 0.0
    %3655 = vmatprep.subr.mxu0 0.0
    %3656 = vmatpush2.msra.mxu0 0.0
    %3657 = vmatprep.subr.mxu0 0.0
    %3658 = vmatpush2.msra.mxu0 0.0
    %3659 = vmatprep.subr.mxu0 0.0
    %3660 = vmatpush2.msra.mxu0 0.0
    %3661 = vmatprep.subr.mxu0 0.0
    %3662 = vmatpush2.msra.mxu0 0.0
    %3663 = vmatprep.subr.mxu0 0.0
    %3664 = vmatpush2.msra.mxu0 0.0
    %3665 = vmatprep.mubr.f32.mxu0 0.0
    %3666 = vmatmul.mubr.f32.gmra.mxu0 %v3599
    %v3667 = vpop.f32.mrf.mxu0
    %v3668 = vadd.f32 0.0, %v3667
    %v3669 = vpop.f32.mrf.mxu0
    %3670 = vdwg.mxu0
    %v3672 = vsel %vm1870, %v3149, 0
    %3674 = vmatprep.subr.mxu0 0.0
    %3675 = vmatpush1.msra.mxu0 0.0
    %3676 = vmatprep.subr.mxu0 0.0
    %3677 = vmatpush1.msra.mxu0 0.0
    %3678 = vmatprep.subr.mxu0 0.0
    %3679 = vmatpush1.msra.mxu0 0.0
    %3680 = vmatprep.subr.mxu0 0.0
    %3681 = vmatpush1.msra.mxu0 0.0
    %3682 = vmatprep.subr.mxu0 0.0
    %3683 = vmatpush1.msra.mxu0 0.0
    %3684 = vmatprep.subr.mxu0 0.0
    %3685 = vmatpush1.msra.mxu0 0.0
    %3686 = vmatprep.subr.mxu0 0.0
    %3687 = vmatpush1.msra.mxu0 0.0
    %3688 = vmatprep.subr.mxu0 0.0
    %3689 = vmatpush1.msra.mxu0 0.0
    %3690 = vmatprep.subr.mxu0 0.0
    %3691 = vmatpush1.msra.mxu0 0.0
    %3692 = vmatprep.subr.mxu0 0.0
    %3693 = vmatpush1.msra.mxu0 0.0
    %3694 = vmatprep.subr.mxu0 0.0
    %3695 = vmatpush1.msra.mxu0 0.0
    %3696 = vmatprep.subr.mxu0 0.0
    %3697 = vmatpush1.msra.mxu0 0.0
    %3698 = vmatprep.subr.mxu0 0.0
    %3699 = vmatpush1.msra.mxu0 0.0
    %3700 = vmatprep.subr.mxu0 0.0
    %3701 = vmatpush1.msra.mxu0 0.0
    %3702 = vmatprep.subr.mxu0 0.0
    %3703 = vmatpush1.msra.mxu0 %v3159
    %3704 = vmatprep.subr.mxu0 0.0
    %3705 = vmatpush1.msra.mxu0 %v3158
    %3706 = vmatprep.subr.mxu0 0.0
    %3707 = vmatpush2.msra.mxu0 0.0
    %3708 = vmatprep.subr.mxu0 0.0
    %3709 = vmatpush2.msra.mxu0 0.0
    %3710 = vmatprep.subr.mxu0 0.0
    %3711 = vmatpush2.msra.mxu0 0.0
    %3712 = vmatprep.subr.mxu0 0.0
    %3713 = vmatpush2.msra.mxu0 0.0
    %3714 = vmatprep.subr.mxu0 0.0
    %3715 = vmatpush2.msra.mxu0 0.0
    %3716 = vmatprep.subr.mxu0 0.0
    %3717 = vmatpush2.msra.mxu0 0.0
    %3718 = vmatprep.subr.mxu0 0.0
    %3719 = vmatpush2.msra.mxu0 0.0
    %3720 = vmatprep.subr.mxu0 0.0
    %3721 = vmatpush2.msra.mxu0 0.0
    %3722 = vmatprep.subr.mxu0 0.0
    %3723 = vmatpush2.msra.mxu0 0.0
    %3724 = vmatprep.subr.mxu0 0.0
    %3725 = vmatpush2.msra.mxu0 0.0
    %3726 = vmatprep.subr.mxu0 0.0
    %3727 = vmatpush2.msra.mxu0 0.0
    %3728 = vmatprep.subr.mxu0 0.0
    %3729 = vmatpush2.msra.mxu0 0.0
    %3730 = vmatprep.subr.mxu0 0.0
    %3731 = vmatpush2.msra.mxu0 0.0
    %3732 = vmatprep.subr.mxu0 0.0
    %3733 = vmatpush2.msra.mxu0 0.0
    %3734 = vmatprep.subr.mxu0 0.0
    %3735 = vmatpush2.msra.mxu0 0.0
    %3736 = vmatprep.subr.mxu0 0.0
    %3737 = vmatpush2.msra.mxu0 0.0
    %3738 = vmatprep.mubr.f32.mxu0 0.0
    %3739 = vmatmul.mubr.f32.gmra.mxu0 %v3672
    %v3740 = vpop.f32.mrf.mxu0
    %v3741 = vadd.f32 0.0, %v3740
    %v3742 = vpop.f32.mrf.mxu0
    %3743 = vdwg.mxu0
    %v3744 = vsel %vm1870, %v3230, 0.0
    %v3745 = vsel %vm1870, %v3303, 0.0
    %v3746 = vadd.f32 %v3744, %v3745
    %v3747 = vsel %vm1870, %v3376, 0.0
    %v3748 = vadd.f32 %v3746, %v3747
    %v3749 = vsel %vm1870, %v3449, 0.0
    %v3750 = vadd.f32 %v3748, %v3749
    %v3751 = vsel %vm1870, %v3522, 0.0
    %v3752 = vsel %vm1870, %v3595, 0.0
    %v3753 = vadd.f32 %v3751, %v3752
    %v3754 = vsel %vm1870, %v3668, 0.0
    %v3755 = vadd.f32 %v3753, %v3754
    %v3756 = vsel %vm1870, %v3741, 0.0
    %v3757 = vadd.f32 %v3755, %v3756
    %v3758 = vld [vmem:[%s5] sm:$0x1]
    %v3760 = vlaneseq
    %v3761 = vshrl.u32 %v3760, 7
    %v3762 = vsub.s32 0, %v3761
    %v3763 = vrot.slane %v3758, %v3762
    %v3765 = vadd.f32 %v3750, %v3763
    %v3766 = vadd.f32 %v3757, %v3763
    %3767 = vst.msk [vmem:[#allocation2] sm:$0xff] %vm1870, %v3765
    %3768 = vst.msk [vmem:[#allocation2 + $0x8] sm:$0xff] %vm1870, %v3766
    // Predicated region
    $region26: #{tpu_custom_call.1} parent=1 // pred_check
      _
    $region27: #{tpu_custom_call.1} parent=1 // pred_check_branch
      %3770 = sbr.rel (0) target = $region29
    $region28: #{tpu_custom_call.1} parent=1 // pred_region
      %s3772 = ssub.s32 256, 256
      %3773 = vsyncadd [#allocation3], %s3772
      %s3774 = sshll.u32 [#allocation2], 4
      %s3775 = int_to_ptr.vmem [resolvable:$true] %s3774
      %3780 = dma.vmem_to_hbm [thread:$0]  %s3775, 256, %s6, [#allocation3], 128, 128, 8
    $region29: #{tpu_custom_call.1} parent=1 // pred_fallthru
      _
    // Predicated region
    $region30: #{tpu_custom_call.1} parent=1 // pred_check
      _
    $region31: #{tpu_custom_call.1} parent=1 // pred_check_branch
      %3782 = sbr.rel (0) target = $region33
    $region32: #{tpu_custom_call.1} parent=1 // pred_region
      %3783 = dma.done [#allocation3], 256
    $region33: #{tpu_custom_call.1} parent=1 // pred_fallthru
      _
    %3784 = vsyncpa [#allocation3], 1

</llo_original>
